<compile_context>
chip_gen: v7x
topology: tpu7x:2x2x1
jax: 0.10.0
libtpu: 0.0.40
codegen_flags: <defaults>
</compile_context>

<pallas_src>
import functools
import jax
import jax.numpy as jnp
from jax.experimental import pallas as pl
from jax.experimental.pallas import tpu as pltpu


# --------------------------------------------------------------------------
# Fused Pallas kernel: embeddings-LN + all encoder layers + pooler + head
# --------------------------------------------------------------------------

def _bert_fused_kernel(emb_ref, mask_ref, egamma_ref, ebeta_ref,
                       wqkv_ref, bqkv_ref, wo_ref, bo_ref, ln1g_ref, ln1b_ref,
                       w1_ref, b1_ref, w2_ref, b2_ref, ln2g_ref, ln2b_ref,
                       pw_ref, pb_ref, ow_ref, ob_ref,
                       out_ref, x_scr, ctx_scr,
                       *, batch, seq, n_heads, dh_pad, eps):
    l = pl.program_id(0)

    def layer_norm(v, g, b):
        mean = jnp.mean(v, axis=-1, keepdims=True)
        var = jnp.mean((v - mean) * (v - mean), axis=-1, keepdims=True)
        return (v - mean) * jax.lax.rsqrt(var + eps) * g + b

    # ---- embedding LayerNorm: only on the first grid step ----
    @pl.when(l == 0)
    def _():
        x_scr[...] = layer_norm(emb_ref[...], egamma_ref[...], ebeta_ref[...])

    # ---- one encoder layer: all batch rows at once, activations resident in VMEM ----
    x = x_scr[...]                                            # (B*S, H) fp32
    x_bf = x.astype(jnp.bfloat16)

    # Fused, head-padded QKV projection (attention scale folded into the Q columns).
    qkv = jnp.dot(x_bf, wqkv_ref[0],
                  preferred_element_type=jnp.float32) + bqkv_ref[0]   # (B*S, 3*nh*dh_pad)

    # Per-(row, head) attention.  Every slice is 128-lane / 8-sublane aligned
    # (head dim padded to 128 lanes), so no relayout copies.
    for b in range(batch):
        bias = mask_ref[b]                                    # (1, S) additive key mask
        r0 = b * seq
        for h in range(n_heads):
            qh = qkv[r0:r0 + seq,
                     h * dh_pad:(h + 1) * dh_pad].astype(jnp.bfloat16)
            kh = qkv[r0:r0 + seq,
                     (n_heads + h) * dh_pad:(n_heads + h + 1) * dh_pad].astype(jnp.bfloat16)
            vh = qkv[r0:r0 + seq,
                     (2 * n_heads + h) * dh_pad:(2 * n_heads + h + 1) * dh_pad].astype(jnp.bfloat16)
            # scores = q @ k^T via contraction on the last axis (no explicit transpose)
            s = jax.lax.dot_general(qh, kh, (((1,), (1,)), ((), ())),
                                    preferred_element_type=jnp.float32) + bias   # (S, S)
            mx = jnp.max(s, axis=-1, keepdims=True)
            p = jnp.exp(s - mx)
            p = p * pl.reciprocal(jnp.sum(p, axis=-1, keepdims=True), approx=True)
            ctx = jnp.dot(p.astype(jnp.bfloat16), vh,
                          preferred_element_type=jnp.float32)                    # (S, dh_pad)
            ctx_scr[r0:r0 + seq, h * dh_pad:(h + 1) * dh_pad] = ctx.astype(jnp.bfloat16)

    # Single full-width output projection over all rows / heads (K = n_heads * dh_pad).
    attn = jnp.dot(ctx_scr[...], wo_ref[0],
                   preferred_element_type=jnp.float32) + bo_ref[0]               # (B*S, H)

    # Add & LayerNorm 1
    x1 = layer_norm(attn + x, ln1g_ref[0], ln1b_ref[0])

    # FFN: gelu(x1 @ w1 + b1) @ w2 + b2   (tanh-approx GELU; fp32 elementwise)
    ff = jnp.dot(x1.astype(jnp.bfloat16), w1_ref[0],
                 preferred_element_type=jnp.float32) + b1_ref[0]
    ff = 0.5 * ff * (1.0 + jnp.tanh(0.7978845608028654
                                    * (ff + 0.044715 * ff * ff * ff)))
    y = jnp.dot(ff.astype(jnp.bfloat16), w2_ref[0],
                preferred_element_type=jnp.float32) + b2_ref[0]

    # Add & LayerNorm 2 -> carry to the next grid step via the persistent scratch.
    x_scr[...] = layer_norm(y + x1, ln2g_ref[0], ln2b_ref[0])

    # ---- pooler + dropout(identity) + classifier head: fused into the last step ----
    @pl.when(l == pl.num_programs(0) - 1)
    def _():
        cls = jnp.concatenate(
            [x_scr[b * seq:b * seq + 1, :] for b in range(batch)], axis=0)       # (B, H)
        pooled = jnp.tanh(jnp.dot(cls.astype(jnp.bfloat16), pw_ref[...],
                                  preferred_element_type=jnp.float32) + pb_ref[...])
        # Dropout(p=0.3): identity in eval/inference mode.
        # TODO(synk): training-mode stochastic dropout (pltpu.prng_random_bits) not implemented.
        logits = jnp.dot(pooled.astype(jnp.bfloat16), ow_ref[...],
                         preferred_element_type=jnp.float32) + ob_ref[...]       # (B, 128)
        out_ref[...] = logits.astype(out_ref.dtype)


# --------------------------------------------------------------------------
# Mini-BERT + classifier head (deterministic synthetic parameters)
# --------------------------------------------------------------------------

def init_params(key, *, vocab, max_pos, hidden, n_layers, ffn, n_classes, n_heads):
    def nrm(k, shape):
        return (0.02 * jax.random.normal(k, shape)).astype(jnp.float32)

    Dh = hidden // n_heads
    DhP = max(128, Dh)                       # per-head dim padded to a full 128-lane block
    scale = 1.0 / (Dh ** 0.5)
    keys = iter(jax.random.split(key, 8 + 8 * n_layers))

    p = {
        "word_emb": nrm(next(keys), (vocab, hidden)),
        "pos_emb": nrm(next(keys), (max_pos, hidden)),
        "type_emb": nrm(next(keys), (2, hidden)),
        "emb_ln_g": jnp.ones((1, hidden), jnp.float32),
        "emb_ln_b": jnp.zeros((1, hidden), jnp.float32),
        "pool_w": nrm(next(keys), (hidden, hidden)).astype(jnp.bfloat16),
        "pool_b": jnp.zeros((1, hidden), jnp.float32),
        "dh_pad": DhP,
    }

    # Lane-dense classifier head: pad N=2 classes out to 128 lanes, slice outside.
    n_pad = 128
    out_w = nrm(next(keys), (hidden, n_classes))
    p["out_w_pad"] = (jnp.zeros((hidden, n_pad), jnp.float32)
                      .at[:, :n_classes].set(out_w).astype(jnp.bfloat16))
    p["out_b_pad"] = jnp.zeros((1, n_pad), jnp.float32)

    # Stacked per-layer weights (leading L axis), head-padded so every per-head slice
    # inside the kernel is 128-lane aligned.  Attention scale folded into Wq.
    wqkv = jnp.zeros((n_layers, hidden, 3 * n_heads * DhP), jnp.float32)
    wo_p = jnp.zeros((n_layers, n_heads * DhP, hidden), jnp.float32)
    w1 = jnp.zeros((n_layers, hidden, ffn), jnp.float32)
    w2 = jnp.zeros((n_layers, ffn, hidden), jnp.float32)
    for li in range(n_layers):
        wq = nrm(next(keys), (hidden, hidden)) * scale   # fold 1/sqrt(Dh) into Wq
        wk = nrm(next(keys), (hidden, hidden))
        wv = nrm(next(keys), (hidden, hidden))
        wo = nrm(next(keys), (hidden, hidden))
        w1 = w1.at[li].set(nrm(next(keys), (hidden, ffn)))
        w2 = w2.at[li].set(nrm(next(keys), (ffn, hidden)))
        for h in range(n_heads):
            src = slice(h * Dh, (h + 1) * Dh)
            wqkv = wqkv.at[li, :, h * DhP:h * DhP + Dh].set(wq[:, src])
            wqkv = wqkv.at[li, :, (n_heads + h) * DhP:(n_heads + h) * DhP + Dh].set(wk[:, src])
            wqkv = wqkv.at[li, :, (2 * n_heads + h) * DhP:
                           (2 * n_heads + h) * DhP + Dh].set(wv[:, src])
            wo_p = wo_p.at[li, h * DhP:h * DhP + Dh, :].set(wo[src, :])

    # NOTE: if real BERT weights (non-zero Q bias) are ever loaded, the Q third of bqkv
    # must also be scaled by 1/sqrt(Dh); padded bias columns must stay zero.
    p["wqkv"] = wqkv.astype(jnp.bfloat16)
    p["bqkv"] = jnp.zeros((n_layers, 1, 3 * n_heads * DhP), jnp.float32)
    p["wo"] = wo_p.astype(jnp.bfloat16)
    p["bo"] = jnp.zeros((n_layers, 1, hidden), jnp.float32)
    p["ln1_g"] = jnp.ones((n_layers, 1, hidden), jnp.float32)
    p["ln1_b"] = jnp.zeros((n_layers, 1, hidden), jnp.float32)
    p["w1"] = w1.astype(jnp.bfloat16)
    p["b1"] = jnp.zeros((n_layers, 1, ffn), jnp.float32)
    p["w2"] = w2.astype(jnp.bfloat16)
    p["b2"] = jnp.zeros((n_layers, 1, hidden), jnp.float32)
    p["ln2_g"] = jnp.ones((n_layers, 1, hidden), jnp.float32)
    p["ln2_b"] = jnp.zeros((n_layers, 1, hidden), jnp.float32)
    return p


def depression_classifier_forward(params, input_ids, attention_mask, *, n_heads, n_classes):
    B, S = input_ids.shape
    H = params["word_emb"].shape[1]
    L = params["wqkv"].shape[0]
    DhP = params["dh_pad"]
    FFN = params["w1"].shape[2]
    NPad = params["out_w_pad"].shape[1]

    # ---- embeddings (gather glue, outside the kernel) ----
    emb = (params["word_emb"][input_ids]
           + params["pos_emb"][:S][None, :, :]
           + params["type_emb"][0][None, None, :])                      # [B, S, H]
    emb_flat = emb.reshape(B * S, H)

    # additive attention-mask bias: (1 - mask) * -1e4, shape [B, 1, S]
    mask_bias = ((1.0 - attention_mask.astype(jnp.float32)) * -10000.0).reshape(B, 1, S)

    kernel = functools.partial(_bert_fused_kernel, batch=B, seq=S,
                               n_heads=n_heads, dh_pad=DhP, eps=1e-12)

    logits_pad = pl.pallas_call(
        kernel,
        out_shape=jax.ShapeDtypeStruct((B, NPad), jnp.float32),
        grid=(L,),
        in_specs=[
            pl.BlockSpec((B * S, H), lambda l: (0, 0)),                  # emb (flattened)
            pl.BlockSpec((B, 1, S), lambda l: (0, 0, 0)),                # mask bias
            pl.BlockSpec((1, H), lambda l: (0, 0)),                      # emb LN gamma
            pl.BlockSpec((1, H), lambda l: (0, 0)),                      # emb LN beta
            pl.BlockSpec((1, H, 3 * n_heads * DhP), lambda l: (l, 0, 0)),  # wqkv (bf16)
            pl.BlockSpec((1, 1, 3 * n_heads * DhP), lambda l: (l, 0, 0)),  # bqkv
            pl.BlockSpec((1, n_heads * DhP, H), lambda l: (l, 0, 0)),      # wo (bf16)
            pl.BlockSpec((1, 1, H), lambda l: (l, 0, 0)),                  # bo
            pl.BlockSpec((1, 1, H), lambda l: (l, 0, 0)),                  # ln1 gamma
            pl.BlockSpec((1, 1, H), lambda l: (l, 0, 0)),                  # ln1 beta
            pl.BlockSpec((1, H, FFN), lambda l: (l, 0, 0)),                # w1 (bf16)
            pl.BlockSpec((1, 1, FFN), lambda l: (l, 0, 0)),                # b1
            pl.BlockSpec((1, FFN, H), lambda l: (l, 0, 0)),                # w2 (bf16)
            pl.BlockSpec((1, 1, H), lambda l: (l, 0, 0)),                  # b2
            pl.BlockSpec((1, 1, H), lambda l: (l, 0, 0)),                  # ln2 gamma
            pl.BlockSpec((1, 1, H), lambda l: (l, 0, 0)),                  # ln2 beta
            pl.BlockSpec((H, H), lambda l: (0, 0)),                      # pool_w (bf16)
            pl.BlockSpec((1, H), lambda l: (0, 0)),                      # pool_b
            pl.BlockSpec((H, NPad), lambda l: (0, 0)),                   # out_w_pad (bf16)
            pl.BlockSpec((1, NPad), lambda l: (0, 0)),                   # out_b_pad
        ],
        out_specs=pl.BlockSpec((B, NPad), lambda l: (0, 0)),             # logits (lane-dense)
        scratch_shapes=[
            pltpu.VMEM((B * S, H), jnp.float32),                 # resident activations
            pltpu.VMEM((B * S, n_heads * DhP), jnp.bfloat16),    # per-head ctx assembly
        ],
        compiler_params=pltpu.CompilerParams(
            # Layer axis carries the activation scratch -> must be sequential.
            dimension_semantics=("arbitrary",),
        ),
    )(emb_flat, mask_bias, params["emb_ln_g"], params["emb_ln_b"],
      params["wqkv"], params["bqkv"], params["wo"], params["bo"],
      params["ln1_g"], params["ln1_b"], params["w1"], params["b1"],
      params["w2"], params["b2"], params["ln2_g"], params["ln2_b"],
      params["pool_w"], params["pool_b"], params["out_w_pad"], params["out_b_pad"])

    return logits_pad[:, :n_classes]


# --------------------------------------------------------------------------
# main
# --------------------------------------------------------------------------

if __name__ == "__main__":
    B, S = 2, 16
    HIDDEN, N_HEADS, N_LAYERS, FFN = 128, 2, 2, 512
    VOCAB, MAX_POS, N_CLASSES = 128, 32, 2

    root = jax.random.PRNGKey(0)
    k_param, k_ids, k_mask = jax.random.split(root, 3)

    params = init_params(k_param, vocab=VOCAB, max_pos=MAX_POS, hidden=HIDDEN,
                         n_layers=N_LAYERS, ffn=FFN, n_classes=N_CLASSES,
                         n_heads=N_HEADS)

    input_ids = jax.random.randint(k_ids, (B, S), 0, VOCAB, dtype=jnp.int32)
    # valid tokens first, a few padding positions at the end of the second row
    attention_mask = (jnp.arange(S)[None, :] < jnp.array([[S], [S - 4]])).astype(jnp.int32)

    logits = depression_classifier_forward(params, input_ids, attention_mask,
                                           n_heads=N_HEADS, n_classes=N_CLASSES)
    jax.block_until_ready(logits)
    assert logits.shape == (B, N_CLASSES) and logits.dtype == jnp.float32
    assert bool(jnp.all(jnp.isfinite(logits)))
    print("KERNEL_OK")
</pallas_src>

<mosaic_0001>
module attributes {stable_mosaic.version = 11 : i64} {
  func.func @_bert_fused_kernel(%arg0: i32, %arg1: memref<32x128xf32, #tpu.memory_space<vmem>>, %arg2: memref<2x1x16xf32, #tpu.memory_space<vmem>>, %arg3: memref<1x128xf32, #tpu.memory_space<vmem>>, %arg4: memref<1x128xf32, #tpu.memory_space<vmem>>, %arg5: memref<1x128x768xbf16, #tpu.memory_space<vmem>>, %arg6: memref<1x1x768xf32, #tpu.memory_space<vmem>>, %arg7: memref<1x256x128xbf16, #tpu.memory_space<vmem>>, %arg8: memref<1x1x128xf32, #tpu.memory_space<vmem>>, %arg9: memref<1x1x128xf32, #tpu.memory_space<vmem>>, %arg10: memref<1x1x128xf32, #tpu.memory_space<vmem>>, %arg11: memref<1x128x512xbf16, #tpu.memory_space<vmem>>, %arg12: memref<1x1x512xf32, #tpu.memory_space<vmem>>, %arg13: memref<1x512x128xbf16, #tpu.memory_space<vmem>>, %arg14: memref<1x1x128xf32, #tpu.memory_space<vmem>>, %arg15: memref<1x1x128xf32, #tpu.memory_space<vmem>>, %arg16: memref<1x1x128xf32, #tpu.memory_space<vmem>>, %arg17: memref<128x128xbf16, #tpu.memory_space<vmem>>, %arg18: memref<1x128xf32, #tpu.memory_space<vmem>>, %arg19: memref<128x128xbf16, #tpu.memory_space<vmem>>, %arg20: memref<1x128xf32, #tpu.memory_space<vmem>>, %arg21: memref<2x128xf32, #tpu.memory_space<vmem>>, %arg22: memref<32x128xf32, #tpu.memory_space<vmem>>, %arg23: memref<32x256xbf16, #tpu.memory_space<vmem>>) attributes {dimension_semantics = [#tpu.dimension_semantics<arbitrary>], iteration_bounds = array<i64: 2>, scalar_prefetch = 0 : i64, scratch_operands = 2 : i64, tpu.core_type = #tpu.core_type<tc>, window_params = [{pipeline_mode = #tpu.pipeline_mode<synchronous>, transform_indices = @transform_0, window_bounds = array<i64: 32, 128>}, {pipeline_mode = #tpu.pipeline_mode<synchronous>, transform_indices = @transform_1, window_bounds = array<i64: 2, 1, 16>}, {pipeline_mode = #tpu.pipeline_mode<synchronous>, transform_indices = @transform_2, window_bounds = array<i64: 1, 128>}, {pipeline_mode = #tpu.pipeline_mode<synchronous>, transform_indices = @transform_3, window_bounds = array<i64: 1, 128>}, {transform_indices = @transform_4, window_bounds = array<i64: 1, 128, 768>}, {transform_indices = @transform_5, window_bounds = array<i64: 1, 1, 768>}, {transform_indices = @transform_6, window_bounds = array<i64: 1, 256, 128>}, {transform_indices = @transform_7, window_bounds = array<i64: 1, 1, 128>}, {transform_indices = @transform_8, window_bounds = array<i64: 1, 1, 128>}, {transform_indices = @transform_9, window_bounds = array<i64: 1, 1, 128>}, {transform_indices = @transform_10, window_bounds = array<i64: 1, 128, 512>}, {transform_indices = @transform_11, window_bounds = array<i64: 1, 1, 512>}, {transform_indices = @transform_12, window_bounds = array<i64: 1, 512, 128>}, {transform_indices = @transform_13, window_bounds = array<i64: 1, 1, 128>}, {transform_indices = @transform_14, window_bounds = array<i64: 1, 1, 128>}, {transform_indices = @transform_15, window_bounds = array<i64: 1, 1, 128>}, {pipeline_mode = #tpu.pipeline_mode<synchronous>, transform_indices = @transform_16, window_bounds = array<i64: 128, 128>}, {pipeline_mode = #tpu.pipeline_mode<synchronous>, transform_indices = @transform_17, window_bounds = array<i64: 1, 128>}, {pipeline_mode = #tpu.pipeline_mode<synchronous>, transform_indices = @transform_18, window_bounds = array<i64: 128, 128>}, {pipeline_mode = #tpu.pipeline_mode<synchronous>, transform_indices = @transform_19, window_bounds = array<i64: 1, 128>}, {pipeline_mode = #tpu.pipeline_mode<synchronous>, transform_indices = @transform_20, window_bounds = array<i64: 2, 128>}]} {
    %c0_i32 = arith.constant 0 : i32
    %0 = arith.cmpi eq, %arg0, %c0_i32 : i32
    %1 = arith.extui %0 : i1 to i32
    %c0_i32_0 = arith.constant 0 : i32
    %2 = arith.cmpi ne, %1, %c0_i32_0 : i32
    scf.if %2 {
      %c0_87 = arith.constant 0 : index
      %c0_88 = arith.constant 0 : index
      %207 = vector.load %arg1[%c0_87, %c0_88] : memref<32x128xf32, #tpu.memory_space<vmem>>, vector<32x128xf32>
      %c0_89 = arith.constant 0 : index
      %c0_90 = arith.constant 0 : index
      %208 = vector.load %arg3[%c0_89, %c0_90] : memref<1x128xf32, #tpu.memory_space<vmem>>, vector<1x128xf32>
      %c0_91 = arith.constant 0 : index
      %c0_92 = arith.constant 0 : index
      %209 = vector.load %arg4[%c0_91, %c0_92] : memref<1x128xf32, #tpu.memory_space<vmem>>, vector<1x128xf32>
      %cst_93 = arith.constant dense<0.000000e+00> : vector<32xf32>
      %210 = vector.multi_reduction <add>, %207, %cst_93 [1] : vector<32x128xf32> to vector<32xf32>
      %211 = vector.shape_cast %210 : vector<32xf32> to vector<32x1xf32>
      %cst_94 = arith.constant 1.280000e+02 : f32
      %212 = vector.broadcast %cst_94 : f32 to vector<32x1xf32>
      %213 = arith.divf %211, %212 : vector<32x1xf32>
      %214 = vector.broadcast %213 : vector<32x1xf32> to vector<32x128xf32>
      %215 = arith.subf %207, %214 : vector<32x128xf32>
      %216 = vector.broadcast %213 : vector<32x1xf32> to vector<32x128xf32>
      %217 = arith.subf %207, %216 : vector<32x128xf32>
      %218 = arith.mulf %215, %217 : vector<32x128xf32>
      %cst_95 = arith.constant dense<0.000000e+00> : vector<32xf32>
      %219 = vector.multi_reduction <add>, %218, %cst_95 [1] : vector<32x128xf32> to vector<32xf32>
      %220 = vector.shape_cast %219 : vector<32xf32> to vector<32x1xf32>
      %cst_96 = arith.constant 1.280000e+02 : f32
      %221 = vector.broadcast %cst_96 : f32 to vector<32x1xf32>
      %222 = arith.divf %220, %221 : vector<32x1xf32>
      %223 = vector.broadcast %213 : vector<32x1xf32> to vector<32x128xf32>
      %224 = arith.subf %207, %223 : vector<32x128xf32>
      %cst_97 = arith.constant 9.99999996E-13 : f32
      %225 = vector.broadcast %cst_97 : f32 to vector<32x1xf32>
      %226 = arith.addf %222, %225 : vector<32x1xf32>
      %227 = math.rsqrt %226 : vector<32x1xf32>
      %228 = vector.broadcast %227 : vector<32x1xf32> to vector<32x128xf32>
      %229 = arith.mulf %224, %228 : vector<32x128xf32>
      %230 = vector.broadcast %208 : vector<1x128xf32> to vector<32x128xf32>
      %231 = arith.mulf %229, %230 : vector<32x128xf32>
      %232 = vector.broadcast %209 : vector<1x128xf32> to vector<32x128xf32>
      %233 = arith.addf %231, %232 : vector<32x128xf32>
      %c0_98 = arith.constant 0 : index
      %c0_99 = arith.constant 0 : index
      %234 = vector.load %arg22[%c0_98, %c0_99] : memref<32x128xf32, #tpu.memory_space<vmem>>, vector<32x128xf32>
      tpu.vector_store %arg22[%c0_98, %c0_99], %233 {strides = array<i32>} : memref<32x128xf32, #tpu.memory_space<vmem>>, vector<32x128xf32>,
    } else {
    }
    %c0 = arith.constant 0 : index
    %c0_1 = arith.constant 0 : index
    %3 = vector.load %arg22[%c0, %c0_1] : memref<32x128xf32, #tpu.memory_space<vmem>>, vector<32x128xf32>
    %4 = arith.truncf %3 : vector<32x128xf32> to vector<32x128xbf16>
    %c0_2 = arith.constant 0 : index
    %c0_3 = arith.constant 0 : index
    %c0_4 = arith.constant 0 : index
    %5 = vector.load %arg5[%c0_2, %c0_3, %c0_4] : memref<1x128x768xbf16, #tpu.memory_space<vmem>>, vector<1x128x768xbf16>
    %6 = vector.shape_cast %5 : vector<1x128x768xbf16> to vector<128x768xbf16>
    %cst = arith.constant dense<0.000000e+00> : vector<32x768xf32>
    %7 = tpu.matmul %4, %6, %cst {dimension_numbers = #tpu.dot_dimension_numbers<[1], [0], [0], [1], [0, 0, 1, 1], [], []>} : vector<32x128xbf16>, vector<128x768xbf16>, vector<32x768xf32> -> vector<32x768xf32>
    %c0_5 = arith.constant 0 : index
    %c0_6 = arith.constant 0 : index
    %c0_7 = arith.constant 0 : index
    %8 = vector.load %arg6[%c0_5, %c0_6, %c0_7] : memref<1x1x768xf32, #tpu.memory_space<vmem>>, vector<1x1x768xf32>
    %9 = vector.shape_cast %8 : vector<1x1x768xf32> to vector<1x768xf32>
    %10 = vector.broadcast %9 : vector<1x768xf32> to vector<32x768xf32>
    %11 = arith.addf %7, %10 : vector<32x768xf32>
    %c0_8 = arith.constant 0 : index
    %c0_9 = arith.constant 0 : index
    %c0_10 = arith.constant 0 : index
    %12 = vector.load %arg2[%c0_8, %c0_9, %c0_10] : memref<2x1x16xf32, #tpu.memory_space<vmem>>, vector<1x1x16xf32>
    %13 = vector.shape_cast %12 : vector<1x1x16xf32> to vector<1x16xf32>
    %14 = vector.extract_strided_slice %11 {offsets = [0, 0], sizes = [16, 128], strides = [1, 1]} : vector<32x768xf32> to vector<16x128xf32>
    %15 = arith.truncf %14 : vector<16x128xf32> to vector<16x128xbf16>
    %16 = vector.extract_strided_slice %11 {offsets = [0, 256], sizes = [16, 128], strides = [1, 1]} : vector<32x768xf32> to vector<16x128xf32>
    %17 = arith.truncf %16 : vector<16x128xf32> to vector<16x128xbf16>
    %18 = vector.extract_strided_slice %11 {offsets = [0, 512], sizes = [16, 128], strides = [1, 1]} : vector<32x768xf32> to vector<16x128xf32>
    %19 = arith.truncf %18 : vector<16x128xf32> to vector<16x128xbf16>
    %cst_11 = arith.constant dense<0.000000e+00> : vector<16x16xf32>
    %20 = tpu.matmul %15, %17, %cst_11 {dimension_numbers = #tpu.dot_dimension_numbers<[1], [1], [0], [0], [0, 0, 1, 0], [], []>} : vector<16x128xbf16>, vector<16x128xbf16>, vector<16x16xf32> -> vector<16x16xf32>
    %21 = vector.broadcast %13 : vector<1x16xf32> to vector<16x16xf32>
    %22 = arith.addf %20, %21 : vector<16x16xf32>
    %cst_12 = arith.constant dense<0xFF800000> : vector<16xf32>
    %23 = vector.multi_reduction <maximumf>, %22, %cst_12 [1] : vector<16x16xf32> to vector<16xf32>
    %24 = vector.shape_cast %23 : vector<16xf32> to vector<16x1xf32>
    %25 = vector.broadcast %24 : vector<16x1xf32> to vector<16x16xf32>
    %26 = arith.subf %22, %25 : vector<16x16xf32>
    %27 = math.exp %26 : vector<16x16xf32>
    %cst_13 = arith.constant dense<0.000000e+00> : vector<16xf32>
    %28 = vector.multi_reduction <add>, %27, %cst_13 [1] : vector<16x16xf32> to vector<16xf32>
    %29 = vector.shape_cast %28 : vector<16xf32> to vector<16x1xf32>
    %30 = tpu.reciprocal %29 {approx = true} : vector<16x1xf32> -> vector<16x1xf32>
    %31 = vector.broadcast %30 : vector<16x1xf32> to vector<16x16xf32>
    %32 = arith.mulf %27, %31 : vector<16x16xf32>
    %33 = arith.truncf %32 : vector<16x16xf32> to vector<16x16xbf16>
    %cst_14 = arith.constant dense<0.000000e+00> : vector<16x128xf32>
    %34 = tpu.matmul %33, %19, %cst_14 {dimension_numbers = #tpu.dot_dimension_numbers<[1], [0], [0], [1], [0, 0, 1, 1], [], []>} : vector<16x16xbf16>, vector<16x128xbf16>, vector<16x128xf32> -> vector<16x128xf32>
    %35 = arith.truncf %34 : vector<16x128xf32> to vector<16x128xbf16>
    %c0_15 = arith.constant 0 : index
    %c0_16 = arith.constant 0 : index
    %36 = vector.load %arg23[%c0_15, %c0_16] : memref<32x256xbf16, #tpu.memory_space<vmem>>, vector<16x128xbf16>
    tpu.vector_store %arg23[%c0_15, %c0_16], %35 {strides = array<i32>} : memref<32x256xbf16, #tpu.memory_space<vmem>>, vector<16x128xbf16>,
    %37 = vector.extract_strided_slice %11 {offsets = [0, 128], sizes = [16, 128], strides = [1, 1]} : vector<32x768xf32> to vector<16x128xf32>
    %38 = arith.truncf %37 : vector<16x128xf32> to vector<16x128xbf16>
    %39 = vector.extract_strided_slice %11 {offsets = [0, 384], sizes = [16, 128], strides = [1, 1]} : vector<32x768xf32> to vector<16x128xf32>
    %40 = arith.truncf %39 : vector<16x128xf32> to vector<16x128xbf16>
    %41 = vector.extract_strided_slice %11 {offsets = [0, 640], sizes = [16, 128], strides = [1, 1]} : vector<32x768xf32> to vector<16x128xf32>
    %42 = arith.truncf %41 : vector<16x128xf32> to vector<16x128xbf16>
    %cst_17 = arith.constant dense<0.000000e+00> : vector<16x16xf32>
    %43 = tpu.matmul %38, %40, %cst_17 {dimension_numbers = #tpu.dot_dimension_numbers<[1], [1], [0], [0], [0, 0, 1, 0], [], []>} : vector<16x128xbf16>, vector<16x128xbf16>, vector<16x16xf32> -> vector<16x16xf32>
    %44 = vector.broadcast %13 : vector<1x16xf32> to vector<16x16xf32>
    %45 = arith.addf %43, %44 : vector<16x16xf32>
    %cst_18 = arith.constant dense<0xFF800000> : vector<16xf32>
    %46 = vector.multi_reduction <maximumf>, %45, %cst_18 [1] : vector<16x16xf32> to vector<16xf32>
    %47 = vector.shape_cast %46 : vector<16xf32> to vector<16x1xf32>
    %48 = vector.broadcast %47 : vector<16x1xf32> to vector<16x16xf32>
    %49 = arith.subf %45, %48 : vector<16x16xf32>
    %50 = math.exp %49 : vector<16x16xf32>
    %cst_19 = arith.constant dense<0.000000e+00> : vector<16xf32>
    %51 = vector.multi_reduction <add>, %50, %cst_19 [1] : vector<16x16xf32> to vector<16xf32>
    %52 = vector.shape_cast %51 : vector<16xf32> to vector<16x1xf32>
    %53 = tpu.reciprocal %52 {approx = true} : vector<16x1xf32> -> vector<16x1xf32>
    %54 = vector.broadcast %53 : vector<16x1xf32> to vector<16x16xf32>
    %55 = arith.mulf %50, %54 : vector<16x16xf32>
    %56 = arith.truncf %55 : vector<16x16xf32> to vector<16x16xbf16>
    %cst_20 = arith.constant dense<0.000000e+00> : vector<16x128xf32>
    %57 = tpu.matmul %56, %42, %cst_20 {dimension_numbers = #tpu.dot_dimension_numbers<[1], [0], [0], [1], [0, 0, 1, 1], [], []>} : vector<16x16xbf16>, vector<16x128xbf16>, vector<16x128xf32> -> vector<16x128xf32>
    %58 = arith.truncf %57 : vector<16x128xf32> to vector<16x128xbf16>
    %c0_21 = arith.constant 0 : index
    %c128 = arith.constant 128 : index
    %59 = vector.load %arg23[%c0_21, %c128] : memref<32x256xbf16, #tpu.memory_space<vmem>>, vector<16x128xbf16>
    tpu.vector_store %arg23[%c0_21, %c128], %58 {strides = array<i32>} : memref<32x256xbf16, #tpu.memory_space<vmem>>, vector<16x128xbf16>,
    %c1 = arith.constant 1 : index
    %c0_22 = arith.constant 0 : index
    %c0_23 = arith.constant 0 : index
    %60 = vector.load %arg2[%c1, %c0_22, %c0_23] : memref<2x1x16xf32, #tpu.memory_space<vmem>>, vector<1x1x16xf32>
    %61 = vector.shape_cast %60 : vector<1x1x16xf32> to vector<1x16xf32>
    %62 = vector.extract_strided_slice %11 {offsets = [16, 0], sizes = [16, 128], strides = [1, 1]} : vector<32x768xf32> to vector<16x128xf32>
    %63 = arith.truncf %62 : vector<16x128xf32> to vector<16x128xbf16>
    %64 = vector.extract_strided_slice %11 {offsets = [16, 256], sizes = [16, 128], strides = [1, 1]} : vector<32x768xf32> to vector<16x128xf32>
    %65 = arith.truncf %64 : vector<16x128xf32> to vector<16x128xbf16>
    %66 = vector.extract_strided_slice %11 {offsets = [16, 512], sizes = [16, 128], strides = [1, 1]} : vector<32x768xf32> to vector<16x128xf32>
    %67 = arith.truncf %66 : vector<16x128xf32> to vector<16x128xbf16>
    %cst_24 = arith.constant dense<0.000000e+00> : vector<16x16xf32>
    %68 = tpu.matmul %63, %65, %cst_24 {dimension_numbers = #tpu.dot_dimension_numbers<[1], [1], [0], [0], [0, 0, 1, 0], [], []>} : vector<16x128xbf16>, vector<16x128xbf16>, vector<16x16xf32> -> vector<16x16xf32>
    %69 = vector.broadcast %61 : vector<1x16xf32> to vector<16x16xf32>
    %70 = arith.addf %68, %69 : vector<16x16xf32>
    %cst_25 = arith.constant dense<0xFF800000> : vector<16xf32>
    %71 = vector.multi_reduction <maximumf>, %70, %cst_25 [1] : vector<16x16xf32> to vector<16xf32>
    %72 = vector.shape_cast %71 : vector<16xf32> to vector<16x1xf32>
    %73 = vector.broadcast %72 : vector<16x1xf32> to vector<16x16xf32>
    %74 = arith.subf %70, %73 : vector<16x16xf32>
    %75 = math.exp %74 : vector<16x16xf32>
    %cst_26 = arith.constant dense<0.000000e+00> : vector<16xf32>
    %76 = vector.multi_reduction <add>, %75, %cst_26 [1] : vector<16x16xf32> to vector<16xf32>
    %77 = vector.shape_cast %76 : vector<16xf32> to vector<16x1xf32>
    %78 = tpu.reciprocal %77 {approx = true} : vector<16x1xf32> -> vector<16x1xf32>
    %79 = vector.broadcast %78 : vector<16x1xf32> to vector<16x16xf32>
    %80 = arith.mulf %75, %79 : vector<16x16xf32>
    %81 = arith.truncf %80 : vector<16x16xf32> to vector<16x16xbf16>
    %cst_27 = arith.constant dense<0.000000e+00> : vector<16x128xf32>
    %82 = tpu.matmul %81, %67, %cst_27 {dimension_numbers = #tpu.dot_dimension_numbers<[1], [0], [0], [1], [0, 0, 1, 1], [], []>} : vector<16x16xbf16>, vector<16x128xbf16>, vector<16x128xf32> -> vector<16x128xf32>
    %83 = arith.truncf %82 : vector<16x128xf32> to vector<16x128xbf16>
    %c16 = arith.constant 16 : index
    %c0_28 = arith.constant 0 : index
    %84 = vector.load %arg23[%c16, %c0_28] : memref<32x256xbf16, #tpu.memory_space<vmem>>, vector<16x128xbf16>
    tpu.vector_store %arg23[%c16, %c0_28], %83 {strides = array<i32>} : memref<32x256xbf16, #tpu.memory_space<vmem>>, vector<16x128xbf16>,
    %85 = vector.extract_strided_slice %11 {offsets = [16, 128], sizes = [16, 128], strides = [1, 1]} : vector<32x768xf32> to vector<16x128xf32>
    %86 = arith.truncf %85 : vector<16x128xf32> to vector<16x128xbf16>
    %87 = vector.extract_strided_slice %11 {offsets = [16, 384], sizes = [16, 128], strides = [1, 1]} : vector<32x768xf32> to vector<16x128xf32>
    %88 = arith.truncf %87 : vector<16x128xf32> to vector<16x128xbf16>
    %89 = vector.extract_strided_slice %11 {offsets = [16, 640], sizes = [16, 128], strides = [1, 1]} : vector<32x768xf32> to vector<16x128xf32>
    %90 = arith.truncf %89 : vector<16x128xf32> to vector<16x128xbf16>
    %cst_29 = arith.constant dense<0.000000e+00> : vector<16x16xf32>
    %91 = tpu.matmul %86, %88, %cst_29 {dimension_numbers = #tpu.dot_dimension_numbers<[1], [1], [0], [0], [0, 0, 1, 0], [], []>} : vector<16x128xbf16>, vector<16x128xbf16>, vector<16x16xf32> -> vector<16x16xf32>
    %92 = vector.broadcast %61 : vector<1x16xf32> to vector<16x16xf32>
    %93 = arith.addf %91, %92 : vector<16x16xf32>
    %cst_30 = arith.constant dense<0xFF800000> : vector<16xf32>
    %94 = vector.multi_reduction <maximumf>, %93, %cst_30 [1] : vector<16x16xf32> to vector<16xf32>
    %95 = vector.shape_cast %94 : vector<16xf32> to vector<16x1xf32>
    %96 = vector.broadcast %95 : vector<16x1xf32> to vector<16x16xf32>
    %97 = arith.subf %93, %96 : vector<16x16xf32>
    %98 = math.exp %97 : vector<16x16xf32>
    %cst_31 = arith.constant dense<0.000000e+00> : vector<16xf32>
    %99 = vector.multi_reduction <add>, %98, %cst_31 [1] : vector<16x16xf32> to vector<16xf32>
    %100 = vector.shape_cast %99 : vector<16xf32> to vector<16x1xf32>
    %101 = tpu.reciprocal %100 {approx = true} : vector<16x1xf32> -> vector<16x1xf32>
    %102 = vector.broadcast %101 : vector<16x1xf32> to vector<16x16xf32>
    %103 = arith.mulf %98, %102 : vector<16x16xf32>
    %104 = arith.truncf %103 : vector<16x16xf32> to vector<16x16xbf16>
    %cst_32 = arith.constant dense<0.000000e+00> : vector<16x128xf32>
    %105 = tpu.matmul %104, %90, %cst_32 {dimension_numbers = #tpu.dot_dimension_numbers<[1], [0], [0], [1], [0, 0, 1, 1], [], []>} : vector<16x16xbf16>, vector<16x128xbf16>, vector<16x128xf32> -> vector<16x128xf32>
    %106 = arith.truncf %105 : vector<16x128xf32> to vector<16x128xbf16>
    %c16_33 = arith.constant 16 : index
    %c128_34 = arith.constant 128 : index
    %107 = vector.load %arg23[%c16_33, %c128_34] : memref<32x256xbf16, #tpu.memory_space<vmem>>, vector<16x128xbf16>
    tpu.vector_store %arg23[%c16_33, %c128_34], %106 {strides = array<i32>} : memref<32x256xbf16, #tpu.memory_space<vmem>>, vector<16x128xbf16>,
    %c0_35 = arith.constant 0 : index
    %c0_36 = arith.constant 0 : index
    %108 = vector.load %arg23[%c0_35, %c0_36] : memref<32x256xbf16, #tpu.memory_space<vmem>>, vector<32x256xbf16>
    %c0_37 = arith.constant 0 : index
    %c0_38 = arith.constant 0 : index
    %c0_39 = arith.constant 0 : index
    %109 = vector.load %arg7[%c0_37, %c0_38, %c0_39] : memref<1x256x128xbf16, #tpu.memory_space<vmem>>, vector<1x256x128xbf16>
    %110 = vector.shape_cast %109 : vector<1x256x128xbf16> to vector<256x128xbf16>
    %cst_40 = arith.constant dense<0.000000e+00> : vector<32x128xf32>
    %111 = tpu.matmul %108, %110, %cst_40 {dimension_numbers = #tpu.dot_dimension_numbers<[1], [0], [0], [1], [0, 0, 1, 1], [], []>} : vector<32x256xbf16>, vector<256x128xbf16>, vector<32x128xf32> -> vector<32x128xf32>
    %c0_41 = arith.constant 0 : index
    %c0_42 = arith.constant 0 : index
    %c0_43 = arith.constant 0 : index
    %112 = vector.load %arg8[%c0_41, %c0_42, %c0_43] : memref<1x1x128xf32, #tpu.memory_space<vmem>>, vector<1x1x128xf32>
    %113 = vector.shape_cast %112 : vector<1x1x128xf32> to vector<1x128xf32>
    %114 = vector.broadcast %113 : vector<1x128xf32> to vector<32x128xf32>
    %115 = arith.addf %111, %114 : vector<32x128xf32>
    %116 = arith.addf %115, %3 : vector<32x128xf32>
    %c0_44 = arith.constant 0 : index
    %c0_45 = arith.constant 0 : index
    %c0_46 = arith.constant 0 : index
    %117 = vector.load %arg9[%c0_44, %c0_45, %c0_46] : memref<1x1x128xf32, #tpu.memory_space<vmem>>, vector<1x1x128xf32>
    %118 = vector.shape_cast %117 : vector<1x1x128xf32> to vector<1x128xf32>
    %c0_47 = arith.constant 0 : index
    %c0_48 = arith.constant 0 : index
    %c0_49 = arith.constant 0 : index
    %119 = vector.load %arg10[%c0_47, %c0_48, %c0_49] : memref<1x1x128xf32, #tpu.memory_space<vmem>>, vector<1x1x128xf32>
    %120 = vector.shape_cast %119 : vector<1x1x128xf32> to vector<1x128xf32>
    %cst_50 = arith.constant dense<0.000000e+00> : vector<32xf32>
    %121 = vector.multi_reduction <add>, %116, %cst_50 [1] : vector<32x128xf32> to vector<32xf32>
    %122 = vector.shape_cast %121 : vector<32xf32> to vector<32x1xf32>
    %cst_51 = arith.constant 1.280000e+02 : f32
    %123 = vector.broadcast %cst_51 : f32 to vector<32x1xf32>
    %124 = arith.divf %122, %123 : vector<32x1xf32>
    %125 = vector.broadcast %124 : vector<32x1xf32> to vector<32x128xf32>
    %126 = arith.subf %116, %125 : vector<32x128xf32>
    %127 = vector.broadcast %124 : vector<32x1xf32> to vector<32x128xf32>
    %128 = arith.subf %116, %127 : vector<32x128xf32>
    %129 = arith.mulf %126, %128 : vector<32x128xf32>
    %cst_52 = arith.constant dense<0.000000e+00> : vector<32xf32>
    %130 = vector.multi_reduction <add>, %129, %cst_52 [1] : vector<32x128xf32> to vector<32xf32>
    %131 = vector.shape_cast %130 : vector<32xf32> to vector<32x1xf32>
    %cst_53 = arith.constant 1.280000e+02 : f32
    %132 = vector.broadcast %cst_53 : f32 to vector<32x1xf32>
    %133 = arith.divf %131, %132 : vector<32x1xf32>
    %134 = vector.broadcast %124 : vector<32x1xf32> to vector<32x128xf32>
    %135 = arith.subf %116, %134 : vector<32x128xf32>
    %cst_54 = arith.constant 9.99999996E-13 : f32
    %136 = vector.broadcast %cst_54 : f32 to vector<32x1xf32>
    %137 = arith.addf %133, %136 : vector<32x1xf32>
    %138 = math.rsqrt %137 : vector<32x1xf32>
    %139 = vector.broadcast %138 : vector<32x1xf32> to vector<32x128xf32>
    %140 = arith.mulf %135, %139 : vector<32x128xf32>
    %141 = vector.broadcast %118 : vector<1x128xf32> to vector<32x128xf32>
    %142 = arith.mulf %140, %141 : vector<32x128xf32>
    %143 = vector.broadcast %120 : vector<1x128xf32> to vector<32x128xf32>
    %144 = arith.addf %142, %143 : vector<32x128xf32>
    %145 = arith.truncf %144 : vector<32x128xf32> to vector<32x128xbf16>
    %c0_55 = arith.constant 0 : index
    %c0_56 = arith.constant 0 : index
    %c0_57 = arith.constant 0 : index
    %146 = vector.load %arg11[%c0_55, %c0_56, %c0_57] : memref<1x128x512xbf16, #tpu.memory_space<vmem>>, vector<1x128x512xbf16>
    %147 = vector.shape_cast %146 : vector<1x128x512xbf16> to vector<128x512xbf16>
    %cst_58 = arith.constant dense<0.000000e+00> : vector<32x512xf32>
    %148 = tpu.matmul %145, %147, %cst_58 {dimension_numbers = #tpu.dot_dimension_numbers<[1], [0], [0], [1], [0, 0, 1, 1], [], []>} : vector<32x128xbf16>, vector<128x512xbf16>, vector<32x512xf32> -> vector<32x512xf32>
    %c0_59 = arith.constant 0 : index
    %c0_60 = arith.constant 0 : index
    %c0_61 = arith.constant 0 : index
    %149 = vector.load %arg12[%c0_59, %c0_60, %c0_61] : memref<1x1x512xf32, #tpu.memory_space<vmem>>, vector<1x1x512xf32>
    %150 = vector.shape_cast %149 : vector<1x1x512xf32> to vector<1x512xf32>
    %151 = vector.broadcast %150 : vector<1x512xf32> to vector<32x512xf32>
    %152 = arith.addf %148, %151 : vector<32x512xf32>
    %cst_62 = arith.constant 5.000000e-01 : f32
    %153 = vector.broadcast %cst_62 : f32 to vector<32x512xf32>
    %154 = arith.mulf %153, %152 : vector<32x512xf32>
    %cst_63 = arith.constant 4.471500e-02 : f32
    %155 = vector.broadcast %cst_63 : f32 to vector<32x512xf32>
    %156 = arith.mulf %155, %152 : vector<32x512xf32>
    %157 = arith.mulf %156, %152 : vector<32x512xf32>
    %158 = arith.mulf %157, %152 : vector<32x512xf32>
    %159 = arith.addf %152, %158 : vector<32x512xf32>
    %cst_64 = arith.constant 0.797884583 : f32
    %160 = vector.broadcast %cst_64 : f32 to vector<32x512xf32>
    %161 = arith.mulf %160, %159 : vector<32x512xf32>
    %162 = math.tanh %161 : vector<32x512xf32>
    %cst_65 = arith.constant 1.000000e+00 : f32
    %163 = vector.broadcast %cst_65 : f32 to vector<32x512xf32>
    %164 = arith.addf %163, %162 : vector<32x512xf32>
    %165 = arith.mulf %154, %164 : vector<32x512xf32>
    %166 = arith.truncf %165 : vector<32x512xf32> to vector<32x512xbf16>
    %c0_66 = arith.constant 0 : index
    %c0_67 = arith.constant 0 : index
    %c0_68 = arith.constant 0 : index
    %167 = vector.load %arg13[%c0_66, %c0_67, %c0_68] : memref<1x512x128xbf16, #tpu.memory_space<vmem>>, vector<1x512x128xbf16>
    %168 = vector.shape_cast %167 : vector<1x512x128xbf16> to vector<512x128xbf16>
    %cst_69 = arith.constant dense<0.000000e+00> : vector<32x128xf32>
    %169 = tpu.matmul %166, %168, %cst_69 {dimension_numbers = #tpu.dot_dimension_numbers<[1], [0], [0], [1], [0, 0, 1, 1], [], []>} : vector<32x512xbf16>, vector<512x128xbf16>, vector<32x128xf32> -> vector<32x128xf32>
    %c0_70 = arith.constant 0 : index
    %c0_71 = arith.constant 0 : index
    %c0_72 = arith.constant 0 : index
    %170 = vector.load %arg14[%c0_70, %c0_71, %c0_72] : memref<1x1x128xf32, #tpu.memory_space<vmem>>, vector<1x1x128xf32>
    %171 = vector.shape_cast %170 : vector<1x1x128xf32> to vector<1x128xf32>
    %172 = vector.broadcast %171 : vector<1x128xf32> to vector<32x128xf32>
    %173 = arith.addf %169, %172 : vector<32x128xf32>
    %174 = arith.addf %173, %144 : vector<32x128xf32>
    %c0_73 = arith.constant 0 : index
    %c0_74 = arith.constant 0 : index
    %c0_75 = arith.constant 0 : index
    %175 = vector.load %arg15[%c0_73, %c0_74, %c0_75] : memref<1x1x128xf32, #tpu.memory_space<vmem>>, vector<1x1x128xf32>
    %176 = vector.shape_cast %175 : vector<1x1x128xf32> to vector<1x128xf32>
    %c0_76 = arith.constant 0 : index
    %c0_77 = arith.constant 0 : index
    %c0_78 = arith.constant 0 : index
    %177 = vector.load %arg16[%c0_76, %c0_77, %c0_78] : memref<1x1x128xf32, #tpu.memory_space<vmem>>, vector<1x1x128xf32>
    %178 = vector.shape_cast %177 : vector<1x1x128xf32> to vector<1x128xf32>
    %cst_79 = arith.constant dense<0.000000e+00> : vector<32xf32>
    %179 = vector.multi_reduction <add>, %174, %cst_79 [1] : vector<32x128xf32> to vector<32xf32>
    %180 = vector.shape_cast %179 : vector<32xf32> to vector<32x1xf32>
    %cst_80 = arith.constant 1.280000e+02 : f32
    %181 = vector.broadcast %cst_80 : f32 to vector<32x1xf32>
    %182 = arith.divf %180, %181 : vector<32x1xf32>
    %183 = vector.broadcast %182 : vector<32x1xf32> to vector<32x128xf32>
    %184 = arith.subf %174, %183 : vector<32x128xf32>
    %185 = vector.broadcast %182 : vector<32x1xf32> to vector<32x128xf32>
    %186 = arith.subf %174, %185 : vector<32x128xf32>
    %187 = arith.mulf %184, %186 : vector<32x128xf32>
    %cst_81 = arith.constant dense<0.000000e+00> : vector<32xf32>
    %188 = vector.multi_reduction <add>, %187, %cst_81 [1] : vector<32x128xf32> to vector<32xf32>
    %189 = vector.shape_cast %188 : vector<32xf32> to vector<32x1xf32>
    %cst_82 = arith.constant 1.280000e+02 : f32
    %190 = vector.broadcast %cst_82 : f32 to vector<32x1xf32>
    %191 = arith.divf %189, %190 : vector<32x1xf32>
    %192 = vector.broadcast %182 : vector<32x1xf32> to vector<32x128xf32>
    %193 = arith.subf %174, %192 : vector<32x128xf32>
    %cst_83 = arith.constant 9.99999996E-13 : f32
    %194 = vector.broadcast %cst_83 : f32 to vector<32x1xf32>
    %195 = arith.addf %191, %194 : vector<32x1xf32>
    %196 = math.rsqrt %195 : vector<32x1xf32>
    %197 = vector.broadcast %196 : vector<32x1xf32> to vector<32x128xf32>
    %198 = arith.mulf %193, %197 : vector<32x128xf32>
    %199 = vector.broadcast %176 : vector<1x128xf32> to vector<32x128xf32>
    %200 = arith.mulf %198, %199 : vector<32x128xf32>
    %201 = vector.broadcast %178 : vector<1x128xf32> to vector<32x128xf32>
    %202 = arith.addf %200, %201 : vector<32x128xf32>
    %c0_84 = arith.constant 0 : index
    %c0_85 = arith.constant 0 : index
    %203 = vector.load %arg22[%c0_84, %c0_85] : memref<32x128xf32, #tpu.memory_space<vmem>>, vector<32x128xf32>
    tpu.vector_store %arg22[%c0_84, %c0_85], %202 {strides = array<i32>} : memref<32x128xf32, #tpu.memory_space<vmem>>, vector<32x128xf32>,
    %c1_i32 = arith.constant 1 : i32
    %204 = arith.cmpi eq, %arg0, %c1_i32 : i32
    %205 = arith.extui %204 : i1 to i32
    %c0_i32_86 = arith.constant 0 : i32
    %206 = arith.cmpi ne, %205, %c0_i32_86 : i32
    scf.if %206 {
      %c0_87 = arith.constant 0 : index
      %c0_88 = arith.constant 0 : index
      %207 = vector.load %arg22[%c0_87, %c0_88] : memref<32x128xf32, #tpu.memory_space<vmem>>, vector<1x128xf32>
      %c16_89 = arith.constant 16 : index
      %c0_90 = arith.constant 0 : index
      %208 = vector.load %arg22[%c16_89, %c0_90] : memref<32x128xf32, #tpu.memory_space<vmem>>, vector<1x128xf32>
      %209 = tpu.concatenate %207, %208 in 0 : vector<1x128xf32>, vector<1x128xf32> -> vector<2x128xf32>
      %210 = arith.truncf %209 : vector<2x128xf32> to vector<2x128xbf16>
      %c0_91 = arith.constant 0 : index
      %c0_92 = arith.constant 0 : index
      %211 = vector.load %arg17[%c0_91, %c0_92] : memref<128x128xbf16, #tpu.memory_space<vmem>>, vector<128x128xbf16>
      %cst_93 = arith.constant dense<0.000000e+00> : vector<2x128xf32>
      %212 = tpu.matmul %210, %211, %cst_93 {dimension_numbers = #tpu.dot_dimension_numbers<[1], [0], [0], [1], [0, 0, 1, 1], [], []>} : vector<2x128xbf16>, vector<128x128xbf16>, vector<2x128xf32> -> vector<2x128xf32>
      %c0_94 = arith.constant 0 : index
      %c0_95 = arith.constant 0 : index
      %213 = vector.load %arg18[%c0_94, %c0_95] : memref<1x128xf32, #tpu.memory_space<vmem>>, vector<1x128xf32>
      %214 = vector.broadcast %213 : vector<1x128xf32> to vector<2x128xf32>
      %215 = arith.addf %212, %214 : vector<2x128xf32>
      %216 = math.tanh %215 : vector<2x128xf32>
      %217 = arith.truncf %216 : vector<2x128xf32> to vector<2x128xbf16>
      %c0_96 = arith.constant 0 : index
      %c0_97 = arith.constant 0 : index
      %218 = vector.load %arg19[%c0_96, %c0_97] : memref<128x128xbf16, #tpu.memory_space<vmem>>, vector<128x128xbf16>
      %cst_98 = arith.constant dense<0.000000e+00> : vector<2x128xf32>
      %219 = tpu.matmul %217, %218, %cst_98 {dimension_numbers = #tpu.dot_dimension_numbers<[1], [0], [0], [1], [0, 0, 1, 1], [], []>} : vector<2x128xbf16>, vector<128x128xbf16>, vector<2x128xf32> -> vector<2x128xf32>
      %c0_99 = arith.constant 0 : index
      %c0_100 = arith.constant 0 : index
      %220 = vector.load %arg20[%c0_99, %c0_100] : memref<1x128xf32, #tpu.memory_space<vmem>>, vector<1x128xf32>
      %221 = vector.broadcast %220 : vector<1x128xf32> to vector<2x128xf32>
      %222 = arith.addf %219, %221 : vector<2x128xf32>
      %c0_101 = arith.constant 0 : index
      %c0_102 = arith.constant 0 : index
      %223 = vector.load %arg21[%c0_101, %c0_102] : memref<2x128xf32, #tpu.memory_space<vmem>>, vector<2x128xf32>
      tpu.vector_store %arg21[%c0_101, %c0_102], %222 {strides = array<i32>} : memref<2x128xf32, #tpu.memory_space<vmem>>, vector<2x128xf32>,
    } else {
    }
    return
  }
  func.func @transform_0(%arg0: i32) -> (i32, i32) {
    %c0_i32 = arith.constant 0 : i32
    %c0_i32_0 = arith.constant 0 : i32
    %c0_i32_1 = arith.constant 0 : i32
    return %c0_i32, %c0_i32_0 : i32, i32
  }
  func.func @transform_1(%arg0: i32) -> (i32, i32, i32) {
    %c0_i32 = arith.constant 0 : i32
    %c0_i32_0 = arith.constant 0 : i32
    %c0_i32_1 = arith.constant 0 : i32
    %c0_i32_2 = arith.constant 0 : i32
    return %c0_i32, %c0_i32_0, %c0_i32_1 : i32, i32, i32
  }
  func.func @transform_2(%arg0: i32) -> (i32, i32) {
    %c0_i32 = arith.constant 0 : i32
    %c0_i32_0 = arith.constant 0 : i32
    %c0_i32_1 = arith.constant 0 : i32
    return %c0_i32, %c0_i32_0 : i32, i32
  }
  func.func @transform_3(%arg0: i32) -> (i32, i32) {
    %c0_i32 = arith.constant 0 : i32
    %c0_i32_0 = arith.constant 0 : i32
    %c0_i32_1 = arith.constant 0 : i32
    return %c0_i32, %c0_i32_0 : i32, i32
  }
  func.func @transform_4(%arg0: i32) -> (i32, i32, i32) {
    %c0_i32 = arith.constant 0 : i32
    %c0_i32_0 = arith.constant 0 : i32
    %c0_i32_1 = arith.constant 0 : i32
    return %arg0, %c0_i32, %c0_i32_0 : i32, i32, i32
  }
  func.func @transform_5(%arg0: i32) -> (i32, i32, i32) {
    %c0_i32 = arith.constant 0 : i32
    %c0_i32_0 = arith.constant 0 : i32
    %c0_i32_1 = arith.constant 0 : i32
    return %arg0, %c0_i32, %c0_i32_0 : i32, i32, i32
  }
  func.func @transform_6(%arg0: i32) -> (i32, i32, i32) {
    %c0_i32 = arith.constant 0 : i32
    %c0_i32_0 = arith.constant 0 : i32
    %c0_i32_1 = arith.constant 0 : i32
    return %arg0, %c0_i32, %c0_i32_0 : i32, i32, i32
  }
  func.func @transform_7(%arg0: i32) -> (i32, i32, i32) {
    %c0_i32 = arith.constant 0 : i32
    %c0_i32_0 = arith.constant 0 : i32
    %c0_i32_1 = arith.constant 0 : i32
    return %arg0, %c0_i32, %c0_i32_0 : i32, i32, i32
  }
  func.func @transform_8(%arg0: i32) -> (i32, i32, i32) {
    %c0_i32 = arith.constant 0 : i32
    %c0_i32_0 = arith.constant 0 : i32
    %c0_i32_1 = arith.constant 0 : i32
    return %arg0, %c0_i32, %c0_i32_0 : i32, i32, i32
  }
  func.func @transform_9(%arg0: i32) -> (i32, i32, i32) {
    %c0_i32 = arith.constant 0 : i32
    %c0_i32_0 = arith.constant 0 : i32
    %c0_i32_1 = arith.constant 0 : i32
    return %arg0, %c0_i32, %c0_i32_0 : i32, i32, i32
  }
  func.func @transform_10(%arg0: i32) -> (i32, i32, i32) {
    %c0_i32 = arith.constant 0 : i32
    %c0_i32_0 = arith.constant 0 : i32
    %c0_i32_1 = arith.constant 0 : i32
    return %arg0, %c0_i32, %c0_i32_0 : i32, i32, i32
  }
  func.func @transform_11(%arg0: i32) -> (i32, i32, i32) {
    %c0_i32 = arith.constant 0 : i32
    %c0_i32_0 = arith.constant 0 : i32
    %c0_i32_1 = arith.constant 0 : i32
    return %arg0, %c0_i32, %c0_i32_0 : i32, i32, i32
  }
  func.func @transform_12(%arg0: i32) -> (i32, i32, i32) {
    %c0_i32 = arith.constant 0 : i32
    %c0_i32_0 = arith.constant 0 : i32
    %c0_i32_1 = arith.constant 0 : i32
    return %arg0, %c0_i32, %c0_i32_0 : i32, i32, i32
  }
  func.func @transform_13(%arg0: i32) -> (i32, i32, i32) {
    %c0_i32 = arith.constant 0 : i32
    %c0_i32_0 = arith.constant 0 : i32
    %c0_i32_1 = arith.constant 0 : i32
    return %arg0, %c0_i32, %c0_i32_0 : i32, i32, i32
  }
  func.func @transform_14(%arg0: i32) -> (i32, i32, i32) {
    %c0_i32 = arith.constant 0 : i32
    %c0_i32_0 = arith.constant 0 : i32
    %c0_i32_1 = arith.constant 0 : i32
    return %arg0, %c0_i32, %c0_i32_0 : i32, i32, i32
  }
  func.func @transform_15(%arg0: i32) -> (i32, i32, i32) {
    %c0_i32 = arith.constant 0 : i32
    %c0_i32_0 = arith.constant 0 : i32
    %c0_i32_1 = arith.constant 0 : i32
    return %arg0, %c0_i32, %c0_i32_0 : i32, i32, i32
  }
  func.func @transform_16(%arg0: i32) -> (i32, i32) {
    %c0_i32 = arith.constant 0 : i32
    %c0_i32_0 = arith.constant 0 : i32
    %c0_i32_1 = arith.constant 0 : i32
    return %c0_i32, %c0_i32_0 : i32, i32
  }
  func.func @transform_17(%arg0: i32) -> (i32, i32) {
    %c0_i32 = arith.constant 0 : i32
    %c0_i32_0 = arith.constant 0 : i32
    %c0_i32_1 = arith.constant 0 : i32
    return %c0_i32, %c0_i32_0 : i32, i32
  }
  func.func @transform_18(%arg0: i32) -> (i32, i32) {
    %c0_i32 = arith.constant 0 : i32
    %c0_i32_0 = arith.constant 0 : i32
    %c0_i32_1 = arith.constant 0 : i32
    return %c0_i32, %c0_i32_0 : i32, i32
  }
  func.func @transform_19(%arg0: i32) -> (i32, i32) {
    %c0_i32 = arith.constant 0 : i32
    %c0_i32_0 = arith.constant 0 : i32
    %c0_i32_1 = arith.constant 0 : i32
    return %c0_i32, %c0_i32_0 : i32, i32
  }
  func.func @transform_20(%arg0: i32) -> (i32, i32) {
    %c0_i32 = arith.constant 0 : i32
    %c0_i32_0 = arith.constant 0 : i32
    %c0_i32_1 = arith.constant 0 : i32
    return %c0_i32, %c0_i32_0 : i32, i32
  }
}

</mosaic_0001>

<llo_original>
// kernel: tpu_custom_call.1
$region0: #{tpu_custom_call.1}
  #allocation0 [shape = 'u32[]', space=smem, size = 0x4, offset = 0x4, fixed_abs, tag = 'smem constant byte address 0x4 - core index']
  #allocation1 [shape = 'u32[144,128]{1,0:T(1,128)}', space=vmem, size = 0x12000, scoped, tag = 'internal scratch']
  #allocation2 [shape = 'f32[32,128]{1,0:T(8,128)}', space=vmem, size = 0x4000, scoped, tag = 'scratch operand']
  #allocation3 [shape = 'bf16[32,256]{1,0:T(16,128)(2,1)}', space=vmem, size = 0x4000, scoped, tag = 'scratch operand']
  %s0 = inlined_call_operand.hbm [shape: f32[32,128], index: 0, kind: input, shape index: {}]
  %s1 = inlined_call_operand.vmem [shape: f32[2,1,16], index: 1, kind: input, shape index: {}]
  %s2 = inlined_call_operand.hbm [shape: f32[1,128], index: 2, kind: input, shape index: {}]
  %s3 = inlined_call_operand.hbm [shape: f32[1,128], index: 3, kind: input, shape index: {}]
  %s4 = inlined_call_operand.hbm [shape: bf16[2,128,768], index: 4, kind: input, shape index: {}]
  %s5 = inlined_call_operand.hbm [shape: f32[2,1,768], index: 5, kind: input, shape index: {}]
  %s6 = inlined_call_operand.hbm [shape: bf16[2,256,128], index: 6, kind: input, shape index: {}]
  %s7 = inlined_call_operand.vmem [shape: f32[2,1,128], index: 7, kind: input, shape index: {}]
  %s8 = inlined_call_operand.hbm [shape: f32[2,1,128], index: 8, kind: input, shape index: {}]
  %s9 = inlined_call_operand.hbm [shape: f32[2,1,128], index: 9, kind: input, shape index: {}]
  %s10 = inlined_call_operand.hbm [shape: bf16[2,128,512], index: 10, kind: input, shape index: {}]
  %s11 = inlined_call_operand.hbm [shape: f32[2,1,512], index: 11, kind: input, shape index: {}]
  %s12 = inlined_call_operand.hbm [shape: bf16[2,512,128], index: 12, kind: input, shape index: {}]
  %s13 = inlined_call_operand.hbm [shape: f32[2,1,128], index: 13, kind: input, shape index: {}]
  %s14 = inlined_call_operand.hbm [shape: f32[2,1,128], index: 14, kind: input, shape index: {}]
  %s15 = inlined_call_operand.hbm [shape: f32[2,1,128], index: 15, kind: input, shape index: {}]
  %s16 = inlined_call_operand.hbm [shape: bf16[128,128], index: 16, kind: input, shape index: {}]
  %s17 = inlined_call_operand.hbm [shape: f32[1,128], index: 17, kind: input, shape index: {}]
  %s18 = inlined_call_operand.vmem [shape: bf16[128,128], index: 18, kind: input, shape index: {}]
  %s19 = inlined_call_operand.vmem [shape: f32[1,128], index: 19, kind: input, shape index: {}]
  %s20 = inlined_call_operand.hbm [shape: f32[2,128], index: 20, kind: output, shape index: {}]
  %s21 = sld [smem:[#allocation0]]
  $region185: #{tpu_custom_call.1} parent=0
    _
  %s23 = ssub.s32 1, %s21
  %s24 = scalar_select 0, %s23, %s21
  $region1: #{tpu_custom_call.1} parent=0
    #allocation4 [shape = 'u8[16384]{0}', space=vmem, size = 0x4000, scoped, tag = 'input window, operand 0, single buffered']
    #allocation5 [shape = 's32[2]{0}', space=sflag, size = 0x8, scoped, tag = 'scoped memory for tpu_custom_call.1']
    #allocation6 [shape = 's32[2]{0}', space=sflag, size = 0x8, scoped, tag = 'scoped memory for tpu_custom_call.1']
    #allocation7 [shape = 'u8[512]{0}', space=vmem, size = 0x400, scoped, tag = 'input window, operand 2, single buffered']
    #allocation8 [shape = 's32[1]{0}', space=sflag, size = 0x4, scoped, tag = 'scoped memory for tpu_custom_call.1']
    #allocation9 [shape = 'u8[512]{0}', space=vmem, size = 0x400, scoped, tag = 'input window, operand 3, single buffered']
    #allocation10 [shape = 'u8[393216]{0}', space=vmem, size = 0x60000, scoped, tag = 'input window, operand 4']
    #allocation11 [shape = 's32[2]{0}', space=sflag, size = 0x8, scoped, tag = 'scoped memory for tpu_custom_call.1']
    #allocation12 [shape = 'u8[6144]{0}', space=vmem, size = 0x1800, scoped, tag = 'input window, operand 5']
    #allocation13 [shape = 'u8[131072]{0}', space=vmem, size = 0x20000, scoped, tag = 'input window, operand 6']
    #allocation14 [shape = 's32[2]{0}', space=sflag, size = 0x8, scoped, tag = 'scoped memory for tpu_custom_call.1']
    #allocation15 [shape = 'u8[1024]{0}', space=vmem, size = 0x400, scoped, tag = 'input window, operand 8']
    #allocation16 [shape = 'u8[1024]{0}', space=vmem, size = 0x400, scoped, tag = 'input window, operand 9']
    #allocation17 [shape = 's32[2]{0}', space=sflag, size = 0x8, scoped, tag = 'scoped memory for tpu_custom_call.1']
    #allocation18 [shape = 'u8[262144]{0}', space=vmem, size = 0x40000, scoped, tag = 'input window, operand 10']
    #allocation19 [shape = 'u8[4096]{0}', space=vmem, size = 0x1000, scoped, tag = 'input window, operand 11']
    #allocation20 [shape = 's32[2]{0}', space=sflag, size = 0x8, scoped, tag = 'scoped memory for tpu_custom_call.1']
    #allocation21 [shape = 'u8[262144]{0}', space=vmem, size = 0x40000, scoped, tag = 'input window, operand 12']
    #allocation22 [shape = 'u8[1024]{0}', space=vmem, size = 0x400, scoped, tag = 'input window, operand 13']
    #allocation23 [shape = 's32[2]{0}', space=sflag, size = 0x8, scoped, tag = 'scoped memory for tpu_custom_call.1']
    #allocation24 [shape = 'u8[1024]{0}', space=vmem, size = 0x400, scoped, tag = 'input window, operand 14']
    #allocation25 [shape = 'u8[1024]{0}', space=vmem, size = 0x400, scoped, tag = 'input window, operand 15']
    #allocation26 [shape = 's32[2]{0}', space=sflag, size = 0x8, scoped, tag = 'scoped memory for tpu_custom_call.1']
    #allocation27 [shape = 'u8[32768]{0}', space=vmem, size = 0x8000, scoped, tag = 'input window, operand 16, single buffered']
    #allocation28 [shape = 'u8[512]{0}', space=vmem, size = 0x400, scoped, tag = 'input window, operand 17, single buffered']
    #allocation29 [shape = 's32[1]{0}', space=sflag, size = 0x4, scoped, tag = 'scoped memory for tpu_custom_call.1']
    #allocation30 [shape = 'u8[1024]{0}', space=vmem, size = 0x400, scoped, tag = 'output window, operand 0, single buffered']
    %25 = vsyncpa [#allocation5], 0
    %26 = vsyncpa [#allocation8], 0
    %27 = vsyncpa [#allocation11], 0
    %s28 = scalar_lea.sflag [#allocation11], 1
    %29 = vsyncpa %s28, 0
    %30 = vsyncpa [#allocation14], 0
    %s31 = scalar_lea.sflag [#allocation14], 1
    %32 = vsyncpa %s31, 0
    %33 = vsyncpa [#allocation17], 0
    %s34 = scalar_lea.sflag [#allocation17], 1
    %35 = vsyncpa %s34, 0
    %36 = vsyncpa [#allocation20], 0
    %s37 = scalar_lea.sflag [#allocation20], 1
    %38 = vsyncpa %s37, 0
    %39 = vsyncpa [#allocation23], 0
    %s40 = scalar_lea.sflag [#allocation23], 1
    %41 = vsyncpa %s40, 0
    %42 = vsyncpa [#allocation26], 0
    %s43 = scalar_lea.sflag [#allocation26], 1
    %44 = vsyncpa %s43, 0
    %45 = vsyncpa [#allocation29], 0
    %46 = vsyncpa [#allocation6], 0
    loop: start=0, step=1, limit=4
    $region2: #{tpu_custom_call.1} parent=1 // loop_pre_header
      _
    $region3: #{tpu_custom_call.1} parent=1 // loop_header
      %s48 = sphi 0, %s52
      %p49 = scmp.ge.s32.totalorder %s48, 4
      %s56 = sphi 0, %s56
      %s58 = sphi 0, %s56
      %s59 = sphi 0, %s58
      %s73 = sphi 0, %s59
      %s77 = sphi 0, %s77
      %s79 = sphi 0, %s77
      %s80 = sphi 0, %s79
      %s94 = sphi 0, %s80
      %s98 = sphi 0, %s98
      %s100 = sphi 0, %s98
      %s101 = sphi 0, %s100
      %s115 = sphi 0, %s101
      %s119 = sphi 0, %s119
      %s121 = sphi 0, %s119
      %s122 = sphi 0, %s121
      %s136 = sphi 0, %s122
      %s142 = sphi 0, %s144
      %s145 = sphi 0, %s142
      %s146 = sphi 0, %s145
      %s162 = sphi 0, %s146
      %s168 = sphi 0, %s170
      %s171 = sphi 0, %s168
      %s172 = sphi 0, %s171
      %s188 = sphi 0, %s172
      %s194 = sphi 0, %s196
      %s197 = sphi 0, %s194
      %s198 = sphi 0, %s197
      %s214 = sphi 0, %s198
      %s220 = sphi 0, %s222
      %s223 = sphi 0, %s220
      %s224 = sphi 0, %s223
      %s240 = sphi 0, %s224
      %s246 = sphi 0, %s248
      %s249 = sphi 0, %s246
      %s250 = sphi 0, %s249
      %s266 = sphi 0, %s250
      %s272 = sphi 0, %s274
      %s275 = sphi 0, %s272
      %s276 = sphi 0, %s275
      %s292 = sphi 0, %s276
      %s298 = sphi 0, %s300
      %s301 = sphi 0, %s298
      %s302 = sphi 0, %s301
      %s318 = sphi 0, %s302
      %s324 = sphi 0, %s326
      %s327 = sphi 0, %s324
      %s328 = sphi 0, %s327
      %s344 = sphi 0, %s328
      %s350 = sphi 0, %s352
      %s353 = sphi 0, %s350
      %s354 = sphi 0, %s353
      %s370 = sphi 0, %s354
      %s376 = sphi 0, %s378
      %s379 = sphi 0, %s376
      %s380 = sphi 0, %s379
      %s396 = sphi 0, %s380
      %s402 = sphi 0, %s404
      %s405 = sphi 0, %s402
      %s406 = sphi 0, %s405
      %s422 = sphi 0, %s406
      %s428 = sphi 0, %s430
      %s431 = sphi 0, %s428
      %s432 = sphi 0, %s431
      %s448 = sphi 0, %s432
      %s452 = sphi 0, %s452
      %s454 = sphi 0, %s452
      %s455 = sphi 0, %s454
      %s469 = sphi 0, %s455
      %s473 = sphi 0, %s473
      %s475 = sphi 0, %s473
      %s476 = sphi 0, %s475
      %s490 = sphi 0, %s476
      %s494 = sphi 0, %s494
      %s496 = sphi 0, %s494
      %s497 = sphi 0, %s496
      %s511 = sphi 0, %s497
      %s515 = sphi 0, %s515
      %s517 = sphi 0, %s515
      %s518 = sphi 0, %s517
      %s532 = sphi 0, %s518
      %s536 = sphi 0, %s536
      %s538 = sphi 0, %s536
      %s539 = sphi 0, %s538
      %s553 = sphi 0, %s539
    $region4: #{tpu_custom_call.1} parent=1 // loop_header_branch
      %51 = sbr.rel (%p49) target = $region8
    $region5: #{tpu_custom_call.1} parent=1 // loop_body
      %s53 = ssub.s32 %s48, 1
      %s54 = ssub.s32 %s48, 2
      %s55 = sadd.s32 %s48, 1
      %s57 = sadd.s32 %s56, 1
      %p60 = scmp.eq.s32.totalorder %s48, 1
      %p61 = scmp.ne.s32.totalorder %s56, %s58
      %p62 = scmp.eq.s32.totalorder %s48, 0
      %p63 = por %p61, %p62
      %p64 = scmp.ne.s32.totalorder %s56, %s58
      %p65 = scmp.eq.s32.totalorder %s53, 1
      %p66 = por %p64, %p65
      %p67 = scmp.ne.s32.totalorder %s58, %s59
      %p68 = scmp.eq.s32.totalorder %s53, 0
      %p69 = por %p67, %p68
      %p70 = scmp.ne.s32.totalorder %s58, %s59
      %p71 = scmp.eq.s32.totalorder %s54, 1
      %p72 = por %p70, %p71
      %p74 = scmp.ne.s32.totalorder %s59, %s73
      %p75 = scmp.eq.s32.totalorder %s54, 0
      %p76 = por %p74, %p75
      %s78 = sadd.s32 %s77, 1
      %p81 = scmp.eq.s32.totalorder %s48, 1
      %p82 = scmp.ne.s32.totalorder %s77, %s79
      %p83 = scmp.eq.s32.totalorder %s48, 0
      %p84 = por %p82, %p83
      %p85 = scmp.ne.s32.totalorder %s77, %s79
      %p86 = scmp.eq.s32.totalorder %s53, 1
      %p87 = por %p85, %p86
      %p88 = scmp.ne.s32.totalorder %s79, %s80
      %p89 = scmp.eq.s32.totalorder %s53, 0
      %p90 = por %p88, %p89
      %p91 = scmp.ne.s32.totalorder %s79, %s80
      %p92 = scmp.eq.s32.totalorder %s54, 1
      %p93 = por %p91, %p92
      %p95 = scmp.ne.s32.totalorder %s80, %s94
      %p96 = scmp.eq.s32.totalorder %s54, 0
      %p97 = por %p95, %p96
      %s99 = sadd.s32 %s98, 1
      %p102 = scmp.eq.s32.totalorder %s48, 1
      %p103 = scmp.ne.s32.totalorder %s98, %s100
      %p104 = scmp.eq.s32.totalorder %s48, 0
      %p105 = por %p103, %p104
      %p106 = scmp.ne.s32.totalorder %s98, %s100
      %p107 = scmp.eq.s32.totalorder %s53, 1
      %p108 = por %p106, %p107
      %p109 = scmp.ne.s32.totalorder %s100, %s101
      %p110 = scmp.eq.s32.totalorder %s53, 0
      %p111 = por %p109, %p110
      %p112 = scmp.ne.s32.totalorder %s100, %s101
      %p113 = scmp.eq.s32.totalorder %s54, 1
      %p114 = por %p112, %p113
      %p116 = scmp.ne.s32.totalorder %s101, %s115
      %p117 = scmp.eq.s32.totalorder %s54, 0
      %p118 = por %p116, %p117
      %s120 = sadd.s32 %s119, 1
      %p123 = scmp.eq.s32.totalorder %s48, 1
      %p124 = scmp.ne.s32.totalorder %s119, %s121
      %p125 = scmp.eq.s32.totalorder %s48, 0
      %p126 = por %p124, %p125
      %p127 = scmp.ne.s32.totalorder %s119, %s121
      %p128 = scmp.eq.s32.totalorder %s53, 1
      %p129 = por %p127, %p128
      %p130 = scmp.ne.s32.totalorder %s121, %s122
      %p131 = scmp.eq.s32.totalorder %s53, 0
      %p132 = por %p130, %p131
      %p133 = scmp.ne.s32.totalorder %s121, %s122
      %p134 = scmp.eq.s32.totalorder %s54, 1
      %p135 = por %p133, %p134
      %p137 = scmp.ne.s32.totalorder %s122, %s136
      %p138 = scmp.eq.s32.totalorder %s54, 0
      %p139 = por %p137, %p138
      %s140 = ssub.s32 %s48, %s55
      %p141 = scmp.eq.s32.totalorder %s140, 0
      %s143 = sadd.s32 %s142, 1
      %s144 = scalar_select %p141, %s142, %s143
      %p147 = pneg %p141
      %p148 = scmp.eq.s32.totalorder %s48, 1
      %p149 = por %p147, %p148
      %p150 = scmp.ne.s32.totalorder %s142, %s145
      %p151 = scmp.eq.s32.totalorder %s48, 0
      %p152 = por %p150, %p151
      %p153 = scmp.ne.s32.totalorder %s142, %s145
      %p154 = scmp.eq.s32.totalorder %s53, 1
      %p155 = por %p153, %p154
      %p156 = scmp.ne.s32.totalorder %s145, %s146
      %p157 = scmp.eq.s32.totalorder %s53, 0
      %p158 = por %p156, %p157
      %p159 = scmp.ne.s32.totalorder %s145, %s146
      %p160 = scmp.eq.s32.totalorder %s54, 1
      %p161 = por %p159, %p160
      %p163 = scmp.ne.s32.totalorder %s146, %s162
      %p164 = scmp.eq.s32.totalorder %s54, 0
      %p165 = por %p163, %p164
      %s166 = ssub.s32 %s48, %s55
      %p167 = scmp.eq.s32.totalorder %s166, 0
      %s169 = sadd.s32 %s168, 1
      %s170 = scalar_select %p167, %s168, %s169
      %p173 = pneg %p167
      %p174 = scmp.eq.s32.totalorder %s48, 1
      %p175 = por %p173, %p174
      %p176 = scmp.ne.s32.totalorder %s168, %s171
      %p177 = scmp.eq.s32.totalorder %s48, 0
      %p178 = por %p176, %p177
      %p179 = scmp.ne.s32.totalorder %s168, %s171
      %p180 = scmp.eq.s32.totalorder %s53, 1
      %p181 = por %p179, %p180
      %p182 = scmp.ne.s32.totalorder %s171, %s172
      %p183 = scmp.eq.s32.totalorder %s53, 0
      %p184 = por %p182, %p183
      %p185 = scmp.ne.s32.totalorder %s171, %s172
      %p186 = scmp.eq.s32.totalorder %s54, 1
      %p187 = por %p185, %p186
      %p189 = scmp.ne.s32.totalorder %s172, %s188
      %p190 = scmp.eq.s32.totalorder %s54, 0
      %p191 = por %p189, %p190
      %s192 = ssub.s32 %s48, %s55
      %p193 = scmp.eq.s32.totalorder %s192, 0
      %s195 = sadd.s32 %s194, 1
      %s196 = scalar_select %p193, %s194, %s195
      %p199 = pneg %p193
      %p200 = scmp.eq.s32.totalorder %s48, 1
      %p201 = por %p199, %p200
      %p202 = scmp.ne.s32.totalorder %s194, %s197
      %p203 = scmp.eq.s32.totalorder %s48, 0
      %p204 = por %p202, %p203
      %p205 = scmp.ne.s32.totalorder %s194, %s197
      %p206 = scmp.eq.s32.totalorder %s53, 1
      %p207 = por %p205, %p206
      %p208 = scmp.ne.s32.totalorder %s197, %s198
      %p209 = scmp.eq.s32.totalorder %s53, 0
      %p210 = por %p208, %p209
      %p211 = scmp.ne.s32.totalorder %s197, %s198
      %p212 = scmp.eq.s32.totalorder %s54, 1
      %p213 = por %p211, %p212
      %p215 = scmp.ne.s32.totalorder %s198, %s214
      %p216 = scmp.eq.s32.totalorder %s54, 0
      %p217 = por %p215, %p216
      %s218 = ssub.s32 %s48, %s55
      %p219 = scmp.eq.s32.totalorder %s218, 0
      %s221 = sadd.s32 %s220, 1
      %s222 = scalar_select %p219, %s220, %s221
      %p225 = pneg %p219
      %p226 = scmp.eq.s32.totalorder %s48, 1
      %p227 = por %p225, %p226
      %p228 = scmp.ne.s32.totalorder %s220, %s223
      %p229 = scmp.eq.s32.totalorder %s48, 0
      %p230 = por %p228, %p229
      %p231 = scmp.ne.s32.totalorder %s220, %s223
      %p232 = scmp.eq.s32.totalorder %s53, 1
      %p233 = por %p231, %p232
      %p234 = scmp.ne.s32.totalorder %s223, %s224
      %p235 = scmp.eq.s32.totalorder %s53, 0
      %p236 = por %p234, %p235
      %p237 = scmp.ne.s32.totalorder %s223, %s224
      %p238 = scmp.eq.s32.totalorder %s54, 1
      %p239 = por %p237, %p238
      %p241 = scmp.ne.s32.totalorder %s224, %s240
      %p242 = scmp.eq.s32.totalorder %s54, 0
      %p243 = por %p241, %p242
      %s244 = ssub.s32 %s48, %s55
      %p245 = scmp.eq.s32.totalorder %s244, 0
      %s247 = sadd.s32 %s246, 1
      %s248 = scalar_select %p245, %s246, %s247
      %p251 = pneg %p245
      %p252 = scmp.eq.s32.totalorder %s48, 1
      %p253 = por %p251, %p252
      %p254 = scmp.ne.s32.totalorder %s246, %s249
      %p255 = scmp.eq.s32.totalorder %s48, 0
      %p256 = por %p254, %p255
      %p257 = scmp.ne.s32.totalorder %s246, %s249
      %p258 = scmp.eq.s32.totalorder %s53, 1
      %p259 = por %p257, %p258
      %p260 = scmp.ne.s32.totalorder %s249, %s250
      %p261 = scmp.eq.s32.totalorder %s53, 0
      %p262 = por %p260, %p261
      %p263 = scmp.ne.s32.totalorder %s249, %s250
      %p264 = scmp.eq.s32.totalorder %s54, 1
      %p265 = por %p263, %p264
      %p267 = scmp.ne.s32.totalorder %s250, %s266
      %p268 = scmp.eq.s32.totalorder %s54, 0
      %p269 = por %p267, %p268
      %s270 = ssub.s32 %s48, %s55
      %p271 = scmp.eq.s32.totalorder %s270, 0
      %s273 = sadd.s32 %s272, 1
      %s274 = scalar_select %p271, %s272, %s273
      %p277 = pneg %p271
      %p278 = scmp.eq.s32.totalorder %s48, 1
      %p279 = por %p277, %p278
      %p280 = scmp.ne.s32.totalorder %s272, %s275
      %p281 = scmp.eq.s32.totalorder %s48, 0
      %p282 = por %p280, %p281
      %p283 = scmp.ne.s32.totalorder %s272, %s275
      %p284 = scmp.eq.s32.totalorder %s53, 1
      %p285 = por %p283, %p284
      %p286 = scmp.ne.s32.totalorder %s275, %s276
      %p287 = scmp.eq.s32.totalorder %s53, 0
      %p288 = por %p286, %p287
      %p289 = scmp.ne.s32.totalorder %s275, %s276
      %p290 = scmp.eq.s32.totalorder %s54, 1
      %p291 = por %p289, %p290
      %p293 = scmp.ne.s32.totalorder %s276, %s292
      %p294 = scmp.eq.s32.totalorder %s54, 0
      %p295 = por %p293, %p294
      %s296 = ssub.s32 %s48, %s55
      %p297 = scmp.eq.s32.totalorder %s296, 0
      %s299 = sadd.s32 %s298, 1
      %s300 = scalar_select %p297, %s298, %s299
      %p303 = pneg %p297
      %p304 = scmp.eq.s32.totalorder %s48, 1
      %p305 = por %p303, %p304
      %p306 = scmp.ne.s32.totalorder %s298, %s301
      %p307 = scmp.eq.s32.totalorder %s48, 0
      %p308 = por %p306, %p307
      %p309 = scmp.ne.s32.totalorder %s298, %s301
      %p310 = scmp.eq.s32.totalorder %s53, 1
      %p311 = por %p309, %p310
      %p312 = scmp.ne.s32.totalorder %s301, %s302
      %p313 = scmp.eq.s32.totalorder %s53, 0
      %p314 = por %p312, %p313
      %p315 = scmp.ne.s32.totalorder %s301, %s302
      %p316 = scmp.eq.s32.totalorder %s54, 1
      %p317 = por %p315, %p316
      %p319 = scmp.ne.s32.totalorder %s302, %s318
      %p320 = scmp.eq.s32.totalorder %s54, 0
      %p321 = por %p319, %p320
      %s322 = ssub.s32 %s48, %s55
      %p323 = scmp.eq.s32.totalorder %s322, 0
      %s325 = sadd.s32 %s324, 1
      %s326 = scalar_select %p323, %s324, %s325
      %p329 = pneg %p323
      %p330 = scmp.eq.s32.totalorder %s48, 1
      %p331 = por %p329, %p330
      %p332 = scmp.ne.s32.totalorder %s324, %s327
      %p333 = scmp.eq.s32.totalorder %s48, 0
      %p334 = por %p332, %p333
      %p335 = scmp.ne.s32.totalorder %s324, %s327
      %p336 = scmp.eq.s32.totalorder %s53, 1
      %p337 = por %p335, %p336
      %p338 = scmp.ne.s32.totalorder %s327, %s328
      %p339 = scmp.eq.s32.totalorder %s53, 0
      %p340 = por %p338, %p339
      %p341 = scmp.ne.s32.totalorder %s327, %s328
      %p342 = scmp.eq.s32.totalorder %s54, 1
      %p343 = por %p341, %p342
      %p345 = scmp.ne.s32.totalorder %s328, %s344
      %p346 = scmp.eq.s32.totalorder %s54, 0
      %p347 = por %p345, %p346
      %s348 = ssub.s32 %s48, %s55
      %p349 = scmp.eq.s32.totalorder %s348, 0
      %s351 = sadd.s32 %s350, 1
      %s352 = scalar_select %p349, %s350, %s351
      %p355 = pneg %p349
      %p356 = scmp.eq.s32.totalorder %s48, 1
      %p357 = por %p355, %p356
      %p358 = scmp.ne.s32.totalorder %s350, %s353
      %p359 = scmp.eq.s32.totalorder %s48, 0
      %p360 = por %p358, %p359
      %p361 = scmp.ne.s32.totalorder %s350, %s353
      %p362 = scmp.eq.s32.totalorder %s53, 1
      %p363 = por %p361, %p362
      %p364 = scmp.ne.s32.totalorder %s353, %s354
      %p365 = scmp.eq.s32.totalorder %s53, 0
      %p366 = por %p364, %p365
      %p367 = scmp.ne.s32.totalorder %s353, %s354
      %p368 = scmp.eq.s32.totalorder %s54, 1
      %p369 = por %p367, %p368
      %p371 = scmp.ne.s32.totalorder %s354, %s370
      %p372 = scmp.eq.s32.totalorder %s54, 0
      %p373 = por %p371, %p372
      %s374 = ssub.s32 %s48, %s55
      %p375 = scmp.eq.s32.totalorder %s374, 0
      %s377 = sadd.s32 %s376, 1
      %s378 = scalar_select %p375, %s376, %s377
      %p381 = pneg %p375
      %p382 = scmp.eq.s32.totalorder %s48, 1
      %p383 = por %p381, %p382
      %p384 = scmp.ne.s32.totalorder %s376, %s379
      %p385 = scmp.eq.s32.totalorder %s48, 0
      %p386 = por %p384, %p385
      %p387 = scmp.ne.s32.totalorder %s376, %s379
      %p388 = scmp.eq.s32.totalorder %s53, 1
      %p389 = por %p387, %p388
      %p390 = scmp.ne.s32.totalorder %s379, %s380
      %p391 = scmp.eq.s32.totalorder %s53, 0
      %p392 = por %p390, %p391
      %p393 = scmp.ne.s32.totalorder %s379, %s380
      %p394 = scmp.eq.s32.totalorder %s54, 1
      %p395 = por %p393, %p394
      %p397 = scmp.ne.s32.totalorder %s380, %s396
      %p398 = scmp.eq.s32.totalorder %s54, 0
      %p399 = por %p397, %p398
      %s400 = ssub.s32 %s48, %s55
      %p401 = scmp.eq.s32.totalorder %s400, 0
      %s403 = sadd.s32 %s402, 1
      %s404 = scalar_select %p401, %s402, %s403
      %p407 = pneg %p401
      %p408 = scmp.eq.s32.totalorder %s48, 1
      %p409 = por %p407, %p408
      %p410 = scmp.ne.s32.totalorder %s402, %s405
      %p411 = scmp.eq.s32.totalorder %s48, 0
      %p412 = por %p410, %p411
      %p413 = scmp.ne.s32.totalorder %s402, %s405
      %p414 = scmp.eq.s32.totalorder %s53, 1
      %p415 = por %p413, %p414
      %p416 = scmp.ne.s32.totalorder %s405, %s406
      %p417 = scmp.eq.s32.totalorder %s53, 0
      %p418 = por %p416, %p417
      %p419 = scmp.ne.s32.totalorder %s405, %s406
      %p420 = scmp.eq.s32.totalorder %s54, 1
      %p421 = por %p419, %p420
      %p423 = scmp.ne.s32.totalorder %s406, %s422
      %p424 = scmp.eq.s32.totalorder %s54, 0
      %p425 = por %p423, %p424
      %s426 = ssub.s32 %s48, %s55
      %p427 = scmp.eq.s32.totalorder %s426, 0
      %s429 = sadd.s32 %s428, 1
      %s430 = scalar_select %p427, %s428, %s429
      %p433 = pneg %p427
      %p434 = scmp.eq.s32.totalorder %s48, 1
      %p435 = por %p433, %p434
      %p436 = scmp.ne.s32.totalorder %s428, %s431
      %p437 = scmp.eq.s32.totalorder %s48, 0
      %p438 = por %p436, %p437
      %p439 = scmp.ne.s32.totalorder %s428, %s431
      %p440 = scmp.eq.s32.totalorder %s53, 1
      %p441 = por %p439, %p440
      %p442 = scmp.ne.s32.totalorder %s431, %s432
      %p443 = scmp.eq.s32.totalorder %s53, 0
      %p444 = por %p442, %p443
      %p445 = scmp.ne.s32.totalorder %s431, %s432
      %p446 = scmp.eq.s32.totalorder %s54, 1
      %p447 = por %p445, %p446
      %p449 = scmp.ne.s32.totalorder %s432, %s448
      %p450 = scmp.eq.s32.totalorder %s54, 0
      %p451 = por %p449, %p450
      %s453 = sadd.s32 %s452, 1
      %p456 = scmp.eq.s32.totalorder %s48, 1
      %p457 = scmp.ne.s32.totalorder %s452, %s454
      %p458 = scmp.eq.s32.totalorder %s48, 0
      %p459 = por %p457, %p458
      %p460 = scmp.ne.s32.totalorder %s452, %s454
      %p461 = scmp.eq.s32.totalorder %s53, 1
      %p462 = por %p460, %p461
      %p463 = scmp.ne.s32.totalorder %s454, %s455
      %p464 = scmp.eq.s32.totalorder %s53, 0
      %p465 = por %p463, %p464
      %p466 = scmp.ne.s32.totalorder %s454, %s455
      %p467 = scmp.eq.s32.totalorder %s54, 1
      %p468 = por %p466, %p467
      %p470 = scmp.ne.s32.totalorder %s455, %s469
      %p471 = scmp.eq.s32.totalorder %s54, 0
      %p472 = por %p470, %p471
      %s474 = sadd.s32 %s473, 1
      %p477 = scmp.eq.s32.totalorder %s48, 1
      %p478 = scmp.ne.s32.totalorder %s473, %s475
      %p479 = scmp.eq.s32.totalorder %s48, 0
      %p480 = por %p478, %p479
      %p481 = scmp.ne.s32.totalorder %s473, %s475
      %p482 = scmp.eq.s32.totalorder %s53, 1
      %p483 = por %p481, %p482
      %p484 = scmp.ne.s32.totalorder %s475, %s476
      %p485 = scmp.eq.s32.totalorder %s53, 0
      %p486 = por %p484, %p485
      %p487 = scmp.ne.s32.totalorder %s475, %s476
      %p488 = scmp.eq.s32.totalorder %s54, 1
      %p489 = por %p487, %p488
      %p491 = scmp.ne.s32.totalorder %s476, %s490
      %p492 = scmp.eq.s32.totalorder %s54, 0
      %p493 = por %p491, %p492
      %s495 = sadd.s32 %s494, 1
      %p498 = scmp.eq.s32.totalorder %s48, 1
      %p499 = scmp.ne.s32.totalorder %s494, %s496
      %p500 = scmp.eq.s32.totalorder %s48, 0
      %p501 = por %p499, %p500
      %p502 = scmp.ne.s32.totalorder %s494, %s496
      %p503 = scmp.eq.s32.totalorder %s53, 1
      %p504 = por %p502, %p503
      %p505 = scmp.ne.s32.totalorder %s496, %s497
      %p506 = scmp.eq.s32.totalorder %s53, 0
      %p507 = por %p505, %p506
      %p508 = scmp.ne.s32.totalorder %s496, %s497
      %p509 = scmp.eq.s32.totalorder %s54, 1
      %p510 = por %p508, %p509
      %p512 = scmp.ne.s32.totalorder %s497, %s511
      %p513 = scmp.eq.s32.totalorder %s54, 0
      %p514 = por %p512, %p513
      %s516 = sadd.s32 %s515, 1
      %p519 = scmp.eq.s32.totalorder %s48, 1
      %p520 = scmp.ne.s32.totalorder %s515, %s517
      %p521 = scmp.eq.s32.totalorder %s48, 0
      %p522 = por %p520, %p521
      %p523 = scmp.ne.s32.totalorder %s515, %s517
      %p524 = scmp.eq.s32.totalorder %s53, 1
      %p525 = por %p523, %p524
      %p526 = scmp.ne.s32.totalorder %s517, %s518
      %p527 = scmp.eq.s32.totalorder %s53, 0
      %p528 = por %p526, %p527
      %p529 = scmp.ne.s32.totalorder %s517, %s518
      %p530 = scmp.eq.s32.totalorder %s54, 1
      %p531 = por %p529, %p530
      %p533 = scmp.ne.s32.totalorder %s518, %s532
      %p534 = scmp.eq.s32.totalorder %s54, 0
      %p535 = por %p533, %p534
      %s537 = sadd.s32 %s536, 1
      %p540 = scmp.eq.s32.totalorder %s48, 1
      %p541 = scmp.ne.s32.totalorder %s536, %s538
      %p542 = scmp.eq.s32.totalorder %s48, 0
      %p543 = por %p541, %p542
      %p544 = scmp.ne.s32.totalorder %s536, %s538
      %p545 = scmp.eq.s32.totalorder %s53, 1
      %p546 = por %p544, %p545
      %p547 = scmp.ne.s32.totalorder %s538, %s539
      %p548 = scmp.eq.s32.totalorder %s53, 0
      %p549 = por %p547, %p548
      %p550 = scmp.ne.s32.totalorder %s538, %s539
      %p551 = scmp.eq.s32.totalorder %s54, 1
      %p552 = por %p550, %p551
      %p554 = scmp.ne.s32.totalorder %s539, %s553
      %p555 = scmp.eq.s32.totalorder %s54, 0
      %p556 = por %p554, %p555
      %p557 = scmp.le.s32.totalorder 1, %s48
      %p558 = scmp.lt.s32.totalorder %s48, 3
      %p559 = pnand %p557, %p558
      %p560 = pneg %p559
      // Predicated region
      $region9: #{tpu_custom_call.1} parent=5 // pred_check
        _
      $region10: #{tpu_custom_call.1} parent=5 // pred_check_branch
        %562 = sbr.rel (%p559) target = $region12
      $region11: #{tpu_custom_call.1} parent=5 // pred_region
        %s563 = ssub.s32 %s48, 1
        // Predicated region
        $region13: #{tpu_custom_call.1} parent=11 // pred_check
          %p564 = pneg %p69
        $region14: #{tpu_custom_call.1} parent=11 // pred_check_branch
          %566 = sbr.rel (%p564) target = $region16
        $region15: #{tpu_custom_call.1} parent=11 // pred_region
          %s568 = ssub.s32 512, 512
          %569 = vsyncadd [#allocation5], %s568
          %s570 = sshll.u32 [#allocation4], 4
          %s571 = int_to_ptr.vmem [resolvable:$true] %s570
          %576 = dma.hbm_to_vmem [thread:$0]  %s0, 512, %s571, [#allocation5], 128, 128, 8
        $region16: #{tpu_custom_call.1} parent=11 // pred_fallthru
          _
        // Predicated region
        $region17: #{tpu_custom_call.1} parent=11 // pred_check
          %p577 = pneg %p90
        $region18: #{tpu_custom_call.1} parent=11 // pred_check_branch
          %579 = sbr.rel (%p577) target = $region20
        $region19: #{tpu_custom_call.1} parent=11 // pred_region
          _
        $region20: #{tpu_custom_call.1} parent=11 // pred_fallthru
          _
        // Predicated region
        $region21: #{tpu_custom_call.1} parent=11 // pred_check
          %p580 = pneg %p111
        $region22: #{tpu_custom_call.1} parent=11 // pred_check_branch
          %582 = sbr.rel (%p580) target = $region24
        $region23: #{tpu_custom_call.1} parent=11 // pred_region
          %s584 = ssub.s32 16, 16
          %585 = vsyncadd [#allocation8], %s584
          %s587 = sshll.u32 [#allocation7], 4
          %s588 = int_to_ptr.vmem [resolvable:$true] %s587
          %590 = dma.hbm_to_vmem [thread:$0]  %s2, 16, %s588, [#allocation8]
        $region24: #{tpu_custom_call.1} parent=11 // pred_fallthru
          _
        // Predicated region
        $region25: #{tpu_custom_call.1} parent=11 // pred_check
          %p591 = pneg %p132
        $region26: #{tpu_custom_call.1} parent=11 // pred_check_branch
          %593 = sbr.rel (%p591) target = $region28
        $region27: #{tpu_custom_call.1} parent=11 // pred_region
          %s595 = ssub.s32 16, 16
          %596 = vsyncadd [#allocation8], %s595
          %s598 = sshll.u32 [#allocation9], 4
          %s599 = int_to_ptr.vmem [resolvable:$true] %s598
          %601 = dma.hbm_to_vmem [thread:$0]  %s3, 16, %s599, [#allocation8]
        $region28: #{tpu_custom_call.1} parent=11 // pred_fallthru
          _
        // Predicated region
        $region29: #{tpu_custom_call.1} parent=11 // pred_check
          %p602 = pneg %p465
        $region30: #{tpu_custom_call.1} parent=11 // pred_check_branch
          %604 = sbr.rel (%p602) target = $region32
        $region31: #{tpu_custom_call.1} parent=11 // pred_region
          %s606 = ssub.s32 1024, 1024
          %607 = vsyncadd [#allocation26], %s606
          %s608 = sshll.u32 [#allocation27], 4
          %s609 = int_to_ptr.vmem [resolvable:$true] %s608
          %614 = dma.hbm_to_vmem [thread:$0]  %s16, 1024, %s609, [#allocation26], 64, 64, 4
        $region32: #{tpu_custom_call.1} parent=11 // pred_fallthru
          _
        // Predicated region
        $region33: #{tpu_custom_call.1} parent=11 // pred_check
          %p615 = pneg %p486
        $region34: #{tpu_custom_call.1} parent=11 // pred_check_branch
          %617 = sbr.rel (%p615) target = $region36
        $region35: #{tpu_custom_call.1} parent=11 // pred_region
          %s619 = ssub.s32 16, 16
          %620 = vsyncadd [#allocation29], %s619
          %s622 = sshll.u32 [#allocation28], 4
          %s623 = int_to_ptr.vmem [resolvable:$true] %s622
          %625 = dma.hbm_to_vmem [thread:$0]  %s17, 16, %s623, [#allocation29]
        $region36: #{tpu_custom_call.1} parent=11 // pred_fallthru
          _
        // Predicated region
        $region37: #{tpu_custom_call.1} parent=11 // pred_check
          %p626 = pneg %p507
        $region38: #{tpu_custom_call.1} parent=11 // pred_check_branch
          %628 = sbr.rel (%p626) target = $region40
        $region39: #{tpu_custom_call.1} parent=11 // pred_region
          _
        $region40: #{tpu_custom_call.1} parent=11 // pred_fallthru
          _
        // Predicated region
        $region41: #{tpu_custom_call.1} parent=11 // pred_check
          %p629 = pneg %p528
        $region42: #{tpu_custom_call.1} parent=11 // pred_check_branch
          %631 = sbr.rel (%p629) target = $region44
        $region43: #{tpu_custom_call.1} parent=11 // pred_region
          _
        $region44: #{tpu_custom_call.1} parent=11 // pred_fallthru
          _
      $region12: #{tpu_custom_call.1} parent=5 // pred_fallthru
        _
      %p632 = scmp.lt.s32.totalorder %s48, 2
      // Predicated region
      $region45: #{tpu_custom_call.1} parent=5 // pred_check
        %p633 = pneg %p632
      $region46: #{tpu_custom_call.1} parent=5 // pred_check_branch
        %635 = sbr.rel (%p633) target = $region48
      $region47: #{tpu_custom_call.1} parent=5 // pred_region
        // Predicated region
        $region49: #{tpu_custom_call.1} parent=47 // pred_check
          %p636 = pneg %p152
        $region50: #{tpu_custom_call.1} parent=47 // pred_check_branch
          %638 = sbr.rel (%p636) target = $region52
        $region51: #{tpu_custom_call.1} parent=47 // pred_region
          %s639 = sand.u32 %s48, 1
          %s640 = scalar_lea.sflag [#allocation11], %s639
          %s641 = sand.u32 %s142, 1
          %s642 = smul.addr %s641, 384
          %s643 = scalar_lea.vmem [#allocation10], %s642
          %s645 = ssub.s32 6144, 6144
          %646 = vsyncadd %s640, %s645
          %s647 = smul.addr %s48, 96
          %s648 = smul.addr %s647, 64
          %s649 = scalar_lea.hbm %s4, %s648
          %s650 = sshll.u32 %s643, 4
          %s651 = int_to_ptr.vmem [resolvable:$true] %s650
          %656 = dma.hbm_to_vmem [thread:$0]  %s649, 6144, %s651, %s640, 384, 384, 24
        $region52: #{tpu_custom_call.1} parent=47 // pred_fallthru
          _
        // Predicated region
        $region53: #{tpu_custom_call.1} parent=47 // pred_check
          %p657 = pneg %p178
        $region54: #{tpu_custom_call.1} parent=47 // pred_check_branch
          %659 = sbr.rel (%p657) target = $region56
        $region55: #{tpu_custom_call.1} parent=47 // pred_region
          %s660 = sand.u32 %s48, 1
          %s661 = scalar_lea.sflag [#allocation11], %s660
          %s662 = sand.u32 %s168, 1
          %s663 = smul.addr %s662, 6
          %s664 = scalar_lea.vmem [#allocation12], %s663
          %s666 = ssub.s32 96, 96
          %667 = vsyncadd %s661, %s666
          %s668 = smul.addr %s48, 6
          %s669 = smul.addr %s668, 16
          %s670 = scalar_lea.hbm %s5, %s669
          %s672 = sshll.u32 %s664, 4
          %s673 = int_to_ptr.vmem [resolvable:$true] %s672
          %675 = dma.hbm_to_vmem [thread:$0]  %s670, 96, %s673, %s661
        $region56: #{tpu_custom_call.1} parent=47 // pred_fallthru
          _
        // Predicated region
        $region57: #{tpu_custom_call.1} parent=47 // pred_check
          %p676 = pneg %p204
        $region58: #{tpu_custom_call.1} parent=47 // pred_check_branch
          %678 = sbr.rel (%p676) target = $region60
        $region59: #{tpu_custom_call.1} parent=47 // pred_region
          %s679 = sand.u32 %s48, 1
          %s680 = scalar_lea.sflag [#allocation14], %s679
          %s681 = sand.u32 %s194, 1
          %s682 = smul.addr %s681, 128
          %s683 = scalar_lea.vmem [#allocation13], %s682
          %s685 = ssub.s32 2048, 2048
          %686 = vsyncadd %s680, %s685
          %s687 = smul.addr %s48, 32
          %s688 = smul.addr %s687, 64
          %s689 = scalar_lea.hbm %s6, %s688
          %s690 = sshll.u32 %s683, 4
          %s691 = int_to_ptr.vmem [resolvable:$true] %s690
          %696 = dma.hbm_to_vmem [thread:$0]  %s689, 2048, %s691, %s680, 64, 64, 4
        $region60: #{tpu_custom_call.1} parent=47 // pred_fallthru
          _
        // Predicated region
        $region61: #{tpu_custom_call.1} parent=47 // pred_check
          %p697 = pneg %p230
        $region62: #{tpu_custom_call.1} parent=47 // pred_check_branch
          %699 = sbr.rel (%p697) target = $region64
        $region63: #{tpu_custom_call.1} parent=47 // pred_region
          %p700 = scmp.lt.s32.totalorder %s48, 1
          %s701 = scalar_select %p700, %s48, 1
          %s702 = scalar_lea.vmem %s7, %s701
        $region64: #{tpu_custom_call.1} parent=47 // pred_fallthru
          _
        // Predicated region
        $region65: #{tpu_custom_call.1} parent=47 // pred_check
          %p703 = pneg %p256
        $region66: #{tpu_custom_call.1} parent=47 // pred_check_branch
          %705 = sbr.rel (%p703) target = $region68
        $region67: #{tpu_custom_call.1} parent=47 // pred_region
          %s706 = sand.u32 %s48, 1
          %s707 = scalar_lea.sflag [#allocation14], %s706
          %s708 = sand.u32 %s246, 1
          %s709 = scalar_lea.vmem [#allocation15], %s708
          %s711 = ssub.s32 16, 16
          %712 = vsyncadd %s707, %s711
          %s713 = smul.addr %s48, 16
          %s714 = scalar_lea.hbm %s8, %s713
          %s716 = sshll.u32 %s709, 4
          %s717 = int_to_ptr.vmem [resolvable:$true] %s716
          %719 = dma.hbm_to_vmem [thread:$0]  %s714, 16, %s717, %s707
        $region68: #{tpu_custom_call.1} parent=47 // pred_fallthru
          _
        // Predicated region
        $region69: #{tpu_custom_call.1} parent=47 // pred_check
          %p720 = pneg %p282
        $region70: #{tpu_custom_call.1} parent=47 // pred_check_branch
          %722 = sbr.rel (%p720) target = $region72
        $region71: #{tpu_custom_call.1} parent=47 // pred_region
          %s723 = sand.u32 %s48, 1
          %s724 = scalar_lea.sflag [#allocation17], %s723
          %s725 = sand.u32 %s272, 1
          %s726 = scalar_lea.vmem [#allocation16], %s725
          %s728 = ssub.s32 16, 16
          %729 = vsyncadd %s724, %s728
          %s730 = smul.addr %s48, 16
          %s731 = scalar_lea.hbm %s9, %s730
          %s733 = sshll.u32 %s726, 4
          %s734 = int_to_ptr.vmem [resolvable:$true] %s733
          %736 = dma.hbm_to_vmem [thread:$0]  %s731, 16, %s734, %s724
        $region72: #{tpu_custom_call.1} parent=47 // pred_fallthru
          _
        // Predicated region
        $region73: #{tpu_custom_call.1} parent=47 // pred_check
          %p737 = pneg %p308
        $region74: #{tpu_custom_call.1} parent=47 // pred_check_branch
          %739 = sbr.rel (%p737) target = $region76
        $region75: #{tpu_custom_call.1} parent=47 // pred_region
          %s740 = sand.u32 %s48, 1
          %s741 = scalar_lea.sflag [#allocation17], %s740
          %s742 = sand.u32 %s298, 1
          %s743 = smul.addr %s742, 256
          %s744 = scalar_lea.vmem [#allocation18], %s743
          %s746 = ssub.s32 4096, 4096
          %747 = vsyncadd %s741, %s746
          %s748 = smul.addr %s48, 64
          %s749 = smul.addr %s748, 64
          %s750 = scalar_lea.hbm %s10, %s749
          %s751 = sshll.u32 %s744, 4
          %s752 = int_to_ptr.vmem [resolvable:$true] %s751
          %757 = dma.hbm_to_vmem [thread:$0]  %s750, 4096, %s752, %s741, 256, 256, 16
        $region76: #{tpu_custom_call.1} parent=47 // pred_fallthru
          _
        // Predicated region
        $region77: #{tpu_custom_call.1} parent=47 // pred_check
          %p758 = pneg %p334
        $region78: #{tpu_custom_call.1} parent=47 // pred_check_branch
          %760 = sbr.rel (%p758) target = $region80
        $region79: #{tpu_custom_call.1} parent=47 // pred_region
          %s761 = sand.u32 %s48, 1
          %s762 = scalar_lea.sflag [#allocation20], %s761
          %s763 = sand.u32 %s324, 1
          %s764 = smul.addr %s763, 4
          %s765 = scalar_lea.vmem [#allocation19], %s764
          %s767 = ssub.s32 64, 64
          %768 = vsyncadd %s762, %s767
          %s769 = smul.addr %s48, 4
          %s770 = smul.addr %s769, 16
          %s771 = scalar_lea.hbm %s11, %s770
          %s773 = sshll.u32 %s765, 4
          %s774 = int_to_ptr.vmem [resolvable:$true] %s773
          %776 = dma.hbm_to_vmem [thread:$0]  %s771, 64, %s774, %s762
        $region80: #{tpu_custom_call.1} parent=47 // pred_fallthru
          _
        // Predicated region
        $region81: #{tpu_custom_call.1} parent=47 // pred_check
          %p777 = pneg %p360
        $region82: #{tpu_custom_call.1} parent=47 // pred_check_branch
          %779 = sbr.rel (%p777) target = $region84
        $region83: #{tpu_custom_call.1} parent=47 // pred_region
          %s780 = sand.u32 %s48, 1
          %s781 = scalar_lea.sflag [#allocation20], %s780
          %s782 = sand.u32 %s350, 1
          %s783 = smul.addr %s782, 256
          %s784 = scalar_lea.vmem [#allocation21], %s783
          %s786 = ssub.s32 4096, 4096
          %787 = vsyncadd %s781, %s786
          %s788 = smul.addr %s48, 64
          %s789 = smul.addr %s788, 64
          %s790 = scalar_lea.hbm %s12, %s789
          %s791 = sshll.u32 %s784, 4
          %s792 = int_to_ptr.vmem [resolvable:$true] %s791
          %797 = dma.hbm_to_vmem [thread:$0]  %s790, 4096, %s792, %s781, 64, 64, 4
        $region84: #{tpu_custom_call.1} parent=47 // pred_fallthru
          _
        // Predicated region
        $region85: #{tpu_custom_call.1} parent=47 // pred_check
          %p798 = pneg %p386
        $region86: #{tpu_custom_call.1} parent=47 // pred_check_branch
          %800 = sbr.rel (%p798) target = $region88
        $region87: #{tpu_custom_call.1} parent=47 // pred_region
          %s801 = sand.u32 %s48, 1
          %s802 = scalar_lea.sflag [#allocation23], %s801
          %s803 = sand.u32 %s376, 1
          %s804 = scalar_lea.vmem [#allocation22], %s803
          %s806 = ssub.s32 16, 16
          %807 = vsyncadd %s802, %s806
          %s808 = smul.addr %s48, 16
          %s809 = scalar_lea.hbm %s13, %s808
          %s811 = sshll.u32 %s804, 4
          %s812 = int_to_ptr.vmem [resolvable:$true] %s811
          %814 = dma.hbm_to_vmem [thread:$0]  %s809, 16, %s812, %s802
        $region88: #{tpu_custom_call.1} parent=47 // pred_fallthru
          _
        // Predicated region
        $region89: #{tpu_custom_call.1} parent=47 // pred_check
          %p815 = pneg %p412
        $region90: #{tpu_custom_call.1} parent=47 // pred_check_branch
          %817 = sbr.rel (%p815) target = $region92
        $region91: #{tpu_custom_call.1} parent=47 // pred_region
          %s818 = sand.u32 %s48, 1
          %s819 = scalar_lea.sflag [#allocation23], %s818
          %s820 = sand.u32 %s402, 1
          %s821 = scalar_lea.vmem [#allocation24], %s820
          %s823 = ssub.s32 16, 16
          %824 = vsyncadd %s819, %s823
          %s825 = smul.addr %s48, 16
          %s826 = scalar_lea.hbm %s14, %s825
          %s828 = sshll.u32 %s821, 4
          %s829 = int_to_ptr.vmem [resolvable:$true] %s828
          %831 = dma.hbm_to_vmem [thread:$0]  %s826, 16, %s829, %s819
        $region92: #{tpu_custom_call.1} parent=47 // pred_fallthru
          _
        // Predicated region
        $region93: #{tpu_custom_call.1} parent=47 // pred_check
          %p832 = pneg %p438
        $region94: #{tpu_custom_call.1} parent=47 // pred_check_branch
          %834 = sbr.rel (%p832) target = $region96
        $region95: #{tpu_custom_call.1} parent=47 // pred_region
          %s835 = sand.u32 %s48, 1
          %s836 = scalar_lea.sflag [#allocation26], %s835
          %s837 = sand.u32 %s428, 1
          %s838 = scalar_lea.vmem [#allocation25], %s837
          %s840 = ssub.s32 16, 16
          %841 = vsyncadd %s836, %s840
          %s842 = smul.addr %s48, 16
          %s843 = scalar_lea.hbm %s15, %s842
          %s845 = sshll.u32 %s838, 4
          %s846 = int_to_ptr.vmem [resolvable:$true] %s845
          %848 = dma.hbm_to_vmem [thread:$0]  %s843, 16, %s846, %s836
        $region96: #{tpu_custom_call.1} parent=47 // pred_fallthru
          _
      $region48: #{tpu_custom_call.1} parent=5 // pred_fallthru
        _
      %p849 = scmp.le.s32.totalorder 1, %s48
      %p850 = scmp.lt.s32.totalorder %s48, 3
      %p851 = pnand %p849, %p850
      %p852 = pneg %p851
      // Predicated region
      $region97: #{tpu_custom_call.1} parent=5 // pred_check
        _
      $region98: #{tpu_custom_call.1} parent=5 // pred_check_branch
        %854 = sbr.rel (%p851) target = $region100
      $region99: #{tpu_custom_call.1} parent=5 // pred_region
        %s855 = ssub.s32 %s48, 1
        // Predicated region
        $region101: #{tpu_custom_call.1} parent=99 // pred_check
          %p856 = pneg %p69
        $region102: #{tpu_custom_call.1} parent=99 // pred_check_branch
          %858 = sbr.rel (%p856) target = $region104
        $region103: #{tpu_custom_call.1} parent=99 // pred_region
          %859 = dma.done [#allocation5], 512
        $region104: #{tpu_custom_call.1} parent=99 // pred_fallthru
          _
        // Predicated region
        $region105: #{tpu_custom_call.1} parent=99 // pred_check
          %p860 = pneg %p111
        $region106: #{tpu_custom_call.1} parent=99 // pred_check_branch
          %862 = sbr.rel (%p860) target = $region108
        $region107: #{tpu_custom_call.1} parent=99 // pred_region
          %863 = dma.done [#allocation8], 16
        $region108: #{tpu_custom_call.1} parent=99 // pred_fallthru
          _
        // Predicated region
        $region109: #{tpu_custom_call.1} parent=99 // pred_check
          %p864 = pneg %p132
        $region110: #{tpu_custom_call.1} parent=99 // pred_check_branch
          %866 = sbr.rel (%p864) target = $region112
        $region111: #{tpu_custom_call.1} parent=99 // pred_region
          %867 = dma.done [#allocation8], 16
        $region112: #{tpu_custom_call.1} parent=99 // pred_fallthru
          _
        %s868 = sand.u32 %s53, 1
        %s869 = scalar_lea.sflag [#allocation11], %s868
        %s870 = sand.u32 %s145, 1
        %s871 = smul.addr %s870, 384
        %s872 = scalar_lea.vmem [#allocation10], %s871
        // Predicated region
        $region113: #{tpu_custom_call.1} parent=99 // pred_check
          %p873 = pneg %p158
        $region114: #{tpu_custom_call.1} parent=99 // pred_check_branch
          %875 = sbr.rel (%p873) target = $region116
        $region115: #{tpu_custom_call.1} parent=99 // pred_region
          %876 = dma.done %s869, 6144
        $region116: #{tpu_custom_call.1} parent=99 // pred_fallthru
          _
        %s877 = sand.u32 %s53, 1
        %s878 = scalar_lea.sflag [#allocation11], %s877
        %s879 = sand.u32 %s171, 1
        %s880 = smul.addr %s879, 6
        %s881 = scalar_lea.vmem [#allocation12], %s880
        // Predicated region
        $region117: #{tpu_custom_call.1} parent=99 // pred_check
          %p882 = pneg %p184
        $region118: #{tpu_custom_call.1} parent=99 // pred_check_branch
          %884 = sbr.rel (%p882) target = $region120
        $region119: #{tpu_custom_call.1} parent=99 // pred_region
          %885 = dma.done %s878, 96
        $region120: #{tpu_custom_call.1} parent=99 // pred_fallthru
          _
        %s886 = sand.u32 %s53, 1
        %s887 = scalar_lea.sflag [#allocation14], %s886
        %s888 = sand.u32 %s197, 1
        %s889 = smul.addr %s888, 128
        %s890 = scalar_lea.vmem [#allocation13], %s889
        // Predicated region
        $region121: #{tpu_custom_call.1} parent=99 // pred_check
          %p891 = pneg %p210
        $region122: #{tpu_custom_call.1} parent=99 // pred_check_branch
          %893 = sbr.rel (%p891) target = $region124
        $region123: #{tpu_custom_call.1} parent=99 // pred_region
          %894 = dma.done %s887, 2048
        $region124: #{tpu_custom_call.1} parent=99 // pred_fallthru
          _
        %s895 = sand.u32 %s53, 1
        %s896 = scalar_lea.sflag [#allocation14], %s895
        %s897 = sand.u32 %s249, 1
        %s898 = scalar_lea.vmem [#allocation15], %s897
        // Predicated region
        $region125: #{tpu_custom_call.1} parent=99 // pred_check
          %p899 = pneg %p262
        $region126: #{tpu_custom_call.1} parent=99 // pred_check_branch
          %901 = sbr.rel (%p899) target = $region128
        $region127: #{tpu_custom_call.1} parent=99 // pred_region
          %902 = dma.done %s896, 16
        $region128: #{tpu_custom_call.1} parent=99 // pred_fallthru
          _
        %s903 = sand.u32 %s53, 1
        %s904 = scalar_lea.sflag [#allocation17], %s903
        %s905 = sand.u32 %s275, 1
        %s906 = scalar_lea.vmem [#allocation16], %s905
        // Predicated region
        $region129: #{tpu_custom_call.1} parent=99 // pred_check
          %p907 = pneg %p288
        $region130: #{tpu_custom_call.1} parent=99 // pred_check_branch
          %909 = sbr.rel (%p907) target = $region132
        $region131: #{tpu_custom_call.1} parent=99 // pred_region
          %910 = dma.done %s904, 16
        $region132: #{tpu_custom_call.1} parent=99 // pred_fallthru
          _
        %s911 = sand.u32 %s53, 1
        %s912 = scalar_lea.sflag [#allocation17], %s911
        %s913 = sand.u32 %s301, 1
        %s914 = smul.addr %s913, 256
        %s915 = scalar_lea.vmem [#allocation18], %s914
        // Predicated region
        $region133: #{tpu_custom_call.1} parent=99 // pred_check
          %p916 = pneg %p314
        $region134: #{tpu_custom_call.1} parent=99 // pred_check_branch
          %918 = sbr.rel (%p916) target = $region136
        $region135: #{tpu_custom_call.1} parent=99 // pred_region
          %919 = dma.done %s912, 4096
        $region136: #{tpu_custom_call.1} parent=99 // pred_fallthru
          _
        %s920 = sand.u32 %s53, 1
        %s921 = scalar_lea.sflag [#allocation20], %s920
        %s922 = sand.u32 %s327, 1
        %s923 = smul.addr %s922, 4
        %s924 = scalar_lea.vmem [#allocation19], %s923
        // Predicated region
        $region137: #{tpu_custom_call.1} parent=99 // pred_check
          %p925 = pneg %p340
        $region138: #{tpu_custom_call.1} parent=99 // pred_check_branch
          %927 = sbr.rel (%p925) target = $region140
        $region139: #{tpu_custom_call.1} parent=99 // pred_region
          %928 = dma.done %s921, 64
        $region140: #{tpu_custom_call.1} parent=99 // pred_fallthru
          _
        %s929 = sand.u32 %s53, 1
        %s930 = scalar_lea.sflag [#allocation20], %s929
        %s931 = sand.u32 %s353, 1
        %s932 = smul.addr %s931, 256
        %s933 = scalar_lea.vmem [#allocation21], %s932
        // Predicated region
        $region141: #{tpu_custom_call.1} parent=99 // pred_check
          %p934 = pneg %p366
        $region142: #{tpu_custom_call.1} parent=99 // pred_check_branch
          %936 = sbr.rel (%p934) target = $region144
        $region143: #{tpu_custom_call.1} parent=99 // pred_region
          %937 = dma.done %s930, 4096
        $region144: #{tpu_custom_call.1} parent=99 // pred_fallthru
          _
        %s938 = sand.u32 %s53, 1
        %s939 = scalar_lea.sflag [#allocation23], %s938
        %s940 = sand.u32 %s379, 1
        %s941 = scalar_lea.vmem [#allocation22], %s940
        // Predicated region
        $region145: #{tpu_custom_call.1} parent=99 // pred_check
          %p942 = pneg %p392
        $region146: #{tpu_custom_call.1} parent=99 // pred_check_branch
          %944 = sbr.rel (%p942) target = $region148
        $region147: #{tpu_custom_call.1} parent=99 // pred_region
          %945 = dma.done %s939, 16
        $region148: #{tpu_custom_call.1} parent=99 // pred_fallthru
          _
        %s946 = sand.u32 %s53, 1
        %s947 = scalar_lea.sflag [#allocation23], %s946
        %s948 = sand.u32 %s405, 1
        %s949 = scalar_lea.vmem [#allocation24], %s948
        // Predicated region
        $region149: #{tpu_custom_call.1} parent=99 // pred_check
          %p950 = pneg %p418
        $region150: #{tpu_custom_call.1} parent=99 // pred_check_branch
          %952 = sbr.rel (%p950) target = $region152
        $region151: #{tpu_custom_call.1} parent=99 // pred_region
          %953 = dma.done %s947, 16
        $region152: #{tpu_custom_call.1} parent=99 // pred_fallthru
          _
        %s954 = sand.u32 %s53, 1
        %s955 = scalar_lea.sflag [#allocation26], %s954
        %s956 = sand.u32 %s431, 1
        %s957 = scalar_lea.vmem [#allocation25], %s956
        // Predicated region
        $region153: #{tpu_custom_call.1} parent=99 // pred_check
          %p958 = pneg %p444
        $region154: #{tpu_custom_call.1} parent=99 // pred_check_branch
          %960 = sbr.rel (%p958) target = $region156
        $region155: #{tpu_custom_call.1} parent=99 // pred_region
          %961 = dma.done %s955, 16
        $region156: #{tpu_custom_call.1} parent=99 // pred_fallthru
          _
        // Predicated region
        $region157: #{tpu_custom_call.1} parent=99 // pred_check
          %p962 = pneg %p465
        $region158: #{tpu_custom_call.1} parent=99 // pred_check_branch
          %964 = sbr.rel (%p962) target = $region160
        $region159: #{tpu_custom_call.1} parent=99 // pred_region
          %965 = dma.done [#allocation26], 1024
        $region160: #{tpu_custom_call.1} parent=99 // pred_fallthru
          _
        // Predicated region
        $region161: #{tpu_custom_call.1} parent=99 // pred_check
          %p966 = pneg %p486
        $region162: #{tpu_custom_call.1} parent=99 // pred_check_branch
          %968 = sbr.rel (%p966) target = $region164
        $region163: #{tpu_custom_call.1} parent=99 // pred_region
          %969 = dma.done [#allocation29], 16
        $region164: #{tpu_custom_call.1} parent=99 // pred_fallthru
          _
        %p970 = pneg %p69
        %p971 = pneg %p66
        %p972 = pneg %p90
        %p973 = pneg %p87
        %p974 = pneg %p111
        %p975 = pneg %p108
        %p976 = pneg %p132
        %p977 = pneg %p129
        %s978 = sand.u32 %s53, 1
        %s979 = scalar_lea.sflag [#allocation11], %s978
        %s980 = sand.u32 %s145, 1
        %s981 = smul.addr %s980, 384
        %s982 = scalar_lea.vmem [#allocation10], %s981
        %p983 = pneg %p158
        %p984 = pneg %p155
        %s985 = sand.u32 %s53, 1
        %s986 = scalar_lea.sflag [#allocation11], %s985
        %s987 = sand.u32 %s171, 1
        %s988 = smul.addr %s987, 6
        %s989 = scalar_lea.vmem [#allocation12], %s988
        %p990 = pneg %p184
        %p991 = pneg %p181
        %s992 = sand.u32 %s53, 1
        %s993 = scalar_lea.sflag [#allocation14], %s992
        %s994 = sand.u32 %s197, 1
        %s995 = smul.addr %s994, 128
        %s996 = scalar_lea.vmem [#allocation13], %s995
        %p997 = pneg %p210
        %p998 = pneg %p207
        %p999 = scmp.lt.s32.totalorder %s53, 1
        %s1000 = scalar_select %p999, %s53, 1
        %s1001 = scalar_lea.vmem %s7, %s1000
        %p1002 = pneg %p236
        %p1003 = pneg %p233
        %s1004 = sand.u32 %s53, 1
        %s1005 = scalar_lea.sflag [#allocation14], %s1004
        %s1006 = sand.u32 %s249, 1
        %s1007 = scalar_lea.vmem [#allocation15], %s1006
        %p1008 = pneg %p262
        %p1009 = pneg %p259
        %s1010 = sand.u32 %s53, 1
        %s1011 = scalar_lea.sflag [#allocation17], %s1010
        %s1012 = sand.u32 %s275, 1
        %s1013 = scalar_lea.vmem [#allocation16], %s1012
        %p1014 = pneg %p288
        %p1015 = pneg %p285
        %s1016 = sand.u32 %s53, 1
        %s1017 = scalar_lea.sflag [#allocation17], %s1016
        %s1018 = sand.u32 %s301, 1
        %s1019 = smul.addr %s1018, 256
        %s1020 = scalar_lea.vmem [#allocation18], %s1019
        %p1021 = pneg %p314
        %p1022 = pneg %p311
        %s1023 = sand.u32 %s53, 1
        %s1024 = scalar_lea.sflag [#allocation20], %s1023
        %s1025 = sand.u32 %s327, 1
        %s1026 = smul.addr %s1025, 4
        %s1027 = scalar_lea.vmem [#allocation19], %s1026
        %p1028 = pneg %p340
        %p1029 = pneg %p337
        %s1030 = sand.u32 %s53, 1
        %s1031 = scalar_lea.sflag [#allocation20], %s1030
        %s1032 = sand.u32 %s353, 1
        %s1033 = smul.addr %s1032, 256
        %s1034 = scalar_lea.vmem [#allocation21], %s1033
        %p1035 = pneg %p366
        %p1036 = pneg %p363
        %s1037 = sand.u32 %s53, 1
        %s1038 = scalar_lea.sflag [#allocation23], %s1037
        %s1039 = sand.u32 %s379, 1
        %s1040 = scalar_lea.vmem [#allocation22], %s1039
        %p1041 = pneg %p392
        %p1042 = pneg %p389
        %s1043 = sand.u32 %s53, 1
        %s1044 = scalar_lea.sflag [#allocation23], %s1043
        %s1045 = sand.u32 %s405, 1
        %s1046 = scalar_lea.vmem [#allocation24], %s1045
        %p1047 = pneg %p418
        %p1048 = pneg %p415
        %s1049 = sand.u32 %s53, 1
        %s1050 = scalar_lea.sflag [#allocation26], %s1049
        %s1051 = sand.u32 %s431, 1
        %s1052 = scalar_lea.vmem [#allocation25], %s1051
        %p1053 = pneg %p444
        %p1054 = pneg %p441
        %p1055 = pneg %p465
        %p1056 = pneg %p462
        %p1057 = pneg %p486
        %p1058 = pneg %p483
        %p1059 = pneg %p507
        %p1060 = pneg %p504
        %p1061 = pneg %p528
        %p1062 = pneg %p525
        %p1063 = pneg %p549
        %p1064 = pneg %p546
        %p1065 = scmp.lt.s32.totalorder %s53, 1
        %s1066 = scalar_select %p1065, %s53, 1
        %s1067 = scalar_lea.vmem %s7, %s1066
        %p1069 = scmp.eq.s32.totalorder %s53, 0
        // Predicated region
        $region165: #{tpu_custom_call.1} parent=99 // pred_check
          %p1070 = pneg %p1069
        $region166: #{tpu_custom_call.1} parent=99 // pred_check_branch
          %1072 = sbr.rel (%p1070) target = $region168
        $region167: #{tpu_custom_call.1} parent=99 // pred_region
          %v1073 = vld [vmem:[#allocation4] sm:$0xff]
          %v1074 = vld [vmem:[#allocation4 + $0x8] sm:$0xff]
          %v1075 = vld [vmem:[#allocation4 + $0x10] sm:$0xff]
          %v1076 = vld [vmem:[#allocation4 + $0x18] sm:$0xff]
          %v1077 = vld [vmem:[#allocation7] sm:$0x1]
          %v1078 = vld [vmem:[#allocation9] sm:$0x1]
          %1079 = vadd.xlane.f32.xlu0 %v1073
          %v1080 = vpop.xlane.xlu0 %1079
          %1081 = vadd.xlane.f32.xlu0 %v1074
          %v1082 = vpop.xlane.xlu0 %1081
          %1083 = vadd.xlane.f32.xlu0 %v1075
          %v1084 = vpop.xlane.xlu0 %1083
          %1085 = vadd.xlane.f32.xlu0 %v1076
          %v1086 = vpop.xlane.xlu0 %1085
          %v1087 = vrcp.pop 128.0
          %v1088 = vmul.f32 %v1080, %v1087
          %v1089 = vmul.f32 %v1082, %v1087
          %v1090 = vmul.f32 %v1084, %v1087
          %v1091 = vmul.f32 %v1086, %v1087
          %v1092 = vsub.f32 %v1073, %v1088
          %v1093 = vsub.f32 %v1074, %v1089
          %v1094 = vsub.f32 %v1075, %v1090
          %v1095 = vsub.f32 %v1076, %v1091
          %v1096 = vmul.f32 %v1092, %v1092
          %v1097 = vmul.f32 %v1093, %v1093
          %v1098 = vmul.f32 %v1094, %v1094
          %v1099 = vmul.f32 %v1095, %v1095
          %1100 = vadd.xlane.f32.xlu0 %v1096
          %v1101 = vpop.xlane.xlu0 %1100
          %1102 = vadd.xlane.f32.xlu0 %v1097
          %v1103 = vpop.xlane.xlu0 %1102
          %1104 = vadd.xlane.f32.xlu0 %v1098
          %v1105 = vpop.xlane.xlu0 %1104
          %1106 = vadd.xlane.f32.xlu0 %v1099
          %v1107 = vpop.xlane.xlu0 %1106
          %v1108 = vmul.f32 %v1101, %v1087
          %v1109 = vmul.f32 %v1103, %v1087
          %v1110 = vmul.f32 %v1105, %v1087
          %v1111 = vmul.f32 %v1107, %v1087
          %v1112 = vadd.f32 %v1108, 1e-12
          %v1113 = vadd.f32 %v1109, 1e-12
          %v1114 = vadd.f32 %v1110, 1e-12
          %v1115 = vadd.f32 %v1111, 1e-12
          %v1116 = vrsqrt.pop %v1112
          %v1117 = vrsqrt.pop %v1113
          %v1118 = vrsqrt.pop %v1114
          %v1119 = vrsqrt.pop %v1115
          %v1120 = vmul.f32 %v1092, %v1116
          %v1121 = vmul.f32 %v1093, %v1117
          %v1122 = vmul.f32 %v1094, %v1118
          %v1123 = vmul.f32 %v1095, %v1119
          %v1125 = vlaneseq
          %v1126 = vshrl.u32 %v1125, 7
          %v1127 = vsub.s32 0, %v1126
          %v1128 = vrot.slane %v1077, %v1127
          %v1130 = vmul.f32 %v1120, %v1128
          %v1131 = vmul.f32 %v1121, %v1128
          %v1132 = vmul.f32 %v1122, %v1128
          %v1133 = vmul.f32 %v1123, %v1128
          %v1135 = vlaneseq
          %v1136 = vshrl.u32 %v1135, 7
          %v1137 = vsub.s32 0, %v1136
          %v1138 = vrot.slane %v1078, %v1137
          %v1140 = vadd.f32 %v1130, %v1138
          %v1141 = vadd.f32 %v1131, %v1138
          %v1142 = vadd.f32 %v1132, %v1138
          %v1143 = vadd.f32 %v1133, %v1138
          %1144 = vst [vmem:[#allocation2] sm:$0xff] %v1140
          %1145 = vst [vmem:[#allocation2 + $0x8] sm:$0xff] %v1141
          %1146 = vst [vmem:[#allocation2 + $0x10] sm:$0xff] %v1142
          %1147 = vst [vmem:[#allocation2 + $0x18] sm:$0xff] %v1143
        $region168: #{tpu_custom_call.1} parent=99 // pred_fallthru
          _
        %v1148 = vld [vmem:[#allocation2] sm:$0xff]
        %v1149 = vld [vmem:[#allocation2 + $0x8] sm:$0xff]
        %v1150 = vld [vmem:[#allocation2 + $0x10] sm:$0xff]
        %v1151 = vld [vmem:[#allocation2 + $0x18] sm:$0xff]
        %v1152 = vpack.c.bf16 %v1149, %v1148
        %v1153 = vpack.c.bf16 %v1151, %v1150
        %v1154 = vld [vmem:[%s872] sm:$0xff]
        %v1155 = vld [vmem:[%s872 + $0x8] sm:$0xff]
        %v1156 = vld [vmem:[%s872 + $0x10] sm:$0xff]
        %v1157 = vld [vmem:[%s872 + $0x18] sm:$0xff]
        %v1158 = vld [vmem:[%s872 + $0x20] sm:$0xff]
        %v1159 = vld [vmem:[%s872 + $0x28] sm:$0xff]
        %v1160 = vld [vmem:[%s872 + $0x30] sm:$0xff]
        %v1161 = vld [vmem:[%s872 + $0x38] sm:$0xff]
        %v1162 = vld [vmem:[%s872 + $0x40] sm:$0xff]
        %v1163 = vld [vmem:[%s872 + $0x48] sm:$0xff]
        %v1164 = vld [vmem:[%s872 + $0x50] sm:$0xff]
        %v1165 = vld [vmem:[%s872 + $0x58] sm:$0xff]
        %v1166 = vld [vmem:[%s872 + $0x60] sm:$0xff]
        %v1167 = vld [vmem:[%s872 + $0x68] sm:$0xff]
        %v1168 = vld [vmem:[%s872 + $0x70] sm:$0xff]
        %v1169 = vld [vmem:[%s872 + $0x78] sm:$0xff]
        %v1170 = vld [vmem:[%s872 + $0x80] sm:$0xff]
        %v1171 = vld [vmem:[%s872 + $0x88] sm:$0xff]
        %v1172 = vld [vmem:[%s872 + $0x90] sm:$0xff]
        %v1173 = vld [vmem:[%s872 + $0x98] sm:$0xff]
        %v1174 = vld [vmem:[%s872 + $0xa0] sm:$0xff]
        %v1175 = vld [vmem:[%s872 + $0xa8] sm:$0xff]
        %v1176 = vld [vmem:[%s872 + $0xb0] sm:$0xff]
        %v1177 = vld [vmem:[%s872 + $0xb8] sm:$0xff]
        %v1178 = vld [vmem:[%s872 + $0xc0] sm:$0xff]
        %v1179 = vld [vmem:[%s872 + $0xc8] sm:$0xff]
        %v1180 = vld [vmem:[%s872 + $0xd0] sm:$0xff]
        %v1181 = vld [vmem:[%s872 + $0xd8] sm:$0xff]
        %v1182 = vld [vmem:[%s872 + $0xe0] sm:$0xff]
        %v1183 = vld [vmem:[%s872 + $0xe8] sm:$0xff]
        %v1184 = vld [vmem:[%s872 + $0xf0] sm:$0xff]
        %v1185 = vld [vmem:[%s872 + $0xf8] sm:$0xff]
        %v1186 = vld [vmem:[%s872 + $0x100] sm:$0xff]
        %v1187 = vld [vmem:[%s872 + $0x108] sm:$0xff]
        %v1188 = vld [vmem:[%s872 + $0x110] sm:$0xff]
        %v1189 = vld [vmem:[%s872 + $0x118] sm:$0xff]
        %v1190 = vld [vmem:[%s872 + $0x120] sm:$0xff]
        %v1191 = vld [vmem:[%s872 + $0x128] sm:$0xff]
        %v1192 = vld [vmem:[%s872 + $0x130] sm:$0xff]
        %v1193 = vld [vmem:[%s872 + $0x138] sm:$0xff]
        %v1194 = vld [vmem:[%s872 + $0x140] sm:$0xff]
        %v1195 = vld [vmem:[%s872 + $0x148] sm:$0xff]
        %v1196 = vld [vmem:[%s872 + $0x150] sm:$0xff]
        %v1197 = vld [vmem:[%s872 + $0x158] sm:$0xff]
        %v1198 = vld [vmem:[%s872 + $0x160] sm:$0xff]
        %v1199 = vld [vmem:[%s872 + $0x168] sm:$0xff]
        %v1200 = vld [vmem:[%s872 + $0x170] sm:$0xff]
        %v1201 = vld [vmem:[%s872 + $0x178] sm:$0xff]
        %v1202 = vld [vmem:[%s881] sm:$0x3f]
        %v1204 = vlaneseq
        %v1205 = vshrl.u32 %v1204, 7
        %v1206 = vsub.s32 0, %v1205
        %v1207 = vrot.slane %v1202, %v1206
        %v1208 = vlaneseq
        %v1209 = vshrl.u32 %v1208, 7
        %v1210 = vsub.s32 1, %v1209
        %v1211 = vrot.slane %v1202, %v1210
        %v1212 = vlaneseq
        %v1213 = vshrl.u32 %v1212, 7
        %v1214 = vsub.s32 2, %v1213
        %v1215 = vrot.slane %v1202, %v1214
        %v1216 = vlaneseq
        %v1217 = vshrl.u32 %v1216, 7
        %v1218 = vsub.s32 3, %v1217
        %v1219 = vrot.slane %v1202, %v1218
        %v1220 = vlaneseq
        %v1221 = vshrl.u32 %v1220, 7
        %v1222 = vsub.s32 4, %v1221
        %v1223 = vrot.slane %v1202, %v1222
        %v1224 = vlaneseq
        %v1225 = vshrl.u32 %v1224, 7
        %v1226 = vsub.s32 5, %v1225
        %v1227 = vrot.slane %v1202, %v1226
        %v1282 = vunpack.c.l.b16 %v1154
        %v1283 = vunpack.c.h.b16 %v1154
        %v1284 = vunpack.c.l.b16 %v1155
        %v1285 = vunpack.c.h.b16 %v1155
        %v1286 = vunpack.c.l.b16 %v1156
        %v1287 = vunpack.c.h.b16 %v1156
        %v1288 = vunpack.c.l.b16 %v1157
        %v1289 = vunpack.c.h.b16 %v1157
        %v1290 = vunpack.c.l.b16 %v1158
        %v1291 = vunpack.c.h.b16 %v1158
        %v1292 = vunpack.c.l.b16 %v1159
        %v1293 = vunpack.c.h.b16 %v1159
        %v1294 = vunpack.c.l.b16 %v1160
        %v1295 = vunpack.c.h.b16 %v1160
        %v1296 = vunpack.c.l.b16 %v1161
        %v1297 = vunpack.c.h.b16 %v1161
        %v1298 = vunpack.c.l.b16 %v1162
        %v1299 = vunpack.c.h.b16 %v1162
        %v1300 = vunpack.c.l.b16 %v1163
        %v1301 = vunpack.c.h.b16 %v1163
        %v1302 = vunpack.c.l.b16 %v1164
        %v1303 = vunpack.c.h.b16 %v1164
        %v1304 = vunpack.c.l.b16 %v1165
        %v1305 = vunpack.c.h.b16 %v1165
        %v1306 = vunpack.c.l.b16 %v1166
        %v1307 = vunpack.c.h.b16 %v1166
        %v1308 = vunpack.c.l.b16 %v1167
        %v1309 = vunpack.c.h.b16 %v1167
        %v1310 = vunpack.c.l.b16 %v1168
        %v1311 = vunpack.c.h.b16 %v1168
        %v1312 = vunpack.c.l.b16 %v1169
        %v1313 = vunpack.c.h.b16 %v1169
        %v1314 = vunpack.c.l.b16 %v1170
        %v1315 = vunpack.c.h.b16 %v1170
        %v1316 = vunpack.c.l.b16 %v1171
        %v1317 = vunpack.c.h.b16 %v1171
        %v1318 = vunpack.c.l.b16 %v1172
        %v1319 = vunpack.c.h.b16 %v1172
        %v1320 = vunpack.c.l.b16 %v1173
        %v1321 = vunpack.c.h.b16 %v1173
        %v1322 = vunpack.c.l.b16 %v1174
        %v1323 = vunpack.c.h.b16 %v1174
        %v1324 = vunpack.c.l.b16 %v1175
        %v1325 = vunpack.c.h.b16 %v1175
        %v1326 = vunpack.c.l.b16 %v1176
        %v1327 = vunpack.c.h.b16 %v1176
        %v1328 = vunpack.c.l.b16 %v1177
        %v1329 = vunpack.c.h.b16 %v1177
        %v1330 = vunpack.c.l.b16 %v1178
        %v1331 = vunpack.c.h.b16 %v1178
        %v1332 = vunpack.c.l.b16 %v1179
        %v1333 = vunpack.c.h.b16 %v1179
        %v1334 = vunpack.c.l.b16 %v1180
        %v1335 = vunpack.c.h.b16 %v1180
        %v1336 = vunpack.c.l.b16 %v1181
        %v1337 = vunpack.c.h.b16 %v1181
        %v1338 = vunpack.c.l.b16 %v1182
        %v1339 = vunpack.c.h.b16 %v1182
        %v1340 = vunpack.c.l.b16 %v1183
        %v1341 = vunpack.c.h.b16 %v1183
        %v1342 = vunpack.c.l.b16 %v1184
        %v1343 = vunpack.c.h.b16 %v1184
        %v1344 = vunpack.c.l.b16 %v1185
        %v1345 = vunpack.c.h.b16 %v1185
        %v1346 = vunpack.c.l.b16 %v1186
        %v1347 = vunpack.c.h.b16 %v1186
        %v1348 = vunpack.c.l.b16 %v1187
        %v1349 = vunpack.c.h.b16 %v1187
        %v1350 = vunpack.c.l.b16 %v1188
        %v1351 = vunpack.c.h.b16 %v1188
        %v1352 = vunpack.c.l.b16 %v1189
        %v1353 = vunpack.c.h.b16 %v1189
        %v1354 = vunpack.c.l.b16 %v1190
        %v1355 = vunpack.c.h.b16 %v1190
        %v1356 = vunpack.c.l.b16 %v1191
        %v1357 = vunpack.c.h.b16 %v1191
        %v1358 = vunpack.c.l.b16 %v1192
        %v1359 = vunpack.c.h.b16 %v1192
        %v1360 = vunpack.c.l.b16 %v1193
        %v1361 = vunpack.c.h.b16 %v1193
        %v1362 = vunpack.c.l.b16 %v1194
        %v1363 = vunpack.c.h.b16 %v1194
        %v1364 = vunpack.c.l.b16 %v1195
        %v1365 = vunpack.c.h.b16 %v1195
        %v1366 = vunpack.c.l.b16 %v1196
        %v1367 = vunpack.c.h.b16 %v1196
        %v1368 = vunpack.c.l.b16 %v1197
        %v1369 = vunpack.c.h.b16 %v1197
        %v1370 = vunpack.c.l.b16 %v1198
        %v1371 = vunpack.c.h.b16 %v1198
        %v1372 = vunpack.c.l.b16 %v1199
        %v1373 = vunpack.c.h.b16 %v1199
        %v1374 = vunpack.c.l.b16 %v1200
        %v1375 = vunpack.c.h.b16 %v1200
        %v1376 = vunpack.c.l.b16 %v1201
        %v1377 = vunpack.c.h.b16 %v1201
        %v1378 = vpack.c.b16 %v1288, %v1282
        %v1379 = vpack.c.b16 %v1289, %v1283
        %v1380 = vpack.c.b16 %v1290, %v1284
        %v1381 = vpack.c.b16 %v1291, %v1285
        %v1382 = vpack.c.b16 %v1292, %v1286
        %v1383 = vpack.c.b16 %v1293, %v1287
        %v1384 = vpack.c.b16 %v1300, %v1294
        %v1385 = vpack.c.b16 %v1301, %v1295
        %v1386 = vpack.c.b16 %v1302, %v1296
        %v1387 = vpack.c.b16 %v1303, %v1297
        %v1388 = vpack.c.b16 %v1304, %v1298
        %v1389 = vpack.c.b16 %v1305, %v1299
        %v1390 = vpack.c.b16 %v1312, %v1306
        %v1391 = vpack.c.b16 %v1313, %v1307
        %v1392 = vpack.c.b16 %v1314, %v1308
        %v1393 = vpack.c.b16 %v1315, %v1309
        %v1394 = vpack.c.b16 %v1316, %v1310
        %v1395 = vpack.c.b16 %v1317, %v1311
        %v1396 = vpack.c.b16 %v1324, %v1318
        %v1397 = vpack.c.b16 %v1325, %v1319
        %v1398 = vpack.c.b16 %v1326, %v1320
        %v1399 = vpack.c.b16 %v1327, %v1321
        %v1400 = vpack.c.b16 %v1328, %v1322
        %v1401 = vpack.c.b16 %v1329, %v1323
        %v1402 = vpack.c.b16 %v1336, %v1330
        %v1403 = vpack.c.b16 %v1337, %v1331
        %v1404 = vpack.c.b16 %v1338, %v1332
        %v1405 = vpack.c.b16 %v1339, %v1333
        %v1406 = vpack.c.b16 %v1340, %v1334
        %v1407 = vpack.c.b16 %v1341, %v1335
        %v1408 = vpack.c.b16 %v1348, %v1342
        %v1409 = vpack.c.b16 %v1349, %v1343
        %v1410 = vpack.c.b16 %v1350, %v1344
        %v1411 = vpack.c.b16 %v1351, %v1345
        %v1412 = vpack.c.b16 %v1352, %v1346
        %v1413 = vpack.c.b16 %v1353, %v1347
        %v1414 = vpack.c.b16 %v1360, %v1354
        %v1415 = vpack.c.b16 %v1361, %v1355
        %v1416 = vpack.c.b16 %v1362, %v1356
        %v1417 = vpack.c.b16 %v1363, %v1357
        %v1418 = vpack.c.b16 %v1364, %v1358
        %v1419 = vpack.c.b16 %v1365, %v1359
        %v1420 = vpack.c.b16 %v1372, %v1366
        %v1421 = vpack.c.b16 %v1373, %v1367
        %v1422 = vpack.c.b16 %v1374, %v1368
        %v1423 = vpack.c.b16 %v1375, %v1369
        %v1424 = vpack.c.b16 %v1376, %v1370
        %v1425 = vpack.c.b16 %v1377, %v1371
        %1474 = vmatprep.subr.bf16.mxu0 %v1379
        %1475 = vmatpush1.bf16.msra.mxu0 %v1378
        %1476 = vmatprep.subr.bf16.mxu0 %v1385
        %1477 = vmatpush1.bf16.msra.mxu0 %v1384
        %1478 = vmatprep.subr.bf16.mxu0 %v1391
        %1479 = vmatpush1.bf16.msra.mxu0 %v1390
        %1480 = vmatprep.subr.bf16.mxu0 %v1397
        %1481 = vmatpush1.bf16.msra.mxu0 %v1396
        %1482 = vmatprep.subr.bf16.mxu0 %v1403
        %1483 = vmatpush1.bf16.msra.mxu0 %v1402
        %1484 = vmatprep.subr.bf16.mxu0 %v1409
        %1485 = vmatpush1.bf16.msra.mxu0 %v1408
        %1486 = vmatprep.subr.bf16.mxu0 %v1415
        %1487 = vmatpush1.bf16.msra.mxu0 %v1414
        %1488 = vmatprep.subr.bf16.mxu0 %v1421
        %1489 = vmatpush1.bf16.msra.mxu0 %v1420
        %1490 = vmatprep.subr.bf16.mxu0 0
        %1491 = vmatpush1.bf16.msra.mxu0 0
        %1492 = vmatprep.subr.bf16.mxu0 0
        %1493 = vmatpush1.bf16.msra.mxu0 0
        %1494 = vmatprep.subr.bf16.mxu0 0
        %1495 = vmatpush1.bf16.msra.mxu0 0
        %1496 = vmatprep.subr.bf16.mxu0 0
        %1497 = vmatpush1.bf16.msra.mxu0 0
        %1498 = vmatprep.subr.bf16.mxu0 0
        %1499 = vmatpush1.bf16.msra.mxu0 0
        %1500 = vmatprep.subr.bf16.mxu0 0
        %1501 = vmatpush1.bf16.msra.mxu0 0
        %1502 = vmatprep.subr.bf16.mxu0 0
        %1503 = vmatpush1.bf16.msra.mxu0 0
        %1504 = vmatprep.subr.bf16.mxu0 0
        %1505 = vmatpush1.bf16.msra.mxu0 0
        %1506 = vmatprep.mubr.bf16.mxu0 0
        %1507 = vmatmul.mubr.bf16.gmra.mrb[0].mxu0 %v1152
        %v1508 = vpop.f32.mrb[0].mxu0
        %v1509 = vadd.f32 %v1207, %v1508
        %v1510 = vpop.f32.mrb[0].mxu0
        %v1511 = vadd.f32 %v1211, %v1510
        %v1512 = vpop.f32.mrb[0].mxu0
        %v1513 = vadd.f32 %v1207, %v1512
        %v1514 = vpop.f32.mrb[0].mxu0
        %v1515 = vadd.f32 %v1211, %v1514
        %1516 = vmatprep.mubr.bf16.mxu0 0
        %1517 = vmatmul.mubr.bf16.gmra.mrb[0].mxu0 %v1153
        %v1518 = vpop.f32.mrb[0].mxu0
        %v1519 = vadd.f32 %v1207, %v1518
        %v1520 = vpop.f32.mrb[0].mxu0
        %v1521 = vadd.f32 %v1211, %v1520
        %v1522 = vpop.f32.mrb[0].mxu0
        %v1523 = vadd.f32 %v1207, %v1522
        %v1524 = vpop.f32.mrb[0].mxu0
        %v1525 = vadd.f32 %v1211, %v1524
        %1526 = vdwg.mxu0
        %1527 = vmatprep.subr.bf16.mxu0 %v1381
        %1528 = vmatpush1.bf16.msra.mxu0 %v1380
        %1529 = vmatprep.subr.bf16.mxu0 %v1387
        %1530 = vmatpush1.bf16.msra.mxu0 %v1386
        %1531 = vmatprep.subr.bf16.mxu0 %v1393
        %1532 = vmatpush1.bf16.msra.mxu0 %v1392
        %1533 = vmatprep.subr.bf16.mxu0 %v1399
        %1534 = vmatpush1.bf16.msra.mxu0 %v1398
        %1535 = vmatprep.subr.bf16.mxu0 %v1405
        %1536 = vmatpush1.bf16.msra.mxu0 %v1404
        %1537 = vmatprep.subr.bf16.mxu0 %v1411
        %1538 = vmatpush1.bf16.msra.mxu0 %v1410
        %1539 = vmatprep.subr.bf16.mxu0 %v1417
        %1540 = vmatpush1.bf16.msra.mxu0 %v1416
        %1541 = vmatprep.subr.bf16.mxu0 %v1423
        %1542 = vmatpush1.bf16.msra.mxu0 %v1422
        %1543 = vmatprep.subr.bf16.mxu0 0
        %1544 = vmatpush1.bf16.msra.mxu0 0
        %1545 = vmatprep.subr.bf16.mxu0 0
        %1546 = vmatpush1.bf16.msra.mxu0 0
        %1547 = vmatprep.subr.bf16.mxu0 0
        %1548 = vmatpush1.bf16.msra.mxu0 0
        %1549 = vmatprep.subr.bf16.mxu0 0
        %1550 = vmatpush1.bf16.msra.mxu0 0
        %1551 = vmatprep.subr.bf16.mxu0 0
        %1552 = vmatpush1.bf16.msra.mxu0 0
        %1553 = vmatprep.subr.bf16.mxu0 0
        %1554 = vmatpush1.bf16.msra.mxu0 0
        %1555 = vmatprep.subr.bf16.mxu0 0
        %1556 = vmatpush1.bf16.msra.mxu0 0
        %1557 = vmatprep.subr.bf16.mxu0 0
        %1558 = vmatpush1.bf16.msra.mxu0 0
        %1559 = vmatprep.mubr.bf16.mxu0 0
        %1560 = vmatmul.mubr.bf16.gmra.mrb[0].mxu0 %v1152
        %v1561 = vpop.f32.mrb[0].mxu0
        %v1562 = vadd.f32 %v1215, %v1561
        %v1563 = vpop.f32.mrb[0].mxu0
        %v1564 = vadd.f32 %v1219, %v1563
        %v1565 = vpop.f32.mrb[0].mxu0
        %v1566 = vadd.f32 %v1215, %v1565
        %v1567 = vpop.f32.mrb[0].mxu0
        %v1568 = vadd.f32 %v1219, %v1567
        %1569 = vmatprep.mubr.bf16.mxu0 0
        %1570 = vmatmul.mubr.bf16.gmra.mrb[0].mxu0 %v1153
        %v1571 = vpop.f32.mrb[0].mxu0
        %v1572 = vadd.f32 %v1215, %v1571
        %v1573 = vpop.f32.mrb[0].mxu0
        %v1574 = vadd.f32 %v1219, %v1573
        %v1575 = vpop.f32.mrb[0].mxu0
        %v1576 = vadd.f32 %v1215, %v1575
        %v1577 = vpop.f32.mrb[0].mxu0
        %v1578 = vadd.f32 %v1219, %v1577
        %1579 = vdwg.mxu0
        %1580 = vmatprep.subr.bf16.mxu0 %v1383
        %1581 = vmatpush1.bf16.msra.mxu0 %v1382
        %1582 = vmatprep.subr.bf16.mxu0 %v1389
        %1583 = vmatpush1.bf16.msra.mxu0 %v1388
        %1584 = vmatprep.subr.bf16.mxu0 %v1395
        %1585 = vmatpush1.bf16.msra.mxu0 %v1394
        %1586 = vmatprep.subr.bf16.mxu0 %v1401
        %1587 = vmatpush1.bf16.msra.mxu0 %v1400
        %1588 = vmatprep.subr.bf16.mxu0 %v1407
        %1589 = vmatpush1.bf16.msra.mxu0 %v1406
        %1590 = vmatprep.subr.bf16.mxu0 %v1413
        %1591 = vmatpush1.bf16.msra.mxu0 %v1412
        %1592 = vmatprep.subr.bf16.mxu0 %v1419
        %1593 = vmatpush1.bf16.msra.mxu0 %v1418
        %1594 = vmatprep.subr.bf16.mxu0 %v1425
        %1595 = vmatpush1.bf16.msra.mxu0 %v1424
        %1596 = vmatprep.subr.bf16.mxu0 0
        %1597 = vmatpush1.bf16.msra.mxu0 0
        %1598 = vmatprep.subr.bf16.mxu0 0
        %1599 = vmatpush1.bf16.msra.mxu0 0
        %1600 = vmatprep.subr.bf16.mxu0 0
        %1601 = vmatpush1.bf16.msra.mxu0 0
        %1602 = vmatprep.subr.bf16.mxu0 0
        %1603 = vmatpush1.bf16.msra.mxu0 0
        %1604 = vmatprep.subr.bf16.mxu0 0
        %1605 = vmatpush1.bf16.msra.mxu0 0
        %1606 = vmatprep.subr.bf16.mxu0 0
        %1607 = vmatpush1.bf16.msra.mxu0 0
        %1608 = vmatprep.subr.bf16.mxu0 0
        %1609 = vmatpush1.bf16.msra.mxu0 0
        %1610 = vmatprep.subr.bf16.mxu0 0
        %1611 = vmatpush1.bf16.msra.mxu0 0
        %1612 = vmatprep.mubr.bf16.mxu0 0
        %1613 = vmatmul.mubr.bf16.gmra.mrb[0].mxu0 %v1152
        %v1614 = vpop.f32.mrb[0].mxu0
        %v1615 = vadd.f32 %v1223, %v1614
        %v1616 = vpop.f32.mrb[0].mxu0
        %v1617 = vadd.f32 %v1227, %v1616
        %v1618 = vpop.f32.mrb[0].mxu0
        %v1619 = vadd.f32 %v1223, %v1618
        %v1620 = vpop.f32.mrb[0].mxu0
        %v1621 = vadd.f32 %v1227, %v1620
        %1622 = vmatprep.mubr.bf16.mxu0 0
        %1623 = vmatmul.mubr.bf16.gmra.mrb[0].mxu0 %v1153
        %v1624 = vpop.f32.mrb[0].mxu0
        %v1625 = vadd.f32 %v1223, %v1624
        %v1626 = vpop.f32.mrb[0].mxu0
        %v1627 = vadd.f32 %v1227, %v1626
        %v1628 = vpop.f32.mrb[0].mxu0
        %v1629 = vadd.f32 %v1223, %v1628
        %v1630 = vpop.f32.mrb[0].mxu0
        %v1631 = vadd.f32 %v1227, %v1630
        %1632 = vdwg.mxu0
        %v1633 = vld [vmem:[%s1] sm:$0x1]
        %v1634 = vpack.c.bf16 %v1513, %v1509
        %v1635 = vpack.c.bf16 %v1566, %v1562
        %v1636 = vpack.c.bf16 %v1619, %v1615
        %v1638 = vlaneseq
        %v1639 = vshrl.u32 %v1638, 7
        %v1640 = vsub.s32 0, %v1639
        %v1641 = vrot.slane %v1633, %v1640
        %1643 = vmatprep.subr.bf16.mxu0 0
        %1644 = vmatpush1.bf16.xpose.msra.mxu0 %v1635
        %1645 = vmatprep.subr.bf16.mxu0 0
        %1646 = vmatpush1.bf16.xpose.msra.mxu0 0
        %1647 = vmatprep.subr.bf16.mxu0 0
        %1648 = vmatpush1.bf16.xpose.msra.mxu0 0
        %1649 = vmatprep.subr.bf16.mxu0 0
        %1650 = vmatpush1.bf16.xpose.msra.mxu0 0
        %1651 = vmatprep.subr.bf16.mxu0 0
        %1652 = vmatpush1.bf16.xpose.msra.mxu0 0
        %1653 = vmatprep.subr.bf16.mxu0 0
        %1654 = vmatpush1.bf16.xpose.msra.mxu0 0
        %1655 = vmatprep.subr.bf16.mxu0 0
        %1656 = vmatpush1.bf16.xpose.msra.mxu0 0
        %1657 = vmatprep.subr.bf16.mxu0 0
        %1658 = vmatpush1.bf16.xpose.msra.mxu0 0
        %1659 = vmatprep.subr.bf16.mxu0 0
        %1660 = vmatpush1.bf16.xpose.msra.mxu0 0
        %1661 = vmatprep.subr.bf16.mxu0 0
        %1662 = vmatpush1.bf16.xpose.msra.mxu0 0
        %1663 = vmatprep.subr.bf16.mxu0 0
        %1664 = vmatpush1.bf16.xpose.msra.mxu0 0
        %1665 = vmatprep.subr.bf16.mxu0 0
        %1666 = vmatpush1.bf16.xpose.msra.mxu0 0
        %1667 = vmatprep.subr.bf16.mxu0 0
        %1668 = vmatpush1.bf16.xpose.msra.mxu0 0
        %1669 = vmatprep.subr.bf16.mxu0 0
        %1670 = vmatpush1.bf16.xpose.msra.mxu0 0
        %1671 = vmatprep.subr.bf16.mxu0 0
        %1672 = vmatpush1.bf16.xpose.msra.mxu0 0
        %1673 = vmatprep.subr.bf16.mxu0 0
        %1674 = vmatpush1.bf16.xpose.msra.mxu0 0
        %1675 = vmatprep.mubr.bf16.mxu0 0
        %1676 = vmatmul.mubr.bf16.gmra.mrb[0].mxu0 %v1634
        %v1677 = vpop.f32.mrb[0].mxu0
        %v1678 = vadd.f32 %v1641, %v1677
        %v1679 = vpop.f32.mrb[0].mxu0
        %v1680 = vpop.f32.mrb[0].mxu0
        %v1681 = vadd.f32 %v1641, %v1680
        %v1682 = vpop.f32.mrb[0].mxu0
        %1683 = vdwg.mxu0
        %vm1684 = vcmask 130048
        %v1685 = vsel %vm1684, %v1678, -inf
        %1686 = vmax.xlane.f32.xlu0 %v1685
        %v1687 = vpop.xlane.xlu0 %1686
        %v1688 = vsel %vm1684, %v1681, -inf
        %1689 = vmax.xlane.f32.xlu0 %v1688
        %v1690 = vpop.xlane.xlu0 %1689
        %v1691 = vsub.f32 %v1678, %v1687
        %v1692 = vsub.f32 %v1681, %v1690
        %v1693 = vmul.f32 %v1691, 1.442695
        %v1694 = vpow.pop %v1693
        %v1695 = vmul.f32 %v1692, 1.442695
        %v1696 = vpow.pop %v1695
        %v1697 = vsel %vm1684, %v1694, 0.0
        %1698 = vadd.xlane.f32.xlu0 %v1697
        %v1699 = vpop.xlane.xlu0 %1698
        %v1700 = vsel %vm1684, %v1696, 0.0
        %1701 = vadd.xlane.f32.xlu0 %v1700
        %v1702 = vpop.xlane.xlu0 %1701
        %v1703 = vrcp.pop %v1699
        %v1704 = vrcp.pop %v1702
        %v1705 = vmul.f32 %v1694, %v1703
        %v1706 = vmul.f32 %v1696, %v1704
        %v1707 = vpack.c.bf16 %v1706, %v1705
        %v1709 = vsel %vm1684, %v1707, 0
        %1711 = vmatprep.subr.bf16.mxu0 0
        %1712 = vmatpush1.bf16.msra.mxu0 %v1636
        %1713 = vmatprep.subr.bf16.mxu0 0
        %1714 = vmatpush1.bf16.msra.mxu0 0
        %1715 = vmatprep.subr.bf16.mxu0 0
        %1716 = vmatpush1.bf16.msra.mxu0 0
        %1717 = vmatprep.subr.bf16.mxu0 0
        %1718 = vmatpush1.bf16.msra.mxu0 0
        %1719 = vmatprep.subr.bf16.mxu0 0
        %1720 = vmatpush1.bf16.msra.mxu0 0
        %1721 = vmatprep.subr.bf16.mxu0 0
        %1722 = vmatpush1.bf16.msra.mxu0 0
        %1723 = vmatprep.subr.bf16.mxu0 0
        %1724 = vmatpush1.bf16.msra.mxu0 0
        %1725 = vmatprep.subr.bf16.mxu0 0
        %1726 = vmatpush1.bf16.msra.mxu0 0
        %1727 = vmatprep.subr.bf16.mxu0 0
        %1728 = vmatpush1.bf16.msra.mxu0 0
        %1729 = vmatprep.subr.bf16.mxu0 0
        %1730 = vmatpush1.bf16.msra.mxu0 0
        %1731 = vmatprep.subr.bf16.mxu0 0
        %1732 = vmatpush1.bf16.msra.mxu0 0
        %1733 = vmatprep.subr.bf16.mxu0 0
        %1734 = vmatpush1.bf16.msra.mxu0 0
        %1735 = vmatprep.subr.bf16.mxu0 0
        %1736 = vmatpush1.bf16.msra.mxu0 0
        %1737 = vmatprep.subr.bf16.mxu0 0
        %1738 = vmatpush1.bf16.msra.mxu0 0
        %1739 = vmatprep.subr.bf16.mxu0 0
        %1740 = vmatpush1.bf16.msra.mxu0 0
        %1741 = vmatprep.subr.bf16.mxu0 0
        %1742 = vmatpush1.bf16.msra.mxu0 0
        %1743 = vmatprep.mubr.bf16.mxu0 0
        %1744 = vmatmul.mubr.bf16.gmra.mrb[0].mxu0 %v1709
        %v1745 = vpop.f32.mrb[0].mxu0
        %v1746 = vadd.f32 0.0, %v1745
        %v1747 = vpop.f32.mrb[0].mxu0
        %v1748 = vpop.f32.mrb[0].mxu0
        %v1749 = vadd.f32 0.0, %v1748
        %v1750 = vpop.f32.mrb[0].mxu0
        %1751 = vdwg.mxu0
        %v1752 = vpack.c.bf16 %v1749, %v1746
        %1753 = vst [vmem:[#allocation3] sm:$0xff] %v1752
        %v1754 = vpack.c.bf16 %v1515, %v1511
        %v1755 = vpack.c.bf16 %v1568, %v1564
        %v1756 = vpack.c.bf16 %v1621, %v1617
        %1757 = vmatprep.subr.bf16.mxu0 0
        %1758 = vmatpush1.bf16.xpose.msra.mxu0 %v1755
        %1759 = vmatprep.subr.bf16.mxu0 0
        %1760 = vmatpush1.bf16.xpose.msra.mxu0 0
        %1761 = vmatprep.subr.bf16.mxu0 0
        %1762 = vmatpush1.bf16.xpose.msra.mxu0 0
        %1763 = vmatprep.subr.bf16.mxu0 0
        %1764 = vmatpush1.bf16.xpose.msra.mxu0 0
        %1765 = vmatprep.subr.bf16.mxu0 0
        %1766 = vmatpush1.bf16.xpose.msra.mxu0 0
        %1767 = vmatprep.subr.bf16.mxu0 0
        %1768 = vmatpush1.bf16.xpose.msra.mxu0 0
        %1769 = vmatprep.subr.bf16.mxu0 0
        %1770 = vmatpush1.bf16.xpose.msra.mxu0 0
        %1771 = vmatprep.subr.bf16.mxu0 0
        %1772 = vmatpush1.bf16.xpose.msra.mxu0 0
        %1773 = vmatprep.subr.bf16.mxu0 0
        %1774 = vmatpush1.bf16.xpose.msra.mxu0 0
        %1775 = vmatprep.subr.bf16.mxu0 0
        %1776 = vmatpush1.bf16.xpose.msra.mxu0 0
        %1777 = vmatprep.subr.bf16.mxu0 0
        %1778 = vmatpush1.bf16.xpose.msra.mxu0 0
        %1779 = vmatprep.subr.bf16.mxu0 0
        %1780 = vmatpush1.bf16.xpose.msra.mxu0 0
        %1781 = vmatprep.subr.bf16.mxu0 0
        %1782 = vmatpush1.bf16.xpose.msra.mxu0 0
        %1783 = vmatprep.subr.bf16.mxu0 0
        %1784 = vmatpush1.bf16.xpose.msra.mxu0 0
        %1785 = vmatprep.subr.bf16.mxu0 0
        %1786 = vmatpush1.bf16.xpose.msra.mxu0 0
        %1787 = vmatprep.subr.bf16.mxu0 0
        %1788 = vmatpush1.bf16.xpose.msra.mxu0 0
        %1789 = vmatprep.mubr.bf16.mxu0 0
        %1790 = vmatmul.mubr.bf16.gmra.mrb[0].mxu0 %v1754
        %v1791 = vpop.f32.mrb[0].mxu0
        %v1792 = vadd.f32 %v1641, %v1791
        %v1793 = vpop.f32.mrb[0].mxu0
        %v1794 = vpop.f32.mrb[0].mxu0
        %v1795 = vadd.f32 %v1641, %v1794
        %v1796 = vpop.f32.mrb[0].mxu0
        %1797 = vdwg.mxu0
        %v1798 = vsel %vm1684, %v1792, -inf
        %1799 = vmax.xlane.f32.xlu0 %v1798
        %v1800 = vpop.xlane.xlu0 %1799
        %v1801 = vsel %vm1684, %v1795, -inf
        %1802 = vmax.xlane.f32.xlu0 %v1801
        %v1803 = vpop.xlane.xlu0 %1802
        %v1804 = vsub.f32 %v1792, %v1800
        %v1805 = vsub.f32 %v1795, %v1803
        %v1806 = vmul.f32 %v1804, 1.442695
        %v1807 = vpow.pop %v1806
        %v1808 = vmul.f32 %v1805, 1.442695
        %v1809 = vpow.pop %v1808
        %v1810 = vsel %vm1684, %v1807, 0.0
        %1811 = vadd.xlane.f32.xlu0 %v1810
        %v1812 = vpop.xlane.xlu0 %1811
        %v1813 = vsel %vm1684, %v1809, 0.0
        %1814 = vadd.xlane.f32.xlu0 %v1813
        %v1815 = vpop.xlane.xlu0 %1814
        %v1816 = vrcp.pop %v1812
        %v1817 = vrcp.pop %v1815
        %v1818 = vmul.f32 %v1807, %v1816
        %v1819 = vmul.f32 %v1809, %v1817
        %v1820 = vpack.c.bf16 %v1819, %v1818
        %v1822 = vsel %vm1684, %v1820, 0
        %1824 = vmatprep.subr.bf16.mxu0 0
        %1825 = vmatpush1.bf16.msra.mxu0 %v1756
        %1826 = vmatprep.subr.bf16.mxu0 0
        %1827 = vmatpush1.bf16.msra.mxu0 0
        %1828 = vmatprep.subr.bf16.mxu0 0
        %1829 = vmatpush1.bf16.msra.mxu0 0
        %1830 = vmatprep.subr.bf16.mxu0 0
        %1831 = vmatpush1.bf16.msra.mxu0 0
        %1832 = vmatprep.subr.bf16.mxu0 0
        %1833 = vmatpush1.bf16.msra.mxu0 0
        %1834 = vmatprep.subr.bf16.mxu0 0
        %1835 = vmatpush1.bf16.msra.mxu0 0
        %1836 = vmatprep.subr.bf16.mxu0 0
        %1837 = vmatpush1.bf16.msra.mxu0 0
        %1838 = vmatprep.subr.bf16.mxu0 0
        %1839 = vmatpush1.bf16.msra.mxu0 0
        %1840 = vmatprep.subr.bf16.mxu0 0
        %1841 = vmatpush1.bf16.msra.mxu0 0
        %1842 = vmatprep.subr.bf16.mxu0 0
        %1843 = vmatpush1.bf16.msra.mxu0 0
        %1844 = vmatprep.subr.bf16.mxu0 0
        %1845 = vmatpush1.bf16.msra.mxu0 0
        %1846 = vmatprep.subr.bf16.mxu0 0
        %1847 = vmatpush1.bf16.msra.mxu0 0
        %1848 = vmatprep.subr.bf16.mxu0 0
        %1849 = vmatpush1.bf16.msra.mxu0 0
        %1850 = vmatprep.subr.bf16.mxu0 0
        %1851 = vmatpush1.bf16.msra.mxu0 0
        %1852 = vmatprep.subr.bf16.mxu0 0
        %1853 = vmatpush1.bf16.msra.mxu0 0
        %1854 = vmatprep.subr.bf16.mxu0 0
        %1855 = vmatpush1.bf16.msra.mxu0 0
        %1856 = vmatprep.mubr.bf16.mxu0 0
        %1857 = vmatmul.mubr.bf16.gmra.mrb[0].mxu0 %v1822
        %v1858 = vpop.f32.mrb[0].mxu0
        %v1859 = vadd.f32 0.0, %v1858
        %v1860 = vpop.f32.mrb[0].mxu0
        %v1861 = vpop.f32.mrb[0].mxu0
        %v1862 = vadd.f32 0.0, %v1861
        %v1863 = vpop.f32.mrb[0].mxu0
        %1864 = vdwg.mxu0
        %v1865 = vpack.c.bf16 %v1862, %v1859
        %1866 = vst [vmem:[#allocation3 + $0x8] sm:$0xff] %v1865
        %s1867 = scalar_lea.vmem %s1, 1
        %v1868 = vld [vmem:[%s1867] sm:$0x1]
        %v1869 = vpack.c.bf16 %v1523, %v1519
        %v1870 = vpack.c.bf16 %v1576, %v1572
        %v1871 = vpack.c.bf16 %v1629, %v1625
        %v1873 = vlaneseq
        %v1874 = vshrl.u32 %v1873, 7
        %v1875 = vsub.s32 0, %v1874
        %v1876 = vrot.slane %v1868, %v1875
        %1878 = vmatprep.subr.bf16.mxu0 0
        %1879 = vmatpush1.bf16.xpose.msra.mxu0 %v1870
        %1880 = vmatprep.subr.bf16.mxu0 0
        %1881 = vmatpush1.bf16.xpose.msra.mxu0 0
        %1882 = vmatprep.subr.bf16.mxu0 0
        %1883 = vmatpush1.bf16.xpose.msra.mxu0 0
        %1884 = vmatprep.subr.bf16.mxu0 0
        %1885 = vmatpush1.bf16.xpose.msra.mxu0 0
        %1886 = vmatprep.subr.bf16.mxu0 0
        %1887 = vmatpush1.bf16.xpose.msra.mxu0 0
        %1888 = vmatprep.subr.bf16.mxu0 0
        %1889 = vmatpush1.bf16.xpose.msra.mxu0 0
        %1890 = vmatprep.subr.bf16.mxu0 0
        %1891 = vmatpush1.bf16.xpose.msra.mxu0 0
        %1892 = vmatprep.subr.bf16.mxu0 0
        %1893 = vmatpush1.bf16.xpose.msra.mxu0 0
        %1894 = vmatprep.subr.bf16.mxu0 0
        %1895 = vmatpush1.bf16.xpose.msra.mxu0 0
        %1896 = vmatprep.subr.bf16.mxu0 0
        %1897 = vmatpush1.bf16.xpose.msra.mxu0 0
        %1898 = vmatprep.subr.bf16.mxu0 0
        %1899 = vmatpush1.bf16.xpose.msra.mxu0 0
        %1900 = vmatprep.subr.bf16.mxu0 0
        %1901 = vmatpush1.bf16.xpose.msra.mxu0 0
        %1902 = vmatprep.subr.bf16.mxu0 0
        %1903 = vmatpush1.bf16.xpose.msra.mxu0 0
        %1904 = vmatprep.subr.bf16.mxu0 0
        %1905 = vmatpush1.bf16.xpose.msra.mxu0 0
        %1906 = vmatprep.subr.bf16.mxu0 0
        %1907 = vmatpush1.bf16.xpose.msra.mxu0 0
        %1908 = vmatprep.subr.bf16.mxu0 0
        %1909 = vmatpush1.bf16.xpose.msra.mxu0 0
        %1910 = vmatprep.mubr.bf16.mxu0 0
        %1911 = vmatmul.mubr.bf16.gmra.mrb[0].mxu0 %v1869
        %v1912 = vpop.f32.mrb[0].mxu0
        %v1913 = vadd.f32 %v1876, %v1912
        %v1914 = vpop.f32.mrb[0].mxu0
        %v1915 = vpop.f32.mrb[0].mxu0
        %v1916 = vadd.f32 %v1876, %v1915
        %v1917 = vpop.f32.mrb[0].mxu0
        %1918 = vdwg.mxu0
        %v1919 = vsel %vm1684, %v1913, -inf
        %1920 = vmax.xlane.f32.xlu0 %v1919
        %v1921 = vpop.xlane.xlu0 %1920
        %v1922 = vsel %vm1684, %v1916, -inf
        %1923 = vmax.xlane.f32.xlu0 %v1922
        %v1924 = vpop.xlane.xlu0 %1923
        %v1925 = vsub.f32 %v1913, %v1921
        %v1926 = vsub.f32 %v1916, %v1924
        %v1927 = vmul.f32 %v1925, 1.442695
        %v1928 = vpow.pop %v1927
        %v1929 = vmul.f32 %v1926, 1.442695
        %v1930 = vpow.pop %v1929
        %v1931 = vsel %vm1684, %v1928, 0.0
        %1932 = vadd.xlane.f32.xlu0 %v1931
        %v1933 = vpop.xlane.xlu0 %1932
        %v1934 = vsel %vm1684, %v1930, 0.0
        %1935 = vadd.xlane.f32.xlu0 %v1934
        %v1936 = vpop.xlane.xlu0 %1935
        %v1937 = vrcp.pop %v1933
        %v1938 = vrcp.pop %v1936
        %v1939 = vmul.f32 %v1928, %v1937
        %v1940 = vmul.f32 %v1930, %v1938
        %v1941 = vpack.c.bf16 %v1940, %v1939
        %v1943 = vsel %vm1684, %v1941, 0
        %1945 = vmatprep.subr.bf16.mxu0 0
        %1946 = vmatpush1.bf16.msra.mxu0 %v1871
        %1947 = vmatprep.subr.bf16.mxu0 0
        %1948 = vmatpush1.bf16.msra.mxu0 0
        %1949 = vmatprep.subr.bf16.mxu0 0
        %1950 = vmatpush1.bf16.msra.mxu0 0
        %1951 = vmatprep.subr.bf16.mxu0 0
        %1952 = vmatpush1.bf16.msra.mxu0 0
        %1953 = vmatprep.subr.bf16.mxu0 0
        %1954 = vmatpush1.bf16.msra.mxu0 0
        %1955 = vmatprep.subr.bf16.mxu0 0
        %1956 = vmatpush1.bf16.msra.mxu0 0
        %1957 = vmatprep.subr.bf16.mxu0 0
        %1958 = vmatpush1.bf16.msra.mxu0 0
        %1959 = vmatprep.subr.bf16.mxu0 0
        %1960 = vmatpush1.bf16.msra.mxu0 0
        %1961 = vmatprep.subr.bf16.mxu0 0
        %1962 = vmatpush1.bf16.msra.mxu0 0
        %1963 = vmatprep.subr.bf16.mxu0 0
        %1964 = vmatpush1.bf16.msra.mxu0 0
        %1965 = vmatprep.subr.bf16.mxu0 0
        %1966 = vmatpush1.bf16.msra.mxu0 0
        %1967 = vmatprep.subr.bf16.mxu0 0
        %1968 = vmatpush1.bf16.msra.mxu0 0
        %1969 = vmatprep.subr.bf16.mxu0 0
        %1970 = vmatpush1.bf16.msra.mxu0 0
        %1971 = vmatprep.subr.bf16.mxu0 0
        %1972 = vmatpush1.bf16.msra.mxu0 0
        %1973 = vmatprep.subr.bf16.mxu0 0
        %1974 = vmatpush1.bf16.msra.mxu0 0
        %1975 = vmatprep.subr.bf16.mxu0 0
        %1976 = vmatpush1.bf16.msra.mxu0 0
        %1977 = vmatprep.mubr.bf16.mxu0 0
        %1978 = vmatmul.mubr.bf16.gmra.mrb[0].mxu0 %v1943
        %v1979 = vpop.f32.mrb[0].mxu0
        %v1980 = vadd.f32 0.0, %v1979
        %v1981 = vpop.f32.mrb[0].mxu0
        %v1982 = vpop.f32.mrb[0].mxu0
        %v1983 = vadd.f32 0.0, %v1982
        %v1984 = vpop.f32.mrb[0].mxu0
        %1985 = vdwg.mxu0
        %v1986 = vpack.c.bf16 %v1983, %v1980
        %1987 = vst [vmem:[#allocation3 + $0x10] sm:$0xff] %v1986
        %v1988 = vpack.c.bf16 %v1525, %v1521
        %v1989 = vpack.c.bf16 %v1578, %v1574
        %v1990 = vpack.c.bf16 %v1631, %v1627
        %1991 = vmatprep.subr.bf16.mxu0 0
        %1992 = vmatpush1.bf16.xpose.msra.mxu0 %v1989
        %1993 = vmatprep.subr.bf16.mxu0 0
        %1994 = vmatpush1.bf16.xpose.msra.mxu0 0
        %1995 = vmatprep.subr.bf16.mxu0 0
        %1996 = vmatpush1.bf16.xpose.msra.mxu0 0
        %1997 = vmatprep.subr.bf16.mxu0 0
        %1998 = vmatpush1.bf16.xpose.msra.mxu0 0
        %1999 = vmatprep.subr.bf16.mxu0 0
        %2000 = vmatpush1.bf16.xpose.msra.mxu0 0
        %2001 = vmatprep.subr.bf16.mxu0 0
        %2002 = vmatpush1.bf16.xpose.msra.mxu0 0
        %2003 = vmatprep.subr.bf16.mxu0 0
        %2004 = vmatpush1.bf16.xpose.msra.mxu0 0
        %2005 = vmatprep.subr.bf16.mxu0 0
        %2006 = vmatpush1.bf16.xpose.msra.mxu0 0
        %2007 = vmatprep.subr.bf16.mxu0 0
        %2008 = vmatpush1.bf16.xpose.msra.mxu0 0
        %2009 = vmatprep.subr.bf16.mxu0 0
        %2010 = vmatpush1.bf16.xpose.msra.mxu0 0
        %2011 = vmatprep.subr.bf16.mxu0 0
        %2012 = vmatpush1.bf16.xpose.msra.mxu0 0
        %2013 = vmatprep.subr.bf16.mxu0 0
        %2014 = vmatpush1.bf16.xpose.msra.mxu0 0
        %2015 = vmatprep.subr.bf16.mxu0 0
        %2016 = vmatpush1.bf16.xpose.msra.mxu0 0
        %2017 = vmatprep.subr.bf16.mxu0 0
        %2018 = vmatpush1.bf16.xpose.msra.mxu0 0
        %2019 = vmatprep.subr.bf16.mxu0 0
        %2020 = vmatpush1.bf16.xpose.msra.mxu0 0
        %2021 = vmatprep.subr.bf16.mxu0 0
        %2022 = vmatpush1.bf16.xpose.msra.mxu0 0
        %2023 = vmatprep.mubr.bf16.mxu0 0
        %2024 = vmatmul.mubr.bf16.gmra.mrb[0].mxu0 %v1988
        %v2025 = vpop.f32.mrb[0].mxu0
        %v2026 = vadd.f32 %v1876, %v2025
        %v2027 = vpop.f32.mrb[0].mxu0
        %v2028 = vpop.f32.mrb[0].mxu0
        %v2029 = vadd.f32 %v1876, %v2028
        %v2030 = vpop.f32.mrb[0].mxu0
        %2031 = vdwg.mxu0
        %v2032 = vsel %vm1684, %v2026, -inf
        %2033 = vmax.xlane.f32.xlu0 %v2032
        %v2034 = vpop.xlane.xlu0 %2033
        %v2035 = vsel %vm1684, %v2029, -inf
        %2036 = vmax.xlane.f32.xlu0 %v2035
        %v2037 = vpop.xlane.xlu0 %2036
        %v2038 = vsub.f32 %v2026, %v2034
        %v2039 = vsub.f32 %v2029, %v2037
        %v2040 = vmul.f32 %v2038, 1.442695
        %v2041 = vpow.pop %v2040
        %v2042 = vmul.f32 %v2039, 1.442695
        %v2043 = vpow.pop %v2042
        %v2044 = vsel %vm1684, %v2041, 0.0
        %2045 = vadd.xlane.f32.xlu0 %v2044
        %v2046 = vpop.xlane.xlu0 %2045
        %v2047 = vsel %vm1684, %v2043, 0.0
        %2048 = vadd.xlane.f32.xlu0 %v2047
        %v2049 = vpop.xlane.xlu0 %2048
        %v2050 = vrcp.pop %v2046
        %v2051 = vrcp.pop %v2049
        %v2052 = vmul.f32 %v2041, %v2050
        %v2053 = vmul.f32 %v2043, %v2051
        %v2054 = vpack.c.bf16 %v2053, %v2052
        %v2056 = vsel %vm1684, %v2054, 0
        %2058 = vmatprep.subr.bf16.mxu0 0
        %2059 = vmatpush1.bf16.msra.mxu0 %v1990
        %2060 = vmatprep.subr.bf16.mxu0 0
        %2061 = vmatpush1.bf16.msra.mxu0 0
        %2062 = vmatprep.subr.bf16.mxu0 0
        %2063 = vmatpush1.bf16.msra.mxu0 0
        %2064 = vmatprep.subr.bf16.mxu0 0
        %2065 = vmatpush1.bf16.msra.mxu0 0
        %2066 = vmatprep.subr.bf16.mxu0 0
        %2067 = vmatpush1.bf16.msra.mxu0 0
        %2068 = vmatprep.subr.bf16.mxu0 0
        %2069 = vmatpush1.bf16.msra.mxu0 0
        %2070 = vmatprep.subr.bf16.mxu0 0
        %2071 = vmatpush1.bf16.msra.mxu0 0
        %2072 = vmatprep.subr.bf16.mxu0 0
        %2073 = vmatpush1.bf16.msra.mxu0 0
        %2074 = vmatprep.subr.bf16.mxu0 0
        %2075 = vmatpush1.bf16.msra.mxu0 0
        %2076 = vmatprep.subr.bf16.mxu0 0
        %2077 = vmatpush1.bf16.msra.mxu0 0
        %2078 = vmatprep.subr.bf16.mxu0 0
        %2079 = vmatpush1.bf16.msra.mxu0 0
        %2080 = vmatprep.subr.bf16.mxu0 0
        %2081 = vmatpush1.bf16.msra.mxu0 0
        %2082 = vmatprep.subr.bf16.mxu0 0
        %2083 = vmatpush1.bf16.msra.mxu0 0
        %2084 = vmatprep.subr.bf16.mxu0 0
        %2085 = vmatpush1.bf16.msra.mxu0 0
        %2086 = vmatprep.subr.bf16.mxu0 0
        %2087 = vmatpush1.bf16.msra.mxu0 0
        %2088 = vmatprep.subr.bf16.mxu0 0
        %2089 = vmatpush1.bf16.msra.mxu0 0
        %2090 = vmatprep.mubr.bf16.mxu0 0
        %2091 = vmatmul.mubr.bf16.gmra.mrb[0].mxu0 %v2056
        %v2092 = vpop.f32.mrb[0].mxu0
        %v2093 = vadd.f32 0.0, %v2092
        %v2094 = vpop.f32.mrb[0].mxu0
        %v2095 = vpop.f32.mrb[0].mxu0
        %v2096 = vadd.f32 0.0, %v2095
        %v2097 = vpop.f32.mrb[0].mxu0
        %2098 = vdwg.mxu0
        %v2099 = vpack.c.bf16 %v2096, %v2093
        %2100 = vst [vmem:[#allocation3 + $0x18] sm:$0xff] %v2099
        %v2101 = vld [vmem:[#allocation3] sm:$0xff]
        %v2102 = vld [vmem:[#allocation3 + $0x8] sm:$0xff]
        %v2103 = vld [vmem:[#allocation3 + $0x10] sm:$0xff]
        %v2104 = vld [vmem:[#allocation3 + $0x18] sm:$0xff]
        %v2105 = vld [vmem:[%s890] sm:$0xf]
        %v2106 = vld [vmem:[%s890 + $0x4] sm:$0xf]
        %v2107 = vld [vmem:[%s890 + $0x8] sm:$0xf]
        %v2108 = vld [vmem:[%s890 + $0xc] sm:$0xf]
        %v2109 = vld [vmem:[%s890 + $0x10] sm:$0xf]
        %v2110 = vld [vmem:[%s890 + $0x14] sm:$0xf]
        %v2111 = vld [vmem:[%s890 + $0x18] sm:$0xf]
        %v2112 = vld [vmem:[%s890 + $0x1c] sm:$0xf]
        %v2113 = vld [vmem:[%s890 + $0x20] sm:$0xf]
        %v2114 = vld [vmem:[%s890 + $0x24] sm:$0xf]
        %v2115 = vld [vmem:[%s890 + $0x28] sm:$0xf]
        %v2116 = vld [vmem:[%s890 + $0x2c] sm:$0xf]
        %v2117 = vld [vmem:[%s890 + $0x30] sm:$0xf]
        %v2118 = vld [vmem:[%s890 + $0x34] sm:$0xf]
        %v2119 = vld [vmem:[%s890 + $0x38] sm:$0xf]
        %v2120 = vld [vmem:[%s890 + $0x3c] sm:$0xf]
        %v2121 = vld [vmem:[%s890 + $0x40] sm:$0xf]
        %v2122 = vld [vmem:[%s890 + $0x44] sm:$0xf]
        %v2123 = vld [vmem:[%s890 + $0x48] sm:$0xf]
        %v2124 = vld [vmem:[%s890 + $0x4c] sm:$0xf]
        %v2125 = vld [vmem:[%s890 + $0x50] sm:$0xf]
        %v2126 = vld [vmem:[%s890 + $0x54] sm:$0xf]
        %v2127 = vld [vmem:[%s890 + $0x58] sm:$0xf]
        %v2128 = vld [vmem:[%s890 + $0x5c] sm:$0xf]
        %v2129 = vld [vmem:[%s890 + $0x60] sm:$0xf]
        %v2130 = vld [vmem:[%s890 + $0x64] sm:$0xf]
        %v2131 = vld [vmem:[%s890 + $0x68] sm:$0xf]
        %v2132 = vld [vmem:[%s890 + $0x6c] sm:$0xf]
        %v2133 = vld [vmem:[%s890 + $0x70] sm:$0xf]
        %v2134 = vld [vmem:[%s890 + $0x74] sm:$0xf]
        %v2135 = vld [vmem:[%s890 + $0x78] sm:$0xf]
        %v2136 = vld [vmem:[%s890 + $0x7c] sm:$0xf]
        %v2137 = vld [vmem:[%s1067] sm:$0x1]
        %v2139 = vlaneseq
        %v2140 = vshrl.u32 %v2139, 7
        %v2141 = vsub.s32 0, %v2140
        %v2142 = vrot.slane %v2137, %v2141
        %v2176 = vunpack.c.l.b16 %v2105
        %v2177 = vunpack.c.l.b16 %v2106
        %v2178 = vunpack.c.l.b16 %v2107
        %v2179 = vunpack.c.l.b16 %v2108
        %v2180 = vunpack.c.l.b16 %v2109
        %v2181 = vunpack.c.l.b16 %v2110
        %v2182 = vunpack.c.l.b16 %v2111
        %v2183 = vunpack.c.l.b16 %v2112
        %v2184 = vunpack.c.l.b16 %v2113
        %v2185 = vunpack.c.l.b16 %v2114
        %v2186 = vunpack.c.l.b16 %v2115
        %v2187 = vunpack.c.l.b16 %v2116
        %v2188 = vunpack.c.l.b16 %v2117
        %v2189 = vunpack.c.l.b16 %v2118
        %v2190 = vunpack.c.l.b16 %v2119
        %v2191 = vunpack.c.l.b16 %v2120
        %v2192 = vunpack.c.l.b16 %v2121
        %v2193 = vunpack.c.l.b16 %v2122
        %v2194 = vunpack.c.l.b16 %v2123
        %v2195 = vunpack.c.l.b16 %v2124
        %v2196 = vunpack.c.l.b16 %v2125
        %v2197 = vunpack.c.l.b16 %v2126
        %v2198 = vunpack.c.l.b16 %v2127
        %v2199 = vunpack.c.l.b16 %v2128
        %v2200 = vunpack.c.l.b16 %v2129
        %v2201 = vunpack.c.l.b16 %v2130
        %v2202 = vunpack.c.l.b16 %v2131
        %v2203 = vunpack.c.l.b16 %v2132
        %v2204 = vunpack.c.l.b16 %v2133
        %v2205 = vunpack.c.l.b16 %v2134
        %v2206 = vunpack.c.l.b16 %v2135
        %v2207 = vunpack.c.l.b16 %v2136
        %v2208 = vpack.c.b16 %v2177, %v2176
        %v2209 = vpack.c.b16 %v2179, %v2178
        %v2210 = vpack.c.b16 %v2181, %v2180
        %v2211 = vpack.c.b16 %v2183, %v2182
        %v2212 = vpack.c.b16 %v2185, %v2184
        %v2213 = vpack.c.b16 %v2187, %v2186
        %v2214 = vpack.c.b16 %v2189, %v2188
        %v2215 = vpack.c.b16 %v2191, %v2190
        %v2216 = vpack.c.b16 %v2193, %v2192
        %v2217 = vpack.c.b16 %v2195, %v2194
        %v2218 = vpack.c.b16 %v2197, %v2196
        %v2219 = vpack.c.b16 %v2199, %v2198
        %v2220 = vpack.c.b16 %v2201, %v2200
        %v2221 = vpack.c.b16 %v2203, %v2202
        %v2222 = vpack.c.b16 %v2205, %v2204
        %v2223 = vpack.c.b16 %v2207, %v2206
        %2240 = vmatprep.subr.bf16.mxu0 0
        %2241 = vmatpush1.bf16.msra.mxu0 %v2208
        %2242 = vmatprep.subr.bf16.mxu0 0
        %2243 = vmatpush1.bf16.msra.mxu0 %v2209
        %2244 = vmatprep.subr.bf16.mxu0 0
        %2245 = vmatpush1.bf16.msra.mxu0 %v2210
        %2246 = vmatprep.subr.bf16.mxu0 0
        %2247 = vmatpush1.bf16.msra.mxu0 %v2211
        %2248 = vmatprep.subr.bf16.mxu0 0
        %2249 = vmatpush1.bf16.msra.mxu0 %v2212
        %2250 = vmatprep.subr.bf16.mxu0 0
        %2251 = vmatpush1.bf16.msra.mxu0 %v2213
        %2252 = vmatprep.subr.bf16.mxu0 0
        %2253 = vmatpush1.bf16.msra.mxu0 %v2214
        %2254 = vmatprep.subr.bf16.mxu0 0
        %2255 = vmatpush1.bf16.msra.mxu0 %v2215
        %2256 = vmatprep.subr.bf16.mxu0 0
        %2257 = vmatpush1.bf16.msra.mxu0 %v2216
        %2258 = vmatprep.subr.bf16.mxu0 0
        %2259 = vmatpush1.bf16.msra.mxu0 %v2217
        %2260 = vmatprep.subr.bf16.mxu0 0
        %2261 = vmatpush1.bf16.msra.mxu0 %v2218
        %2262 = vmatprep.subr.bf16.mxu0 0
        %2263 = vmatpush1.bf16.msra.mxu0 %v2219
        %2264 = vmatprep.subr.bf16.mxu0 0
        %2265 = vmatpush1.bf16.msra.mxu0 %v2220
        %2266 = vmatprep.subr.bf16.mxu0 0
        %2267 = vmatpush1.bf16.msra.mxu0 %v2221
        %2268 = vmatprep.subr.bf16.mxu0 0
        %2269 = vmatpush1.bf16.msra.mxu0 %v2222
        %2270 = vmatprep.subr.bf16.mxu0 0
        %2271 = vmatpush1.bf16.msra.mxu0 %v2223
        %2272 = vmatprep.mubr.bf16.mxu0 %v2102
        %2273 = vmatmul.mubr.bf16.gmra.mrb[0].mxu0 %v2101
        %v2274 = vpop.f32.mrb[0].mxu0
        %v2275 = vadd.f32 %v2142, %v2274
        %v2276 = vpop.f32.mrb[0].mxu0
        %v2277 = vpop.f32.mrb[0].mxu0
        %v2278 = vadd.f32 %v2142, %v2277
        %v2279 = vpop.f32.mrb[0].mxu0
        %2280 = vmatprep.mubr.bf16.mxu0 %v2104
        %2281 = vmatmul.mubr.bf16.gmra.mrb[0].mxu0 %v2103
        %v2282 = vpop.f32.mrb[0].mxu0
        %v2283 = vadd.f32 %v2142, %v2282
        %v2284 = vpop.f32.mrb[0].mxu0
        %v2285 = vpop.f32.mrb[0].mxu0
        %v2286 = vadd.f32 %v2142, %v2285
        %v2287 = vpop.f32.mrb[0].mxu0
        %2288 = vdwg.mxu0
        %v2289 = vadd.f32 %v2275, %v1148
        %v2290 = vadd.f32 %v2278, %v1149
        %v2291 = vadd.f32 %v2283, %v1150
        %v2292 = vadd.f32 %v2286, %v1151
        %v2293 = vld [vmem:[%s898] sm:$0x1]
        %v2294 = vld [vmem:[%s906] sm:$0x1]
        %2295 = vadd.xlane.f32.xlu0 %v2289
        %v2296 = vpop.xlane.xlu0 %2295
        %2297 = vadd.xlane.f32.xlu0 %v2290
        %v2298 = vpop.xlane.xlu0 %2297
        %2299 = vadd.xlane.f32.xlu0 %v2291
        %v2300 = vpop.xlane.xlu0 %2299
        %2301 = vadd.xlane.f32.xlu0 %v2292
        %v2302 = vpop.xlane.xlu0 %2301
        %v2303 = vrcp.pop 128.0
        %v2304 = vmul.f32 %v2296, %v2303
        %v2305 = vmul.f32 %v2298, %v2303
        %v2306 = vmul.f32 %v2300, %v2303
        %v2307 = vmul.f32 %v2302, %v2303
        %v2308 = vsub.f32 %v2289, %v2304
        %v2309 = vsub.f32 %v2290, %v2305
        %v2310 = vsub.f32 %v2291, %v2306
        %v2311 = vsub.f32 %v2292, %v2307
        %v2312 = vmul.f32 %v2308, %v2308
        %v2313 = vmul.f32 %v2309, %v2309
        %v2314 = vmul.f32 %v2310, %v2310
        %v2315 = vmul.f32 %v2311, %v2311
        %2316 = vadd.xlane.f32.xlu0 %v2312
        %v2317 = vpop.xlane.xlu0 %2316
        %2318 = vadd.xlane.f32.xlu0 %v2313
        %v2319 = vpop.xlane.xlu0 %2318
        %2320 = vadd.xlane.f32.xlu0 %v2314
        %v2321 = vpop.xlane.xlu0 %2320
        %2322 = vadd.xlane.f32.xlu0 %v2315
        %v2323 = vpop.xlane.xlu0 %2322
        %v2324 = vmul.f32 %v2317, %v2303
        %v2325 = vmul.f32 %v2319, %v2303
        %v2326 = vmul.f32 %v2321, %v2303
        %v2327 = vmul.f32 %v2323, %v2303
        %v2328 = vadd.f32 %v2324, 1e-12
        %v2329 = vadd.f32 %v2325, 1e-12
        %v2330 = vadd.f32 %v2326, 1e-12
        %v2331 = vadd.f32 %v2327, 1e-12
        %v2332 = vrsqrt.pop %v2328
        %v2333 = vrsqrt.pop %v2329
        %v2334 = vrsqrt.pop %v2330
        %v2335 = vrsqrt.pop %v2331
        %v2336 = vmul.f32 %v2308, %v2332
        %v2337 = vmul.f32 %v2309, %v2333
        %v2338 = vmul.f32 %v2310, %v2334
        %v2339 = vmul.f32 %v2311, %v2335
        %v2341 = vlaneseq
        %v2342 = vshrl.u32 %v2341, 7
        %v2343 = vsub.s32 0, %v2342
        %v2344 = vrot.slane %v2293, %v2343
        %v2346 = vmul.f32 %v2336, %v2344
        %v2347 = vmul.f32 %v2337, %v2344
        %v2348 = vmul.f32 %v2338, %v2344
        %v2349 = vmul.f32 %v2339, %v2344
        %v2351 = vlaneseq
        %v2352 = vshrl.u32 %v2351, 7
        %v2353 = vsub.s32 0, %v2352
        %v2354 = vrot.slane %v2294, %v2353
        %v2356 = vadd.f32 %v2346, %v2354
        %v2357 = vadd.f32 %v2347, %v2354
        %v2358 = vadd.f32 %v2348, %v2354
        %v2359 = vadd.f32 %v2349, %v2354
        %v2360 = vpack.c.bf16 %v2357, %v2356
        %v2361 = vpack.c.bf16 %v2359, %v2358
        %v2362 = vld [vmem:[%s915] sm:$0xff]
        %v2363 = vld [vmem:[%s915 + $0x8] sm:$0xff]
        %v2364 = vld [vmem:[%s915 + $0x10] sm:$0xff]
        %v2365 = vld [vmem:[%s915 + $0x18] sm:$0xff]
        %v2366 = vld [vmem:[%s915 + $0x20] sm:$0xff]
        %v2367 = vld [vmem:[%s915 + $0x28] sm:$0xff]
        %v2368 = vld [vmem:[%s915 + $0x30] sm:$0xff]
        %v2369 = vld [vmem:[%s915 + $0x38] sm:$0xff]
        %v2370 = vld [vmem:[%s915 + $0x40] sm:$0xff]
        %v2371 = vld [vmem:[%s915 + $0x48] sm:$0xff]
        %v2372 = vld [vmem:[%s915 + $0x50] sm:$0xff]
        %v2373 = vld [vmem:[%s915 + $0x58] sm:$0xff]
        %v2374 = vld [vmem:[%s915 + $0x60] sm:$0xff]
        %v2375 = vld [vmem:[%s915 + $0x68] sm:$0xff]
        %v2376 = vld [vmem:[%s915 + $0x70] sm:$0xff]
        %v2377 = vld [vmem:[%s915 + $0x78] sm:$0xff]
        %v2378 = vld [vmem:[%s915 + $0x80] sm:$0xff]
        %v2379 = vld [vmem:[%s915 + $0x88] sm:$0xff]
        %v2380 = vld [vmem:[%s915 + $0x90] sm:$0xff]
        %v2381 = vld [vmem:[%s915 + $0x98] sm:$0xff]
        %v2382 = vld [vmem:[%s915 + $0xa0] sm:$0xff]
        %v2383 = vld [vmem:[%s915 + $0xa8] sm:$0xff]
        %v2384 = vld [vmem:[%s915 + $0xb0] sm:$0xff]
        %v2385 = vld [vmem:[%s915 + $0xb8] sm:$0xff]
        %v2386 = vld [vmem:[%s915 + $0xc0] sm:$0xff]
        %v2387 = vld [vmem:[%s915 + $0xc8] sm:$0xff]
        %v2388 = vld [vmem:[%s915 + $0xd0] sm:$0xff]
        %v2389 = vld [vmem:[%s915 + $0xd8] sm:$0xff]
        %v2390 = vld [vmem:[%s915 + $0xe0] sm:$0xff]
        %v2391 = vld [vmem:[%s915 + $0xe8] sm:$0xff]
        %v2392 = vld [vmem:[%s915 + $0xf0] sm:$0xff]
        %v2393 = vld [vmem:[%s915 + $0xf8] sm:$0xff]
        %v2394 = vld [vmem:[%s924] sm:$0xf]
        %v2396 = vlaneseq
        %v2397 = vshrl.u32 %v2396, 7
        %v2398 = vsub.s32 0, %v2397
        %v2399 = vrot.slane %v2394, %v2398
        %v2400 = vlaneseq
        %v2401 = vshrl.u32 %v2400, 7
        %v2402 = vsub.s32 1, %v2401
        %v2403 = vrot.slane %v2394, %v2402
        %v2404 = vlaneseq
        %v2405 = vshrl.u32 %v2404, 7
        %v2406 = vsub.s32 2, %v2405
        %v2407 = vrot.slane %v2394, %v2406
        %v2408 = vlaneseq
        %v2409 = vshrl.u32 %v2408, 7
        %v2410 = vsub.s32 3, %v2409
        %v2411 = vrot.slane %v2394, %v2410
        %v2448 = vunpack.c.l.b16 %v2362
        %v2449 = vunpack.c.h.b16 %v2362
        %v2450 = vunpack.c.l.b16 %v2363
        %v2451 = vunpack.c.h.b16 %v2363
        %v2452 = vunpack.c.l.b16 %v2364
        %v2453 = vunpack.c.h.b16 %v2364
        %v2454 = vunpack.c.l.b16 %v2365
        %v2455 = vunpack.c.h.b16 %v2365
        %v2456 = vunpack.c.l.b16 %v2366
        %v2457 = vunpack.c.h.b16 %v2366
        %v2458 = vunpack.c.l.b16 %v2367
        %v2459 = vunpack.c.h.b16 %v2367
        %v2460 = vunpack.c.l.b16 %v2368
        %v2461 = vunpack.c.h.b16 %v2368
        %v2462 = vunpack.c.l.b16 %v2369
        %v2463 = vunpack.c.h.b16 %v2369
        %v2464 = vunpack.c.l.b16 %v2370
        %v2465 = vunpack.c.h.b16 %v2370
        %v2466 = vunpack.c.l.b16 %v2371
        %v2467 = vunpack.c.h.b16 %v2371
        %v2468 = vunpack.c.l.b16 %v2372
        %v2469 = vunpack.c.h.b16 %v2372
        %v2470 = vunpack.c.l.b16 %v2373
        %v2471 = vunpack.c.h.b16 %v2373
        %v2472 = vunpack.c.l.b16 %v2374
        %v2473 = vunpack.c.h.b16 %v2374
        %v2474 = vunpack.c.l.b16 %v2375
        %v2475 = vunpack.c.h.b16 %v2375
        %v2476 = vunpack.c.l.b16 %v2376
        %v2477 = vunpack.c.h.b16 %v2376
        %v2478 = vunpack.c.l.b16 %v2377
        %v2479 = vunpack.c.h.b16 %v2377
        %v2480 = vunpack.c.l.b16 %v2378
        %v2481 = vunpack.c.h.b16 %v2378
        %v2482 = vunpack.c.l.b16 %v2379
        %v2483 = vunpack.c.h.b16 %v2379
        %v2484 = vunpack.c.l.b16 %v2380
        %v2485 = vunpack.c.h.b16 %v2380
        %v2486 = vunpack.c.l.b16 %v2381
        %v2487 = vunpack.c.h.b16 %v2381
        %v2488 = vunpack.c.l.b16 %v2382
        %v2489 = vunpack.c.h.b16 %v2382
        %v2490 = vunpack.c.l.b16 %v2383
        %v2491 = vunpack.c.h.b16 %v2383
        %v2492 = vunpack.c.l.b16 %v2384
        %v2493 = vunpack.c.h.b16 %v2384
        %v2494 = vunpack.c.l.b16 %v2385
        %v2495 = vunpack.c.h.b16 %v2385
        %v2496 = vunpack.c.l.b16 %v2386
        %v2497 = vunpack.c.h.b16 %v2386
        %v2498 = vunpack.c.l.b16 %v2387
        %v2499 = vunpack.c.h.b16 %v2387
        %v2500 = vunpack.c.l.b16 %v2388
        %v2501 = vunpack.c.h.b16 %v2388
        %v2502 = vunpack.c.l.b16 %v2389
        %v2503 = vunpack.c.h.b16 %v2389
        %v2504 = vunpack.c.l.b16 %v2390
        %v2505 = vunpack.c.h.b16 %v2390
        %v2506 = vunpack.c.l.b16 %v2391
        %v2507 = vunpack.c.h.b16 %v2391
        %v2508 = vunpack.c.l.b16 %v2392
        %v2509 = vunpack.c.h.b16 %v2392
        %v2510 = vunpack.c.l.b16 %v2393
        %v2511 = vunpack.c.h.b16 %v2393
        %v2512 = vpack.c.b16 %v2452, %v2448
        %v2513 = vpack.c.b16 %v2453, %v2449
        %v2514 = vpack.c.b16 %v2454, %v2450
        %v2515 = vpack.c.b16 %v2455, %v2451
        %v2516 = vpack.c.b16 %v2460, %v2456
        %v2517 = vpack.c.b16 %v2461, %v2457
        %v2518 = vpack.c.b16 %v2462, %v2458
        %v2519 = vpack.c.b16 %v2463, %v2459
        %v2520 = vpack.c.b16 %v2468, %v2464
        %v2521 = vpack.c.b16 %v2469, %v2465
        %v2522 = vpack.c.b16 %v2470, %v2466
        %v2523 = vpack.c.b16 %v2471, %v2467
        %v2524 = vpack.c.b16 %v2476, %v2472
        %v2525 = vpack.c.b16 %v2477, %v2473
        %v2526 = vpack.c.b16 %v2478, %v2474
        %v2527 = vpack.c.b16 %v2479, %v2475
        %v2528 = vpack.c.b16 %v2484, %v2480
        %v2529 = vpack.c.b16 %v2485, %v2481
        %v2530 = vpack.c.b16 %v2486, %v2482
        %v2531 = vpack.c.b16 %v2487, %v2483
        %v2532 = vpack.c.b16 %v2492, %v2488
        %v2533 = vpack.c.b16 %v2493, %v2489
        %v2534 = vpack.c.b16 %v2494, %v2490
        %v2535 = vpack.c.b16 %v2495, %v2491
        %v2536 = vpack.c.b16 %v2500, %v2496
        %v2537 = vpack.c.b16 %v2501, %v2497
        %v2538 = vpack.c.b16 %v2502, %v2498
        %v2539 = vpack.c.b16 %v2503, %v2499
        %v2540 = vpack.c.b16 %v2508, %v2504
        %v2541 = vpack.c.b16 %v2509, %v2505
        %v2542 = vpack.c.b16 %v2510, %v2506
        %v2543 = vpack.c.b16 %v2511, %v2507
        %2576 = vmatprep.subr.bf16.mxu0 %v2513
        %2577 = vmatpush1.bf16.msra.mxu0 %v2512
        %2578 = vmatprep.subr.bf16.mxu0 %v2517
        %2579 = vmatpush1.bf16.msra.mxu0 %v2516
        %2580 = vmatprep.subr.bf16.mxu0 %v2521
        %2581 = vmatpush1.bf16.msra.mxu0 %v2520
        %2582 = vmatprep.subr.bf16.mxu0 %v2525
        %2583 = vmatpush1.bf16.msra.mxu0 %v2524
        %2584 = vmatprep.subr.bf16.mxu0 %v2529
        %2585 = vmatpush1.bf16.msra.mxu0 %v2528
        %2586 = vmatprep.subr.bf16.mxu0 %v2533
        %2587 = vmatpush1.bf16.msra.mxu0 %v2532
        %2588 = vmatprep.subr.bf16.mxu0 %v2537
        %2589 = vmatpush1.bf16.msra.mxu0 %v2536
        %2590 = vmatprep.subr.bf16.mxu0 %v2541
        %2591 = vmatpush1.bf16.msra.mxu0 %v2540
        %2592 = vmatprep.subr.bf16.mxu0 0
        %2593 = vmatpush1.bf16.msra.mxu0 0
        %2594 = vmatprep.subr.bf16.mxu0 0
        %2595 = vmatpush1.bf16.msra.mxu0 0
        %2596 = vmatprep.subr.bf16.mxu0 0
        %2597 = vmatpush1.bf16.msra.mxu0 0
        %2598 = vmatprep.subr.bf16.mxu0 0
        %2599 = vmatpush1.bf16.msra.mxu0 0
        %2600 = vmatprep.subr.bf16.mxu0 0
        %2601 = vmatpush1.bf16.msra.mxu0 0
        %2602 = vmatprep.subr.bf16.mxu0 0
        %2603 = vmatpush1.bf16.msra.mxu0 0
        %2604 = vmatprep.subr.bf16.mxu0 0
        %2605 = vmatpush1.bf16.msra.mxu0 0
        %2606 = vmatprep.subr.bf16.mxu0 0
        %2607 = vmatpush1.bf16.msra.mxu0 0
        %2608 = vmatprep.mubr.bf16.mxu0 0
        %2609 = vmatmul.mubr.bf16.gmra.mrb[0].mxu0 %v2360
        %v2610 = vpop.f32.mrb[0].mxu0
        %v2611 = vadd.f32 %v2399, %v2610
        %v2612 = vpop.f32.mrb[0].mxu0
        %v2613 = vadd.f32 %v2403, %v2612
        %v2614 = vpop.f32.mrb[0].mxu0
        %v2615 = vadd.f32 %v2399, %v2614
        %v2616 = vpop.f32.mrb[0].mxu0
        %v2617 = vadd.f32 %v2403, %v2616
        %2618 = vmatprep.mubr.bf16.mxu0 0
        %2619 = vmatmul.mubr.bf16.gmra.mrb[0].mxu0 %v2361
        %v2620 = vpop.f32.mrb[0].mxu0
        %v2621 = vadd.f32 %v2399, %v2620
        %v2622 = vpop.f32.mrb[0].mxu0
        %v2623 = vadd.f32 %v2403, %v2622
        %v2624 = vpop.f32.mrb[0].mxu0
        %v2625 = vadd.f32 %v2399, %v2624
        %v2626 = vpop.f32.mrb[0].mxu0
        %v2627 = vadd.f32 %v2403, %v2626
        %2628 = vdwg.mxu0
        %2629 = vmatprep.subr.bf16.mxu0 %v2515
        %2630 = vmatpush1.bf16.msra.mxu0 %v2514
        %2631 = vmatprep.subr.bf16.mxu0 %v2519
        %2632 = vmatpush1.bf16.msra.mxu0 %v2518
        %2633 = vmatprep.subr.bf16.mxu0 %v2523
        %2634 = vmatpush1.bf16.msra.mxu0 %v2522
        %2635 = vmatprep.subr.bf16.mxu0 %v2527
        %2636 = vmatpush1.bf16.msra.mxu0 %v2526
        %2637 = vmatprep.subr.bf16.mxu0 %v2531
        %2638 = vmatpush1.bf16.msra.mxu0 %v2530
        %2639 = vmatprep.subr.bf16.mxu0 %v2535
        %2640 = vmatpush1.bf16.msra.mxu0 %v2534
        %2641 = vmatprep.subr.bf16.mxu0 %v2539
        %2642 = vmatpush1.bf16.msra.mxu0 %v2538
        %2643 = vmatprep.subr.bf16.mxu0 %v2543
        %2644 = vmatpush1.bf16.msra.mxu0 %v2542
        %2645 = vmatprep.subr.bf16.mxu0 0
        %2646 = vmatpush1.bf16.msra.mxu0 0
        %2647 = vmatprep.subr.bf16.mxu0 0
        %2648 = vmatpush1.bf16.msra.mxu0 0
        %2649 = vmatprep.subr.bf16.mxu0 0
        %2650 = vmatpush1.bf16.msra.mxu0 0
        %2651 = vmatprep.subr.bf16.mxu0 0
        %2652 = vmatpush1.bf16.msra.mxu0 0
        %2653 = vmatprep.subr.bf16.mxu0 0
        %2654 = vmatpush1.bf16.msra.mxu0 0
        %2655 = vmatprep.subr.bf16.mxu0 0
        %2656 = vmatpush1.bf16.msra.mxu0 0
        %2657 = vmatprep.subr.bf16.mxu0 0
        %2658 = vmatpush1.bf16.msra.mxu0 0
        %2659 = vmatprep.subr.bf16.mxu0 0
        %2660 = vmatpush1.bf16.msra.mxu0 0
        %2661 = vmatprep.mubr.bf16.mxu0 0
        %2662 = vmatmul.mubr.bf16.gmra.mrb[0].mxu0 %v2360
        %v2663 = vpop.f32.mrb[0].mxu0
        %v2664 = vadd.f32 %v2407, %v2663
        %v2665 = vpop.f32.mrb[0].mxu0
        %v2666 = vadd.f32 %v2411, %v2665
        %v2667 = vpop.f32.mrb[0].mxu0
        %v2668 = vadd.f32 %v2407, %v2667
        %v2669 = vpop.f32.mrb[0].mxu0
        %v2670 = vadd.f32 %v2411, %v2669
        %2671 = vmatprep.mubr.bf16.mxu0 0
        %2672 = vmatmul.mubr.bf16.gmra.mrb[0].mxu0 %v2361
        %v2673 = vpop.f32.mrb[0].mxu0
        %v2674 = vadd.f32 %v2407, %v2673
        %v2675 = vpop.f32.mrb[0].mxu0
        %v2676 = vadd.f32 %v2411, %v2675
        %v2677 = vpop.f32.mrb[0].mxu0
        %v2678 = vadd.f32 %v2407, %v2677
        %v2679 = vpop.f32.mrb[0].mxu0
        %v2680 = vadd.f32 %v2411, %v2679
        %2681 = vdwg.mxu0
        %v2682 = vmul.f32 %v2611, 0.5
        %v2683 = vmul.f32 %v2613, 0.5
        %v2684 = vmul.f32 %v2664, 0.5
        %v2685 = vmul.f32 %v2666, 0.5
        %v2686 = vmul.f32 %v2615, 0.5
        %v2687 = vmul.f32 %v2617, 0.5
        %v2688 = vmul.f32 %v2668, 0.5
        %v2689 = vmul.f32 %v2670, 0.5
        %v2690 = vmul.f32 %v2621, 0.5
        %v2691 = vmul.f32 %v2623, 0.5
        %v2692 = vmul.f32 %v2674, 0.5
        %v2693 = vmul.f32 %v2676, 0.5
        %v2694 = vmul.f32 %v2625, 0.5
        %v2695 = vmul.f32 %v2627, 0.5
        %v2696 = vmul.f32 %v2678, 0.5
        %v2697 = vmul.f32 %v2680, 0.5
        %v2698 = vmul.f32 %v2611, 0.044715
        %v2699 = vmul.f32 %v2613, 0.044715
        %v2700 = vmul.f32 %v2664, 0.044715
        %v2701 = vmul.f32 %v2666, 0.044715
        %v2702 = vmul.f32 %v2615, 0.044715
        %v2703 = vmul.f32 %v2617, 0.044715
        %v2704 = vmul.f32 %v2668, 0.044715
        %v2705 = vmul.f32 %v2670, 0.044715
        %v2706 = vmul.f32 %v2621, 0.044715
        %v2707 = vmul.f32 %v2623, 0.044715
        %v2708 = vmul.f32 %v2674, 0.044715
        %v2709 = vmul.f32 %v2676, 0.044715
        %v2710 = vmul.f32 %v2625, 0.044715
        %v2711 = vmul.f32 %v2627, 0.044715
        %v2712 = vmul.f32 %v2678, 0.044715
        %v2713 = vmul.f32 %v2680, 0.044715
        %v2714 = vmul.f32 %v2698, %v2611
        %v2715 = vmul.f32 %v2699, %v2613
        %v2716 = vmul.f32 %v2700, %v2664
        %v2717 = vmul.f32 %v2701, %v2666
        %v2718 = vmul.f32 %v2702, %v2615
        %v2719 = vmul.f32 %v2703, %v2617
        %v2720 = vmul.f32 %v2704, %v2668
        %v2721 = vmul.f32 %v2705, %v2670
        %v2722 = vmul.f32 %v2706, %v2621
        %v2723 = vmul.f32 %v2707, %v2623
        %v2724 = vmul.f32 %v2708, %v2674
        %v2725 = vmul.f32 %v2709, %v2676
        %v2726 = vmul.f32 %v2710, %v2625
        %v2727 = vmul.f32 %v2711, %v2627
        %v2728 = vmul.f32 %v2712, %v2678
        %v2729 = vmul.f32 %v2713, %v2680
        %v2730 = vmul.f32 %v2714, %v2611
        %v2731 = vmul.f32 %v2715, %v2613
        %v2732 = vmul.f32 %v2716, %v2664
        %v2733 = vmul.f32 %v2717, %v2666
        %v2734 = vmul.f32 %v2718, %v2615
        %v2735 = vmul.f32 %v2719, %v2617
        %v2736 = vmul.f32 %v2720, %v2668
        %v2737 = vmul.f32 %v2721, %v2670
        %v2738 = vmul.f32 %v2722, %v2621
        %v2739 = vmul.f32 %v2723, %v2623
        %v2740 = vmul.f32 %v2724, %v2674
        %v2741 = vmul.f32 %v2725, %v2676
        %v2742 = vmul.f32 %v2726, %v2625
        %v2743 = vmul.f32 %v2727, %v2627
        %v2744 = vmul.f32 %v2728, %v2678
        %v2745 = vmul.f32 %v2729, %v2680
        %v2746 = vadd.f32 %v2611, %v2730
        %v2747 = vadd.f32 %v2613, %v2731
        %v2748 = vadd.f32 %v2664, %v2732
        %v2749 = vadd.f32 %v2666, %v2733
        %v2750 = vadd.f32 %v2615, %v2734
        %v2751 = vadd.f32 %v2617, %v2735
        %v2752 = vadd.f32 %v2668, %v2736
        %v2753 = vadd.f32 %v2670, %v2737
        %v2754 = vadd.f32 %v2621, %v2738
        %v2755 = vadd.f32 %v2623, %v2739
        %v2756 = vadd.f32 %v2674, %v2740
        %v2757 = vadd.f32 %v2676, %v2741
        %v2758 = vadd.f32 %v2625, %v2742
        %v2759 = vadd.f32 %v2627, %v2743
        %v2760 = vadd.f32 %v2678, %v2744
        %v2761 = vadd.f32 %v2680, %v2745
        %v2762 = vmul.f32 %v2746, 0.7978846
        %v2763 = vmul.f32 %v2747, 0.7978846
        %v2764 = vmul.f32 %v2748, 0.7978846
        %v2765 = vmul.f32 %v2749, 0.7978846
        %v2766 = vmul.f32 %v2750, 0.7978846
        %v2767 = vmul.f32 %v2751, 0.7978846
        %v2768 = vmul.f32 %v2752, 0.7978846
        %v2769 = vmul.f32 %v2753, 0.7978846
        %v2770 = vmul.f32 %v2754, 0.7978846
        %v2771 = vmul.f32 %v2755, 0.7978846
        %v2772 = vmul.f32 %v2756, 0.7978846
        %v2773 = vmul.f32 %v2757, 0.7978846
        %v2774 = vmul.f32 %v2758, 0.7978846
        %v2775 = vmul.f32 %v2759, 0.7978846
        %v2776 = vmul.f32 %v2760, 0.7978846
        %v2777 = vmul.f32 %v2761, 0.7978846
        %v2778 = vtanh.pop %v2762
        %v2779 = vtanh.pop %v2763
        %v2780 = vtanh.pop %v2764
        %v2781 = vtanh.pop %v2765
        %v2782 = vtanh.pop %v2766
        %v2783 = vtanh.pop %v2767
        %v2784 = vtanh.pop %v2768
        %v2785 = vtanh.pop %v2769
        %v2786 = vtanh.pop %v2770
        %v2787 = vtanh.pop %v2771
        %v2788 = vtanh.pop %v2772
        %v2789 = vtanh.pop %v2773
        %v2790 = vtanh.pop %v2774
        %v2791 = vtanh.pop %v2775
        %v2792 = vtanh.pop %v2776
        %v2793 = vtanh.pop %v2777
        %v2794 = vadd.f32 %v2778, 1.0
        %v2795 = vadd.f32 %v2779, 1.0
        %v2796 = vadd.f32 %v2780, 1.0
        %v2797 = vadd.f32 %v2781, 1.0
        %v2798 = vadd.f32 %v2782, 1.0
        %v2799 = vadd.f32 %v2783, 1.0
        %v2800 = vadd.f32 %v2784, 1.0
        %v2801 = vadd.f32 %v2785, 1.0
        %v2802 = vadd.f32 %v2786, 1.0
        %v2803 = vadd.f32 %v2787, 1.0
        %v2804 = vadd.f32 %v2788, 1.0
        %v2805 = vadd.f32 %v2789, 1.0
        %v2806 = vadd.f32 %v2790, 1.0
        %v2807 = vadd.f32 %v2791, 1.0
        %v2808 = vadd.f32 %v2792, 1.0
        %v2809 = vadd.f32 %v2793, 1.0
        %v2810 = vmul.f32 %v2682, %v2794
        %v2811 = vmul.f32 %v2683, %v2795
        %v2812 = vmul.f32 %v2684, %v2796
        %v2813 = vmul.f32 %v2685, %v2797
        %v2814 = vmul.f32 %v2686, %v2798
        %v2815 = vmul.f32 %v2687, %v2799
        %v2816 = vmul.f32 %v2688, %v2800
        %v2817 = vmul.f32 %v2689, %v2801
        %v2818 = vmul.f32 %v2690, %v2802
        %v2819 = vmul.f32 %v2691, %v2803
        %v2820 = vmul.f32 %v2692, %v2804
        %v2821 = vmul.f32 %v2693, %v2805
        %v2822 = vmul.f32 %v2694, %v2806
        %v2823 = vmul.f32 %v2695, %v2807
        %v2824 = vmul.f32 %v2696, %v2808
        %v2825 = vmul.f32 %v2697, %v2809
        %v2826 = vpack.c.bf16 %v2814, %v2810
        %v2827 = vpack.c.bf16 %v2815, %v2811
        %v2828 = vpack.c.bf16 %v2816, %v2812
        %v2829 = vpack.c.bf16 %v2817, %v2813
        %v2830 = vpack.c.bf16 %v2822, %v2818
        %v2831 = vpack.c.bf16 %v2823, %v2819
        %v2832 = vpack.c.bf16 %v2824, %v2820
        %v2833 = vpack.c.bf16 %v2825, %v2821
        %v2834 = vld [vmem:[%s933] sm:$0xf]
        %v2835 = vld [vmem:[%s933 + $0x4] sm:$0xf]
        %v2836 = vld [vmem:[%s933 + $0x8] sm:$0xf]
        %v2837 = vld [vmem:[%s933 + $0xc] sm:$0xf]
        %v2838 = vld [vmem:[%s933 + $0x10] sm:$0xf]
        %v2839 = vld [vmem:[%s933 + $0x14] sm:$0xf]
        %v2840 = vld [vmem:[%s933 + $0x18] sm:$0xf]
        %v2841 = vld [vmem:[%s933 + $0x1c] sm:$0xf]
        %v2842 = vld [vmem:[%s933 + $0x20] sm:$0xf]
        %v2843 = vld [vmem:[%s933 + $0x24] sm:$0xf]
        %v2844 = vld [vmem:[%s933 + $0x28] sm:$0xf]
        %v2845 = vld [vmem:[%s933 + $0x2c] sm:$0xf]
        %v2846 = vld [vmem:[%s933 + $0x30] sm:$0xf]
        %v2847 = vld [vmem:[%s933 + $0x34] sm:$0xf]
        %v2848 = vld [vmem:[%s933 + $0x38] sm:$0xf]
        %v2849 = vld [vmem:[%s933 + $0x3c] sm:$0xf]
        %v2850 = vld [vmem:[%s933 + $0x40] sm:$0xf]
        %v2851 = vld [vmem:[%s933 + $0x44] sm:$0xf]
        %v2852 = vld [vmem:[%s933 + $0x48] sm:$0xf]
        %v2853 = vld [vmem:[%s933 + $0x4c] sm:$0xf]
        %v2854 = vld [vmem:[%s933 + $0x50] sm:$0xf]
        %v2855 = vld [vmem:[%s933 + $0x54] sm:$0xf]
        %v2856 = vld [vmem:[%s933 + $0x58] sm:$0xf]
        %v2857 = vld [vmem:[%s933 + $0x5c] sm:$0xf]
        %v2858 = vld [vmem:[%s933 + $0x60] sm:$0xf]
        %v2859 = vld [vmem:[%s933 + $0x64] sm:$0xf]
        %v2860 = vld [vmem:[%s933 + $0x68] sm:$0xf]
        %v2861 = vld [vmem:[%s933 + $0x6c] sm:$0xf]
        %v2862 = vld [vmem:[%s933 + $0x70] sm:$0xf]
        %v2863 = vld [vmem:[%s933 + $0x74] sm:$0xf]
        %v2864 = vld [vmem:[%s933 + $0x78] sm:$0xf]
        %v2865 = vld [vmem:[%s933 + $0x7c] sm:$0xf]
        %v2866 = vld [vmem:[%s933 + $0x80] sm:$0xf]
        %v2867 = vld [vmem:[%s933 + $0x84] sm:$0xf]
        %v2868 = vld [vmem:[%s933 + $0x88] sm:$0xf]
        %v2869 = vld [vmem:[%s933 + $0x8c] sm:$0xf]
        %v2870 = vld [vmem:[%s933 + $0x90] sm:$0xf]
        %v2871 = vld [vmem:[%s933 + $0x94] sm:$0xf]
        %v2872 = vld [vmem:[%s933 + $0x98] sm:$0xf]
        %v2873 = vld [vmem:[%s933 + $0x9c] sm:$0xf]
        %v2874 = vld [vmem:[%s933 + $0xa0] sm:$0xf]
        %v2875 = vld [vmem:[%s933 + $0xa4] sm:$0xf]
        %v2876 = vld [vmem:[%s933 + $0xa8] sm:$0xf]
        %v2877 = vld [vmem:[%s933 + $0xac] sm:$0xf]
        %v2878 = vld [vmem:[%s933 + $0xb0] sm:$0xf]
        %v2879 = vld [vmem:[%s933 + $0xb4] sm:$0xf]
        %v2880 = vld [vmem:[%s933 + $0xb8] sm:$0xf]
        %v2881 = vld [vmem:[%s933 + $0xbc] sm:$0xf]
        %v2882 = vld [vmem:[%s933 + $0xc0] sm:$0xf]
        %v2883 = vld [vmem:[%s933 + $0xc4] sm:$0xf]
        %v2884 = vld [vmem:[%s933 + $0xc8] sm:$0xf]
        %v2885 = vld [vmem:[%s933 + $0xcc] sm:$0xf]
        %v2886 = vld [vmem:[%s933 + $0xd0] sm:$0xf]
        %v2887 = vld [vmem:[%s933 + $0xd4] sm:$0xf]
        %v2888 = vld [vmem:[%s933 + $0xd8] sm:$0xf]
        %v2889 = vld [vmem:[%s933 + $0xdc] sm:$0xf]
        %v2890 = vld [vmem:[%s933 + $0xe0] sm:$0xf]
        %v2891 = vld [vmem:[%s933 + $0xe4] sm:$0xf]
        %v2892 = vld [vmem:[%s933 + $0xe8] sm:$0xf]
        %v2893 = vld [vmem:[%s933 + $0xec] sm:$0xf]
        %v2894 = vld [vmem:[%s933 + $0xf0] sm:$0xf]
        %v2895 = vld [vmem:[%s933 + $0xf4] sm:$0xf]
        %v2896 = vld [vmem:[%s933 + $0xf8] sm:$0xf]
        %v2897 = vld [vmem:[%s933 + $0xfc] sm:$0xf]
        %v2898 = vld [vmem:[%s941] sm:$0x1]
        %v2900 = vlaneseq
        %v2901 = vshrl.u32 %v2900, 7
        %v2902 = vsub.s32 0, %v2901
        %v2903 = vrot.slane %v2898, %v2902
        %v2969 = vunpack.c.l.b16 %v2834
        %v2970 = vunpack.c.l.b16 %v2835
        %v2971 = vunpack.c.l.b16 %v2836
        %v2972 = vunpack.c.l.b16 %v2837
        %v2973 = vunpack.c.l.b16 %v2838
        %v2974 = vunpack.c.l.b16 %v2839
        %v2975 = vunpack.c.l.b16 %v2840
        %v2976 = vunpack.c.l.b16 %v2841
        %v2977 = vunpack.c.l.b16 %v2842
        %v2978 = vunpack.c.l.b16 %v2843
        %v2979 = vunpack.c.l.b16 %v2844
        %v2980 = vunpack.c.l.b16 %v2845
        %v2981 = vunpack.c.l.b16 %v2846
        %v2982 = vunpack.c.l.b16 %v2847
        %v2983 = vunpack.c.l.b16 %v2848
        %v2984 = vunpack.c.l.b16 %v2849
        %v2985 = vunpack.c.l.b16 %v2850
        %v2986 = vunpack.c.l.b16 %v2851
        %v2987 = vunpack.c.l.b16 %v2852
        %v2988 = vunpack.c.l.b16 %v2853
        %v2989 = vunpack.c.l.b16 %v2854
        %v2990 = vunpack.c.l.b16 %v2855
        %v2991 = vunpack.c.l.b16 %v2856
        %v2992 = vunpack.c.l.b16 %v2857
        %v2993 = vunpack.c.l.b16 %v2858
        %v2994 = vunpack.c.l.b16 %v2859
        %v2995 = vunpack.c.l.b16 %v2860
        %v2996 = vunpack.c.l.b16 %v2861
        %v2997 = vunpack.c.l.b16 %v2862
        %v2998 = vunpack.c.l.b16 %v2863
        %v2999 = vunpack.c.l.b16 %v2864
        %v3000 = vunpack.c.l.b16 %v2865
        %v3001 = vunpack.c.l.b16 %v2866
        %v3002 = vunpack.c.l.b16 %v2867
        %v3003 = vunpack.c.l.b16 %v2868
        %v3004 = vunpack.c.l.b16 %v2869
        %v3005 = vunpack.c.l.b16 %v2870
        %v3006 = vunpack.c.l.b16 %v2871
        %v3007 = vunpack.c.l.b16 %v2872
        %v3008 = vunpack.c.l.b16 %v2873
        %v3009 = vunpack.c.l.b16 %v2874
        %v3010 = vunpack.c.l.b16 %v2875
        %v3011 = vunpack.c.l.b16 %v2876
        %v3012 = vunpack.c.l.b16 %v2877
        %v3013 = vunpack.c.l.b16 %v2878
        %v3014 = vunpack.c.l.b16 %v2879
        %v3015 = vunpack.c.l.b16 %v2880
        %v3016 = vunpack.c.l.b16 %v2881
        %v3017 = vunpack.c.l.b16 %v2882
        %v3018 = vunpack.c.l.b16 %v2883
        %v3019 = vunpack.c.l.b16 %v2884
        %v3020 = vunpack.c.l.b16 %v2885
        %v3021 = vunpack.c.l.b16 %v2886
        %v3022 = vunpack.c.l.b16 %v2887
        %v3023 = vunpack.c.l.b16 %v2888
        %v3024 = vunpack.c.l.b16 %v2889
        %v3025 = vunpack.c.l.b16 %v2890
        %v3026 = vunpack.c.l.b16 %v2891
        %v3027 = vunpack.c.l.b16 %v2892
        %v3028 = vunpack.c.l.b16 %v2893
        %v3029 = vunpack.c.l.b16 %v2894
        %v3030 = vunpack.c.l.b16 %v2895
        %v3031 = vunpack.c.l.b16 %v2896
        %v3032 = vunpack.c.l.b16 %v2897
        %v3033 = vpack.c.b16 %v2970, %v2969
        %v3034 = vpack.c.b16 %v2972, %v2971
        %v3035 = vpack.c.b16 %v2974, %v2973
        %v3036 = vpack.c.b16 %v2976, %v2975
        %v3037 = vpack.c.b16 %v2978, %v2977
        %v3038 = vpack.c.b16 %v2980, %v2979
        %v3039 = vpack.c.b16 %v2982, %v2981
        %v3040 = vpack.c.b16 %v2984, %v2983
        %v3041 = vpack.c.b16 %v2986, %v2985
        %v3042 = vpack.c.b16 %v2988, %v2987
        %v3043 = vpack.c.b16 %v2990, %v2989
        %v3044 = vpack.c.b16 %v2992, %v2991
        %v3045 = vpack.c.b16 %v2994, %v2993
        %v3046 = vpack.c.b16 %v2996, %v2995
        %v3047 = vpack.c.b16 %v2998, %v2997
        %v3048 = vpack.c.b16 %v3000, %v2999
        %v3049 = vpack.c.b16 %v3002, %v3001
        %v3050 = vpack.c.b16 %v3004, %v3003
        %v3051 = vpack.c.b16 %v3006, %v3005
        %v3052 = vpack.c.b16 %v3008, %v3007
        %v3053 = vpack.c.b16 %v3010, %v3009
        %v3054 = vpack.c.b16 %v3012, %v3011
        %v3055 = vpack.c.b16 %v3014, %v3013
        %v3056 = vpack.c.b16 %v3016, %v3015
        %v3057 = vpack.c.b16 %v3018, %v3017
        %v3058 = vpack.c.b16 %v3020, %v3019
        %v3059 = vpack.c.b16 %v3022, %v3021
        %v3060 = vpack.c.b16 %v3024, %v3023
        %v3061 = vpack.c.b16 %v3026, %v3025
        %v3062 = vpack.c.b16 %v3028, %v3027
        %v3063 = vpack.c.b16 %v3030, %v3029
        %v3064 = vpack.c.b16 %v3032, %v3031
        %3097 = vmatprep.subr.bf16.mxu0 0
        %3098 = vmatpush1.bf16.msra.mxu0 %v3033
        %3099 = vmatprep.subr.bf16.mxu0 0
        %3100 = vmatpush1.bf16.msra.mxu0 %v3034
        %3101 = vmatprep.subr.bf16.mxu0 0
        %3102 = vmatpush1.bf16.msra.mxu0 %v3035
        %3103 = vmatprep.subr.bf16.mxu0 0
        %3104 = vmatpush1.bf16.msra.mxu0 %v3036
        %3105 = vmatprep.subr.bf16.mxu0 0
        %3106 = vmatpush1.bf16.msra.mxu0 %v3037
        %3107 = vmatprep.subr.bf16.mxu0 0
        %3108 = vmatpush1.bf16.msra.mxu0 %v3038
        %3109 = vmatprep.subr.bf16.mxu0 0
        %3110 = vmatpush1.bf16.msra.mxu0 %v3039
        %3111 = vmatprep.subr.bf16.mxu0 0
        %3112 = vmatpush1.bf16.msra.mxu0 %v3040
        %3113 = vmatprep.subr.bf16.mxu0 0
        %3114 = vmatpush1.bf16.msra.mxu0 %v3041
        %3115 = vmatprep.subr.bf16.mxu0 0
        %3116 = vmatpush1.bf16.msra.mxu0 %v3042
        %3117 = vmatprep.subr.bf16.mxu0 0
        %3118 = vmatpush1.bf16.msra.mxu0 %v3043
        %3119 = vmatprep.subr.bf16.mxu0 0
        %3120 = vmatpush1.bf16.msra.mxu0 %v3044
        %3121 = vmatprep.subr.bf16.mxu0 0
        %3122 = vmatpush1.bf16.msra.mxu0 %v3045
        %3123 = vmatprep.subr.bf16.mxu0 0
        %3124 = vmatpush1.bf16.msra.mxu0 %v3046
        %3125 = vmatprep.subr.bf16.mxu0 0
        %3126 = vmatpush1.bf16.msra.mxu0 %v3047
        %3127 = vmatprep.subr.bf16.mxu0 0
        %3128 = vmatpush1.bf16.msra.mxu0 %v3048
        %3129 = vmatprep.mubr.bf16.mxu0 %v2827
        %3130 = vmatmul.mubr.bf16.gmra.mrb[0].mxu0 %v2826
        %v3131 = vpop.f32.mrb[0].mxu0
        %v3132 = vadd.f32 %v2903, %v3131
        %v3133 = vpop.f32.mrb[0].mxu0
        %v3134 = vpop.f32.mrb[0].mxu0
        %v3135 = vadd.f32 %v2903, %v3134
        %v3136 = vpop.f32.mrb[0].mxu0
        %3137 = vmatprep.mubr.bf16.mxu0 %v2831
        %3138 = vmatmul.mubr.bf16.gmra.mrb[0].mxu0 %v2830
        %v3139 = vpop.f32.mrb[0].mxu0
        %v3140 = vadd.f32 %v2903, %v3139
        %v3141 = vpop.f32.mrb[0].mxu0
        %v3142 = vpop.f32.mrb[0].mxu0
        %v3143 = vadd.f32 %v2903, %v3142
        %v3144 = vpop.f32.mrb[0].mxu0
        %3145 = vdwg.mxu0
        %3146 = vmatprep.subr.bf16.mxu0 0
        %3147 = vmatpush1.bf16.msra.mxu0 %v3049
        %3148 = vmatprep.subr.bf16.mxu0 0
        %3149 = vmatpush1.bf16.msra.mxu0 %v3050
        %3150 = vmatprep.subr.bf16.mxu0 0
        %3151 = vmatpush1.bf16.msra.mxu0 %v3051
        %3152 = vmatprep.subr.bf16.mxu0 0
        %3153 = vmatpush1.bf16.msra.mxu0 %v3052
        %3154 = vmatprep.subr.bf16.mxu0 0
        %3155 = vmatpush1.bf16.msra.mxu0 %v3053
        %3156 = vmatprep.subr.bf16.mxu0 0
        %3157 = vmatpush1.bf16.msra.mxu0 %v3054
        %3158 = vmatprep.subr.bf16.mxu0 0
        %3159 = vmatpush1.bf16.msra.mxu0 %v3055
        %3160 = vmatprep.subr.bf16.mxu0 0
        %3161 = vmatpush1.bf16.msra.mxu0 %v3056
        %3162 = vmatprep.subr.bf16.mxu0 0
        %3163 = vmatpush1.bf16.msra.mxu0 %v3057
        %3164 = vmatprep.subr.bf16.mxu0 0
        %3165 = vmatpush1.bf16.msra.mxu0 %v3058
        %3166 = vmatprep.subr.bf16.mxu0 0
        %3167 = vmatpush1.bf16.msra.mxu0 %v3059
        %3168 = vmatprep.subr.bf16.mxu0 0
        %3169 = vmatpush1.bf16.msra.mxu0 %v3060
        %3170 = vmatprep.subr.bf16.mxu0 0
        %3171 = vmatpush1.bf16.msra.mxu0 %v3061
        %3172 = vmatprep.subr.bf16.mxu0 0
        %3173 = vmatpush1.bf16.msra.mxu0 %v3062
        %3174 = vmatprep.subr.bf16.mxu0 0
        %3175 = vmatpush1.bf16.msra.mxu0 %v3063
        %3176 = vmatprep.subr.bf16.mxu0 0
        %3177 = vmatpush1.bf16.msra.mxu0 %v3064
        %3178 = vmatprep.mubr.bf16.mxu0 %v2829
        %3179 = vmatmul.mubr.bf16.gmra.mrb[0].mxu0 %v2828
        %v3180 = vpop.f32.mrb[0].mxu0
        %v3181 = vadd.f32 %v3132, %v3180
        %v3182 = vpop.f32.mrb[0].mxu0
        %v3183 = vpop.f32.mrb[0].mxu0
        %v3184 = vadd.f32 %v3135, %v3183
        %v3185 = vpop.f32.mrb[0].mxu0
        %3186 = vmatprep.mubr.bf16.mxu0 %v2833
        %3187 = vmatmul.mubr.bf16.gmra.mrb[0].mxu0 %v2832
        %v3188 = vpop.f32.mrb[0].mxu0
        %v3189 = vadd.f32 %v3140, %v3188
        %v3190 = vpop.f32.mrb[0].mxu0
        %v3191 = vpop.f32.mrb[0].mxu0
        %v3192 = vadd.f32 %v3143, %v3191
        %v3193 = vpop.f32.mrb[0].mxu0
        %3194 = vdwg.mxu0
        %v3195 = vadd.f32 %v3181, %v2356
        %v3196 = vadd.f32 %v3184, %v2357
        %v3197 = vadd.f32 %v3189, %v2358
        %v3198 = vadd.f32 %v3192, %v2359
        %v3199 = vld [vmem:[%s949] sm:$0x1]
        %v3200 = vld [vmem:[%s957] sm:$0x1]
        %3201 = vadd.xlane.f32.xlu0 %v3195
        %v3202 = vpop.xlane.xlu0 %3201
        %3203 = vadd.xlane.f32.xlu0 %v3196
        %v3204 = vpop.xlane.xlu0 %3203
        %3205 = vadd.xlane.f32.xlu0 %v3197
        %v3206 = vpop.xlane.xlu0 %3205
        %3207 = vadd.xlane.f32.xlu0 %v3198
        %v3208 = vpop.xlane.xlu0 %3207
        %v3209 = vmul.f32 %v3202, %v2303
        %v3210 = vmul.f32 %v3204, %v2303
        %v3211 = vmul.f32 %v3206, %v2303
        %v3212 = vmul.f32 %v3208, %v2303
        %v3213 = vsub.f32 %v3195, %v3209
        %v3214 = vsub.f32 %v3196, %v3210
        %v3215 = vsub.f32 %v3197, %v3211
        %v3216 = vsub.f32 %v3198, %v3212
        %v3217 = vmul.f32 %v3213, %v3213
        %v3218 = vmul.f32 %v3214, %v3214
        %v3219 = vmul.f32 %v3215, %v3215
        %v3220 = vmul.f32 %v3216, %v3216
        %3221 = vadd.xlane.f32.xlu0 %v3217
        %v3222 = vpop.xlane.xlu0 %3221
        %3223 = vadd.xlane.f32.xlu0 %v3218
        %v3224 = vpop.xlane.xlu0 %3223
        %3225 = vadd.xlane.f32.xlu0 %v3219
        %v3226 = vpop.xlane.xlu0 %3225
        %3227 = vadd.xlane.f32.xlu0 %v3220
        %v3228 = vpop.xlane.xlu0 %3227
        %v3229 = vmul.f32 %v3222, %v2303
        %v3230 = vmul.f32 %v3224, %v2303
        %v3231 = vmul.f32 %v3226, %v2303
        %v3232 = vmul.f32 %v3228, %v2303
        %v3233 = vadd.f32 %v3229, 1e-12
        %v3234 = vadd.f32 %v3230, 1e-12
        %v3235 = vadd.f32 %v3231, 1e-12
        %v3236 = vadd.f32 %v3232, 1e-12
        %v3237 = vrsqrt.pop %v3233
        %v3238 = vrsqrt.pop %v3234
        %v3239 = vrsqrt.pop %v3235
        %v3240 = vrsqrt.pop %v3236
        %v3241 = vmul.f32 %v3213, %v3237
        %v3242 = vmul.f32 %v3214, %v3238
        %v3243 = vmul.f32 %v3215, %v3239
        %v3244 = vmul.f32 %v3216, %v3240
        %v3246 = vlaneseq
        %v3247 = vshrl.u32 %v3246, 7
        %v3248 = vsub.s32 0, %v3247
        %v3249 = vrot.slane %v3199, %v3248
        %v3251 = vmul.f32 %v3241, %v3249
        %v3252 = vmul.f32 %v3242, %v3249
        %v3253 = vmul.f32 %v3243, %v3249
        %v3254 = vmul.f32 %v3244, %v3249
        %v3256 = vlaneseq
        %v3257 = vshrl.u32 %v3256, 7
        %v3258 = vsub.s32 0, %v3257
        %v3259 = vrot.slane %v3200, %v3258
        %v3261 = vadd.f32 %v3251, %v3259
        %v3262 = vadd.f32 %v3252, %v3259
        %v3263 = vadd.f32 %v3253, %v3259
        %v3264 = vadd.f32 %v3254, %v3259
        %3265 = vst [vmem:[#allocation2] sm:$0xff] %v3261
        %3266 = vst [vmem:[#allocation2 + $0x8] sm:$0xff] %v3262
        %3267 = vst [vmem:[#allocation2 + $0x10] sm:$0xff] %v3263
        %3268 = vst [vmem:[#allocation2 + $0x18] sm:$0xff] %v3264
        %p3269 = scmp.eq.s32.totalorder %s53, 1
        // Predicated region
        $region169: #{tpu_custom_call.1} parent=99 // pred_check
          %p3270 = pneg %p3269
        $region170: #{tpu_custom_call.1} parent=99 // pred_check_branch
          %3272 = sbr.rel (%p3270) target = $region172
        $region171: #{tpu_custom_call.1} parent=99 // pred_region
          %v3273 = vld [vmem:[#allocation2] sm:$0x1]
          %v3274 = vld [vmem:[#allocation2 + $0x10] sm:$0x1]
          %v3276 = vrot.slane %v3274, 7
          %vm3278 = vcmask 1040384
          %v3279 = vsel %vm3278, %v3273, %v3276
          %v3280 = vpack.c.bf16 %v3279, %v3279
          %v3281 = vld [vmem:[#allocation27] sm:$0xf]
          %v3282 = vld [vmem:[#allocation27 + $0x4] sm:$0xf]
          %v3283 = vld [vmem:[#allocation27 + $0x8] sm:$0xf]
          %v3284 = vld [vmem:[#allocation27 + $0xc] sm:$0xf]
          %v3285 = vld [vmem:[#allocation27 + $0x10] sm:$0xf]
          %v3286 = vld [vmem:[#allocation27 + $0x14] sm:$0xf]
          %v3287 = vld [vmem:[#allocation27 + $0x18] sm:$0xf]
          %v3288 = vld [vmem:[#allocation27 + $0x1c] sm:$0xf]
          %v3289 = vld [vmem:[#allocation27 + $0x20] sm:$0xf]
          %v3290 = vld [vmem:[#allocation27 + $0x24] sm:$0xf]
          %v3291 = vld [vmem:[#allocation27 + $0x28] sm:$0xf]
          %v3292 = vld [vmem:[#allocation27 + $0x2c] sm:$0xf]
          %v3293 = vld [vmem:[#allocation27 + $0x30] sm:$0xf]
          %v3294 = vld [vmem:[#allocation27 + $0x34] sm:$0xf]
          %v3295 = vld [vmem:[#allocation27 + $0x38] sm:$0xf]
          %v3296 = vld [vmem:[#allocation27 + $0x3c] sm:$0xf]
          %v3297 = vld [vmem:[#allocation28] sm:$0x1]
          %v3299 = vlaneseq
          %v3300 = vshrl.u32 %v3299, 7
          %v3301 = vsub.s32 0, %v3300
          %v3302 = vrot.slane %v3297, %v3301
          %v3320 = vunpack.c.l.b16 %v3281
          %v3321 = vunpack.c.l.b16 %v3282
          %v3322 = vunpack.c.l.b16 %v3283
          %v3323 = vunpack.c.l.b16 %v3284
          %v3324 = vunpack.c.l.b16 %v3285
          %v3325 = vunpack.c.l.b16 %v3286
          %v3326 = vunpack.c.l.b16 %v3287
          %v3327 = vunpack.c.l.b16 %v3288
          %v3328 = vunpack.c.l.b16 %v3289
          %v3329 = vunpack.c.l.b16 %v3290
          %v3330 = vunpack.c.l.b16 %v3291
          %v3331 = vunpack.c.l.b16 %v3292
          %v3332 = vunpack.c.l.b16 %v3293
          %v3333 = vunpack.c.l.b16 %v3294
          %v3334 = vunpack.c.l.b16 %v3295
          %v3335 = vunpack.c.l.b16 %v3296
          %v3336 = vpack.c.b16 %v3321, %v3320
          %v3337 = vpack.c.b16 %v3323, %v3322
          %v3338 = vpack.c.b16 %v3325, %v3324
          %v3339 = vpack.c.b16 %v3327, %v3326
          %v3340 = vpack.c.b16 %v3329, %v3328
          %v3341 = vpack.c.b16 %v3331, %v3330
          %v3342 = vpack.c.b16 %v3333, %v3332
          %v3343 = vpack.c.b16 %v3335, %v3334
          %3352 = vmatprep.subr.bf16.mxu0 0
          %3353 = vmatpush1.bf16.msra.mxu0 %v3336
          %3354 = vmatprep.subr.bf16.mxu0 0
          %3355 = vmatpush1.bf16.msra.mxu0 %v3337
          %3356 = vmatprep.subr.bf16.mxu0 0
          %3357 = vmatpush1.bf16.msra.mxu0 %v3338
          %3358 = vmatprep.subr.bf16.mxu0 0
          %3359 = vmatpush1.bf16.msra.mxu0 %v3339
          %3360 = vmatprep.subr.bf16.mxu0 0
          %3361 = vmatpush1.bf16.msra.mxu0 %v3340
          %3362 = vmatprep.subr.bf16.mxu0 0
          %3363 = vmatpush1.bf16.msra.mxu0 %v3341
          %3364 = vmatprep.subr.bf16.mxu0 0
          %3365 = vmatpush1.bf16.msra.mxu0 %v3342
          %3366 = vmatprep.subr.bf16.mxu0 0
          %3367 = vmatpush1.bf16.msra.mxu0 %v3343
          %3368 = vmatprep.subr.bf16.mxu0 0
          %3369 = vmatpush1.bf16.msra.mxu0 0
          %3370 = vmatprep.subr.bf16.mxu0 0
          %3371 = vmatpush1.bf16.msra.mxu0 0
          %3372 = vmatprep.subr.bf16.mxu0 0
          %3373 = vmatpush1.bf16.msra.mxu0 0
          %3374 = vmatprep.subr.bf16.mxu0 0
          %3375 = vmatpush1.bf16.msra.mxu0 0
          %3376 = vmatprep.subr.bf16.mxu0 0
          %3377 = vmatpush1.bf16.msra.mxu0 0
          %3378 = vmatprep.subr.bf16.mxu0 0
          %3379 = vmatpush1.bf16.msra.mxu0 0
          %3380 = vmatprep.subr.bf16.mxu0 0
          %3381 = vmatpush1.bf16.msra.mxu0 0
          %3382 = vmatprep.subr.bf16.mxu0 0
          %3383 = vmatpush1.bf16.msra.mxu0 0
          %3384 = vmatprep.mubr.bf16.mxu0 0
          %3385 = vmatmul.mubr.bf16.gmra.mrb[0].mxu0 %v3280
          %v3386 = vpop.f32.mrb[0].mxu0
          %v3387 = vadd.f32 %v3302, %v3386
          %v3388 = vpop.f32.mrb[0].mxu0
          %v3389 = vpop.f32.mrb[0].mxu0
          %v3390 = vpop.f32.mrb[0].mxu0
          %3391 = vdwg.mxu0
          %v3392 = vtanh.pop %v3387
          %v3393 = vpack.c.bf16 %v3392, %v3392
          %v3394 = vld [vmem:[%s18] sm:$0xf]
          %v3395 = vld [vmem:[%s18 + $0x4] sm:$0xf]
          %v3396 = vld [vmem:[%s18 + $0x8] sm:$0xf]
          %v3397 = vld [vmem:[%s18 + $0xc] sm:$0xf]
          %v3398 = vld [vmem:[%s18 + $0x10] sm:$0xf]
          %v3399 = vld [vmem:[%s18 + $0x14] sm:$0xf]
          %v3400 = vld [vmem:[%s18 + $0x18] sm:$0xf]
          %v3401 = vld [vmem:[%s18 + $0x1c] sm:$0xf]
          %v3402 = vld [vmem:[%s18 + $0x20] sm:$0xf]
          %v3403 = vld [vmem:[%s18 + $0x24] sm:$0xf]
          %v3404 = vld [vmem:[%s18 + $0x28] sm:$0xf]
          %v3405 = vld [vmem:[%s18 + $0x2c] sm:$0xf]
          %v3406 = vld [vmem:[%s18 + $0x30] sm:$0xf]
          %v3407 = vld [vmem:[%s18 + $0x34] sm:$0xf]
          %v3408 = vld [vmem:[%s18 + $0x38] sm:$0xf]
          %v3409 = vld [vmem:[%s18 + $0x3c] sm:$0xf]
          %v3410 = vld [vmem:[%s19] sm:$0x1]
          %v3412 = vlaneseq
          %v3413 = vshrl.u32 %v3412, 7
          %v3414 = vsub.s32 0, %v3413
          %v3415 = vrot.slane %v3410, %v3414
          %v3433 = vunpack.c.l.b16 %v3394
          %v3434 = vunpack.c.l.b16 %v3395
          %v3435 = vunpack.c.l.b16 %v3396
          %v3436 = vunpack.c.l.b16 %v3397
          %v3437 = vunpack.c.l.b16 %v3398
          %v3438 = vunpack.c.l.b16 %v3399
          %v3439 = vunpack.c.l.b16 %v3400
          %v3440 = vunpack.c.l.b16 %v3401
          %v3441 = vunpack.c.l.b16 %v3402
          %v3442 = vunpack.c.l.b16 %v3403
          %v3443 = vunpack.c.l.b16 %v3404
          %v3444 = vunpack.c.l.b16 %v3405
          %v3445 = vunpack.c.l.b16 %v3406
          %v3446 = vunpack.c.l.b16 %v3407
          %v3447 = vunpack.c.l.b16 %v3408
          %v3448 = vunpack.c.l.b16 %v3409
          %v3449 = vpack.c.b16 %v3434, %v3433
          %v3450 = vpack.c.b16 %v3436, %v3435
          %v3451 = vpack.c.b16 %v3438, %v3437
          %v3452 = vpack.c.b16 %v3440, %v3439
          %v3453 = vpack.c.b16 %v3442, %v3441
          %v3454 = vpack.c.b16 %v3444, %v3443
          %v3455 = vpack.c.b16 %v3446, %v3445
          %v3456 = vpack.c.b16 %v3448, %v3447
          %3465 = vmatprep.subr.bf16.mxu0 0
          %3466 = vmatpush1.bf16.msra.mxu0 %v3449
          %3467 = vmatprep.subr.bf16.mxu0 0
          %3468 = vmatpush1.bf16.msra.mxu0 %v3450
          %3469 = vmatprep.subr.bf16.mxu0 0
          %3470 = vmatpush1.bf16.msra.mxu0 %v3451
          %3471 = vmatprep.subr.bf16.mxu0 0
          %3472 = vmatpush1.bf16.msra.mxu0 %v3452
          %3473 = vmatprep.subr.bf16.mxu0 0
          %3474 = vmatpush1.bf16.msra.mxu0 %v3453
          %3475 = vmatprep.subr.bf16.mxu0 0
          %3476 = vmatpush1.bf16.msra.mxu0 %v3454
          %3477 = vmatprep.subr.bf16.mxu0 0
          %3478 = vmatpush1.bf16.msra.mxu0 %v3455
          %3479 = vmatprep.subr.bf16.mxu0 0
          %3480 = vmatpush1.bf16.msra.mxu0 %v3456
          %3481 = vmatprep.subr.bf16.mxu0 0
          %3482 = vmatpush1.bf16.msra.mxu0 0
          %3483 = vmatprep.subr.bf16.mxu0 0
          %3484 = vmatpush1.bf16.msra.mxu0 0
          %3485 = vmatprep.subr.bf16.mxu0 0
          %3486 = vmatpush1.bf16.msra.mxu0 0
          %3487 = vmatprep.subr.bf16.mxu0 0
          %3488 = vmatpush1.bf16.msra.mxu0 0
          %3489 = vmatprep.subr.bf16.mxu0 0
          %3490 = vmatpush1.bf16.msra.mxu0 0
          %3491 = vmatprep.subr.bf16.mxu0 0
          %3492 = vmatpush1.bf16.msra.mxu0 0
          %3493 = vmatprep.subr.bf16.mxu0 0
          %3494 = vmatpush1.bf16.msra.mxu0 0
          %3495 = vmatprep.subr.bf16.mxu0 0
          %3496 = vmatpush1.bf16.msra.mxu0 0
          %3497 = vmatprep.mubr.bf16.mxu0 0
          %3498 = vmatmul.mubr.bf16.gmra.mrb[0].mxu0 %v3393
          %v3499 = vpop.f32.mrb[0].mxu0
          %v3500 = vadd.f32 %v3415, %v3499
          %v3501 = vpop.f32.mrb[0].mxu0
          %v3502 = vpop.f32.mrb[0].mxu0
          %v3503 = vpop.f32.mrb[0].mxu0
          %3504 = vdwg.mxu0
          %3505 = vst [vmem:[#allocation30] sm:$0x3] %v3500
        $region172: #{tpu_custom_call.1} parent=99 // pred_fallthru
          _
        // Predicated region
        $region173: #{tpu_custom_call.1} parent=99 // pred_check
          %p3506 = pneg %p546
        $region174: #{tpu_custom_call.1} parent=99 // pred_check_branch
          %3508 = sbr.rel (%p3506) target = $region176
        $region175: #{tpu_custom_call.1} parent=99 // pred_region
          %s3510 = ssub.s32 32, 32
          %3511 = vsyncadd [#allocation6], %s3510
          %s3513 = sshll.u32 [#allocation30], 4
          %s3514 = int_to_ptr.vmem [resolvable:$true] %s3513
          %3516 = dma.vmem_to_hbm [thread:$0]  %s3514, 32, %s20, [#allocation6]
        $region176: #{tpu_custom_call.1} parent=99 // pred_fallthru
          _
        // Predicated region
        $region177: #{tpu_custom_call.1} parent=99 // pred_check
          %p3517 = pneg %p546
        $region178: #{tpu_custom_call.1} parent=99 // pred_check_branch
          %3519 = sbr.rel (%p3517) target = $region180
        $region179: #{tpu_custom_call.1} parent=99 // pred_region
          %3520 = dma.done [#allocation6], 32
        $region180: #{tpu_custom_call.1} parent=99 // pred_fallthru
          _
      $region100: #{tpu_custom_call.1} parent=5 // pred_fallthru
        _
      %p3521 = scmp.le.s32.totalorder 2, %s48
      // Predicated region
      $region181: #{tpu_custom_call.1} parent=5 // pred_check
        %p3522 = pneg %p3521
      $region182: #{tpu_custom_call.1} parent=5 // pred_check_branch
        %3524 = sbr.rel (%p3522) target = $region184
      $region183: #{tpu_custom_call.1} parent=5 // pred_region
        %s3525 = ssub.s32 %s48, 2
      $region184: #{tpu_custom_call.1} parent=5 // pred_fallthru
        _
    $region6: #{tpu_custom_call.1} parent=1 // loop_footer
      %s52 = sadd.s32 1, %s48
    $region7: #{tpu_custom_call.1} parent=1 // loop_footer_branch
      %47 = sbr.rel target = $region3
    $region8: #{tpu_custom_call.1} parent=1 // loop_exit
      _
    %3526 = vsyncpa [#allocation5], 1
    %s3527 = scalar_lea.sflag [#allocation5], 1
    %3528 = vsyncpa %s3527, 1
    %3529 = vsyncpa [#allocation8], 1
    %3530 = vsyncpa [#allocation11], 1
    %s3531 = scalar_lea.sflag [#allocation11], 1
    %3532 = vsyncpa %s3531, 1
    %3533 = vsyncpa [#allocation14], 1
    %s3534 = scalar_lea.sflag [#allocation14], 1
    %3535 = vsyncpa %s3534, 1
    %3536 = vsyncpa [#allocation17], 1
    %s3537 = scalar_lea.sflag [#allocation17], 1
    %3538 = vsyncpa %s3537, 1
    %3539 = vsyncpa [#allocation20], 1
    %s3540 = scalar_lea.sflag [#allocation20], 1
    %3541 = vsyncpa %s3540, 1
    %3542 = vsyncpa [#allocation23], 1
    %s3543 = scalar_lea.sflag [#allocation23], 1
    %3544 = vsyncpa %s3543, 1
    %3545 = vsyncpa [#allocation26], 1
    %s3546 = scalar_lea.sflag [#allocation26], 1
    %3547 = vsyncpa %s3546, 1
    %3548 = vsyncpa [#allocation29], 1
    %3549 = vsyncpa [#allocation6], 1
    %s3550 = scalar_lea.sflag [#allocation6], 1
    %3551 = vsyncpa %s3550, 1

</llo_original>
